<compile_context>
chip_gen: v7x
topology: tpu7x:2x2x1
jax: 0.10.0
libtpu: 0.0.40
codegen_flags: <defaults>
</compile_context>

<pallas_src>
import math
import functools

import jax
import jax.numpy as jnp
import numpy as np
from jax.experimental import pallas as pl
from jax.experimental.pallas import tpu as pltpu


def _device_kind() -> str:
    try:
        return jax.devices()[0].device_kind.lower()
    except Exception:
        return ""


def _pick_tile_q(n_q: int, num_heads: int, n_k: int, score_budget_bytes: int) -> int:
    """Largest q tile (multiple of 8 dividing Nq, <=512) whose f32 score
    footprint H*tile_q*Nk*4 stays within the budget."""
    cap = score_budget_bytes // max(1, num_heads * n_k * 4)
    cap = max(8, min(cap, 512))
    if n_q <= cap:
        return n_q
    t = (min(cap, n_q) // 8) * 8
    while t >= 8 and n_q % t != 0:
        t -= 8
    if t >= 8:
        return t
    # TODO(synk): flash-style KV tiling for huge Nq not divisible by 8.
    return n_q


def _attention_kernel(q_ref, k_ref, v_ref,
                      wq_ref, bq_ref, wk_ref, bk_ref, wv_ref, bv_ref,
                      wo_ref, bo_ref,
                      o_ref,
                      *scratch,
                      num_heads: int, head_dim: int, mxu_dtype, exp_dtype,
                      reuse_kv: bool, approx_recip: bool):
    """One (batch, q-tile) grid step.

    q_ref: (TQ, E)           k_ref/v_ref: (Nk, E)         o_ref: (TQ, E)
    wq/wk/wv_ref: (E, D)     wo_ref: (H, head_dim, E)     b*: (1, D)/(1, E) f32
    scratch (reuse_kv only): kp_ref, vp_ref: (Nk, D) persistent across q tiles.
    """
    f32 = jnp.float32

    # ---- input projections: wide K=E matmuls, f32 accumulation -------------
    # 1/sqrt(head_dim) is already folded into Wq / bq on the host.
    qp = jnp.dot(q_ref[...], wq_ref[...], preferred_element_type=f32) + bq_ref[0]
    qpb = qp.astype(mxu_dtype)                              # (TQ, D)

    if reuse_kv:
        kp_ref, vp_ref = scratch

        # K/V projected once per batch (q-tile axis is innermost, "arbitrary"),
        # stored lane-dense in persistent VMEM scratch and reused by all tiles.
        @pl.when(pl.program_id(1) == 0)
        def _():
            kp = jnp.dot(k_ref[...], wk_ref[...], preferred_element_type=f32) + bk_ref[0]
            vp = jnp.dot(v_ref[...], wv_ref[...], preferred_element_type=f32) + bv_ref[0]
            kp_ref[...] = kp.astype(mxu_dtype)
            vp_ref[...] = vp.astype(mxu_dtype)

        kpb, vpb = kp_ref, vp_ref                           # refs, sliced below
    else:
        kpb = (jnp.dot(k_ref[...], wk_ref[...], preferred_element_type=f32)
               + bk_ref[0]).astype(mxu_dtype)               # (Nk, D) value
        vpb = (jnp.dot(v_ref[...], wv_ref[...], preferred_element_type=f32)
               + bv_ref[0]).astype(mxu_dtype)

    tq = q_ref.shape[0]
    e_out = o_ref.shape[-1]

    # ---- per-head attention, recombination folded into the output proj -----
    # Static lane slices of values/refs; no head-major scratch, no masked
    # sub-lane stores.  Softmax statistics stay f32; exp optionally bf16.
    acc = jnp.zeros((tq, e_out), f32)
    for h in range(num_heads):
        lo = h * head_dim
        hi = lo + head_dim
        qh = qpb[:, lo:hi]                                  # (TQ, c)
        kh = kpb[:, lo:hi]                                  # (Nk, c)
        vh = vpb[:, lo:hi]                                  # (Nk, c)

        s = jnp.einsum("qc,kc->qk", qh, kh,
                       preferred_element_type=f32)          # (TQ, Nk), scale folded
        m = jnp.max(s, axis=-1, keepdims=True)
        p = jnp.exp((s - m).astype(exp_dtype))              # bf16 EUP on v6e/v7x
        l = jnp.sum(p.astype(f32), axis=-1, keepdims=True)  # (TQ, 1) f32

        pv = jnp.dot(p.astype(mxu_dtype), vh,
                     preferred_element_type=f32)            # (TQ, c)
        # Deferred normalization on the small (TQ, c) result.
        if approx_recip:
            pv = pv * pl.reciprocal(l, approx=True)
        else:
            pv = pv / l

        # Head recombination folded into the output projection.
        acc = acc + jnp.dot(pv.astype(mxu_dtype), wo_ref[h],
                            preferred_element_type=f32)     # (TQ, E)

    o_ref[...] = (acc + bo_ref[0]).astype(o_ref.dtype)


def attention_forward(q, k, v, params, *, num_heads: int,
                      tile_q: int | None = None,
                      mxu_dtype=jnp.bfloat16,
                      vmem_limit_bytes: int | None = None,
                      approx_recip: bool = True):
    """q: (B, Nq, E); k, v: (B, Nk, E). Returns (B, Nq, E) in q's dtype."""
    B, Nq, E = q.shape
    _, Nk, _ = k.shape
    D = params["wq"].shape[1]                   # internal_dim
    assert D % num_heads == 0
    head_dim = D // num_heads
    out_dtype = q.dtype

    kind = _device_kind()
    is_v7 = "v7" in kind
    has_bf16_eup = ("v6" in kind) or ("v7" in kind)

    # Generation-aware VMEM budgets (v7x has 64 MiB physical VMEM).
    score_budget = (20 if is_v7 else 32) * 1024 * 1024
    if vmem_limit_bytes is None:
        vmem_limit_bytes = (32 if is_v7 else 48) * 1024 * 1024

    auto_tile = tile_q is None
    if auto_tile:
        tile_q = _pick_tile_q(Nq, num_heads, Nk, score_budget)
    assert Nq % tile_q == 0, "Nq must be divisible by tile_q"
    assert tile_q == Nq or tile_q % 8 == 0, "q tile must be a multiple of 8"
    n_q_tiles = Nq // tile_q

    # Megacore (v7x, 2 TCs): guarantee >= 2 parallel grid steps when the call
    # would otherwise have a single step.  In that case keep both grid axes
    # parallel (K/V recompute across 2 tiles is negligible).
    force_parallel_q = False
    if auto_tile and B * n_q_tiles == 1 and Nq >= 16 and Nq % 16 == 0:
        tile_q = Nq // 2
        n_q_tiles = 2
        force_parallel_q = True

    # K/V-projection reuse across q tiles: q-tile axis becomes "arbitrary"
    # (sequential per batch) so the pl.when(q_tile == 0) scratch-fill is valid.
    reuse_kv = (n_q_tiles > 1) and not force_parallel_q

    exp_dtype = (jnp.bfloat16
                 if (mxu_dtype == jnp.bfloat16 and has_bf16_eup)
                 else jnp.float32)

    # Host-side parameter prep: fold 1/sqrt(head_dim) into the q projection,
    # cast weights to the MXU operand dtype once, keep biases f32, reshape Wo
    # to per-head (H, head_dim, E) so recombination folds into the projection.
    scale = 1.0 / math.sqrt(head_dim)
    wq = (params["wq"] * scale).astype(mxu_dtype)
    bq = (params["bq"] * scale).astype(jnp.float32)
    wk = params["wk"].astype(mxu_dtype)
    bk = params["bk"].astype(jnp.float32)
    wv = params["wv"].astype(mxu_dtype)
    bv = params["bv"].astype(jnp.float32)
    wo = params["wo"].reshape(num_heads, head_dim, E).astype(mxu_dtype)
    bo = params["bo"].astype(jnp.float32)

    # Host-side activation cast: halves HBM traffic of the three input streams
    # and removes per-step in-kernel cast passes.
    q_in = q.astype(mxu_dtype)
    k_in = k.astype(mxu_dtype)
    v_in = v.astype(mxu_dtype)

    kernel = functools.partial(
        _attention_kernel, num_heads=num_heads, head_dim=head_dim,
        mxu_dtype=mxu_dtype, exp_dtype=exp_dtype, reuse_kv=reuse_kv,
        approx_recip=approx_recip)

    # Grid-invariant weights/biases: constant block index -> VMEM-resident
    # across all (batch, q-tile) steps.
    const2d = lambda shape: pl.BlockSpec(shape, lambda b, i: (0, 0))
    const3d = lambda shape: pl.BlockSpec(shape, lambda b, i: (0, 0, 0))

    scratch_shapes = ([pltpu.VMEM((Nk, D), mxu_dtype),      # projected K heads
                       pltpu.VMEM((Nk, D), mxu_dtype)]      # projected V heads
                      if reuse_kv else [])

    dim_sem = ("parallel", "arbitrary") if reuse_kv else ("parallel", "parallel")

    return pl.pallas_call(
        kernel,
        out_shape=jax.ShapeDtypeStruct((B, Nq, E), out_dtype),
        grid_spec=pltpu.PrefetchScalarGridSpec(
            num_scalar_prefetch=0,
            grid=(B, n_q_tiles),
            in_specs=[
                # leading batch dim squeezed out of the kernel refs
                pl.BlockSpec((None, tile_q, E), lambda b, i: (b, i, 0)),   # q
                pl.BlockSpec((None, Nk, E), lambda b, i: (b, 0, 0)),       # k
                pl.BlockSpec((None, Nk, E), lambda b, i: (b, 0, 0)),       # v
                const2d((E, D)), const2d((1, D)),   # Wq, bq (scale folded)
                const2d((E, D)), const2d((1, D)),   # Wk, bk
                const2d((E, D)), const2d((1, D)),   # Wv, bv
                const3d((num_heads, head_dim, E)),  # Wo (per-head)
                const2d((1, E)),                    # bo
            ],
            out_specs=pl.BlockSpec((None, tile_q, E), lambda b, i: (b, i, 0)),
            scratch_shapes=scratch_shapes,
        ),
        compiler_params=pltpu.CompilerParams(
            dimension_semantics=dim_sem,
            vmem_limit_bytes=vmem_limit_bytes,
        ),
    )(q_in, k_in, v_in, wq, bq, wk, bk, wv, bv, wo, bo)


def _reference_attention(q, k, v, params, *, num_heads: int):
    """Pure-JAX f32 reference matching the PyTorch forward exactly."""
    def sep(x):
        b, n, c = x.shape
        return x.reshape(b, n, num_heads, c // num_heads).transpose(0, 2, 1, 3)

    qp = q @ params["wq"] + params["bq"][0]
    kp = k @ params["wk"] + params["bk"][0]
    vp = v @ params["wv"] + params["bv"][0]
    qh, kh, vh = sep(qp), sep(kp), sep(vp)
    c_per_head = qh.shape[-1]
    attn = jnp.einsum("bhqc,bhkc->bhqk", qh, kh) / math.sqrt(c_per_head)
    attn = jax.nn.softmax(attn, axis=-1)
    out = jnp.einsum("bhqk,bhkc->bhqc", attn, vh)
    b, h, n, c = out.shape
    out = out.transpose(0, 2, 1, 3).reshape(b, n, h * c)
    return out @ params["wo"] + params["bo"][0]


def make_params(key, embedding_dim: int, internal_dim: int):
    """Deterministic synthetic parameters (stored transposed: [in, out])."""
    keys = jax.random.split(key, 8)
    scale_in = 1.0 / math.sqrt(embedding_dim)
    scale_int = 1.0 / math.sqrt(internal_dim)
    return {
        "wq": jax.random.normal(keys[0], (embedding_dim, internal_dim), jnp.float32) * scale_in,
        "bq": jax.random.normal(keys[1], (1, internal_dim), jnp.float32) * 0.01,
        "wk": jax.random.normal(keys[2], (embedding_dim, internal_dim), jnp.float32) * scale_in,
        "bk": jax.random.normal(keys[3], (1, internal_dim), jnp.float32) * 0.01,
        "wv": jax.random.normal(keys[4], (embedding_dim, internal_dim), jnp.float32) * scale_in,
        "bv": jax.random.normal(keys[5], (1, internal_dim), jnp.float32) * 0.01,
        "wo": jax.random.normal(keys[6], (internal_dim, embedding_dim), jnp.float32) * scale_int,
        "bo": jax.random.normal(keys[7], (1, embedding_dim), jnp.float32) * 0.01,
    }


if __name__ == "__main__":
    # Shapes consistent with the SAM2 mask-decoder attention
    # (embedding_dim=256, 8 heads, downsample_rate=1 -> head_dim=32).
    embedding_dim = 256
    num_heads = 8
    downsample_rate = 1
    internal_dim = embedding_dim // downsample_rate
    assert internal_dim % num_heads == 0

    key = jax.random.PRNGKey(0)
    kq, kk, kv, kp, kq2 = jax.random.split(key, 5)
    params = make_params(kp, embedding_dim, internal_dim)

    # ---- test 1 & 2: small shapes, single q tile, batch-parallel ----------
    B, Nq, Nk = 2, 32, 64
    q = jax.random.normal(kq, (B, Nq, embedding_dim), jnp.float32)
    k = jax.random.normal(kk, (B, Nk, embedding_dim), jnp.float32)
    v = jax.random.normal(kv, (B, Nk, embedding_dim), jnp.float32)
    ref = _reference_attention(q, k, v, params, num_heads=num_heads)

    # 1) f32 MXU operands: tight numerical check of the kernel structure
    #    (only the approx softmax reciprocal differs from the exact math).
    out_f32 = attention_forward(q, k, v, params, num_heads=num_heads,
                                mxu_dtype=jnp.float32)
    out_f32 = jax.block_until_ready(out_f32)
    np.testing.assert_allclose(np.asarray(out_f32), np.asarray(ref),
                               rtol=2e-3, atol=2e-3)

    # 2) default fast path: bf16 activations/operands, f32 accum + softmax stats.
    out_bf16 = attention_forward(q, k, v, params, num_heads=num_heads)
    out_bf16 = jax.block_until_ready(out_bf16)
    np.testing.assert_allclose(np.asarray(out_bf16), np.asarray(ref),
                               rtol=1e-1, atol=1e-1)

    # 3) multi-q-tile path: K/V projected once per batch, reused across tiles
    #    (q-tile axis "arbitrary", persistent VMEM scratch).
    Nq_big = 256
    q_big = jax.random.normal(kq2, (B, Nq_big, embedding_dim), jnp.float32)
    ref_big = _reference_attention(q_big, k, v, params, num_heads=num_heads)
    out_big = attention_forward(q_big, k, v, params, num_heads=num_heads,
                                tile_q=64)
    out_big = jax.block_until_ready(out_big)
    np.testing.assert_allclose(np.asarray(out_big), np.asarray(ref_big),
                               rtol=1e-1, atol=1e-1)

    # 4) B=1 single-tile case: q axis auto-split into 2 parallel steps
    #    so both v7x TensorCores get work.
    q1, k1, v1 = q[:1], k[:1], v[:1]
    ref1 = _reference_attention(q1, k1, v1, params, num_heads=num_heads)
    out1 = attention_forward(q1, k1, v1, params, num_heads=num_heads)
    out1 = jax.block_until_ready(out1)
    np.testing.assert_allclose(np.asarray(out1), np.asarray(ref1),
                               rtol=1e-1, atol=1e-1)

    print("KERNEL_OK")
</pallas_src>

<mosaic_0001>
module attributes {stable_mosaic.version = 11 : i64} {
  func.func @_attention_kernel(%arg0: i32, %arg1: i32, %arg2: memref<1x32x256xf32, #tpu.memory_space<vmem>>, %arg3: memref<1x64x256xf32, #tpu.memory_space<vmem>>, %arg4: memref<1x64x256xf32, #tpu.memory_space<vmem>>, %arg5: memref<256x256xf32, #tpu.memory_space<vmem>>, %arg6: memref<1x256xf32, #tpu.memory_space<vmem>>, %arg7: memref<256x256xf32, #tpu.memory_space<vmem>>, %arg8: memref<1x256xf32, #tpu.memory_space<vmem>>, %arg9: memref<256x256xf32, #tpu.memory_space<vmem>>, %arg10: memref<1x256xf32, #tpu.memory_space<vmem>>, %arg11: memref<8x32x256xf32, #tpu.memory_space<vmem>>, %arg12: memref<1x256xf32, #tpu.memory_space<vmem>>, %arg13: memref<1x32x256xf32, #tpu.memory_space<vmem>>) attributes {dimension_semantics = [#tpu.dimension_semantics<parallel>, #tpu.dimension_semantics<parallel>], iteration_bounds = array<i64: 2, 1>, scalar_prefetch = 0 : i64, scratch_operands = 0 : i64, tpu.core_type = #tpu.core_type<tc>, window_params = [{transform_indices = @transform_0, window_bounds = array<i64: 1, 32, 256>}, {transform_indices = @transform_1, window_bounds = array<i64: 1, 64, 256>}, {transform_indices = @transform_2, window_bounds = array<i64: 1, 64, 256>}, {pipeline_mode = #tpu.pipeline_mode<synchronous>, transform_indices = @transform_3, window_bounds = array<i64: 256, 256>}, {pipeline_mode = #tpu.pipeline_mode<synchronous>, transform_indices = @transform_4, window_bounds = array<i64: 1, 256>}, {pipeline_mode = #tpu.pipeline_mode<synchronous>, transform_indices = @transform_5, window_bounds = array<i64: 256, 256>}, {pipeline_mode = #tpu.pipeline_mode<synchronous>, transform_indices = @transform_6, window_bounds = array<i64: 1, 256>}, {pipeline_mode = #tpu.pipeline_mode<synchronous>, transform_indices = @transform_7, window_bounds = array<i64: 256, 256>}, {pipeline_mode = #tpu.pipeline_mode<synchronous>, transform_indices = @transform_8, window_bounds = array<i64: 1, 256>}, {pipeline_mode = #tpu.pipeline_mode<synchronous>, transform_indices = @transform_9, window_bounds = array<i64: 8, 32, 256>}, {pipeline_mode = #tpu.pipeline_mode<synchronous>, transform_indices = @transform_10, window_bounds = array<i64: 1, 256>}, {transform_indices = @transform_11, window_bounds = array<i64: 1, 32, 256>}]} {
    %c0 = arith.constant 0 : index
    %c0_0 = arith.constant 0 : index
    %c0_1 = arith.constant 0 : index
    %0 = vector.load %arg2[%c0, %c0_0, %c0_1] : memref<1x32x256xf32, #tpu.memory_space<vmem>>, vector<1x32x256xf32>
    %1 = vector.shape_cast %0 : vector<1x32x256xf32> to vector<32x256xf32>
    %c0_2 = arith.constant 0 : index
    %c0_3 = arith.constant 0 : index
    %2 = vector.load %arg5[%c0_2, %c0_3] : memref<256x256xf32, #tpu.memory_space<vmem>>, vector<256x256xf32>
    %cst = arith.constant dense<0.000000e+00> : vector<32x256xf32>
    %3 = tpu.matmul %1, %2, %cst {dimension_numbers = #tpu.dot_dimension_numbers<[1], [0], [0], [1], [0, 0, 1, 1], [], []>} : vector<32x256xf32>, vector<256x256xf32>, vector<32x256xf32> -> vector<32x256xf32>
    %c0_4 = arith.constant 0 : index
    %c0_5 = arith.constant 0 : index
    %4 = vector.load %arg6[%c0_4, %c0_5] : memref<1x256xf32, #tpu.memory_space<vmem>>, vector<1x256xf32>
    %5 = vector.shape_cast %4 : vector<1x256xf32> to vector<256xf32>
    %6 = vector.shape_cast %5 : vector<256xf32> to vector<1x256xf32>
    %7 = vector.broadcast %6 : vector<1x256xf32> to vector<32x256xf32>
    %8 = arith.addf %3, %7 : vector<32x256xf32>
    %c0_6 = arith.constant 0 : index
    %c0_7 = arith.constant 0 : index
    %c0_8 = arith.constant 0 : index
    %9 = vector.load %arg3[%c0_6, %c0_7, %c0_8] : memref<1x64x256xf32, #tpu.memory_space<vmem>>, vector<1x64x256xf32>
    %10 = vector.shape_cast %9 : vector<1x64x256xf32> to vector<64x256xf32>
    %c0_9 = arith.constant 0 : index
    %c0_10 = arith.constant 0 : index
    %11 = vector.load %arg7[%c0_9, %c0_10] : memref<256x256xf32, #tpu.memory_space<vmem>>, vector<256x256xf32>
    %cst_11 = arith.constant dense<0.000000e+00> : vector<64x256xf32>
    %12 = tpu.matmul %10, %11, %cst_11 {dimension_numbers = #tpu.dot_dimension_numbers<[1], [0], [0], [1], [0, 0, 1, 1], [], []>} : vector<64x256xf32>, vector<256x256xf32>, vector<64x256xf32> -> vector<64x256xf32>
    %c0_12 = arith.constant 0 : index
    %c0_13 = arith.constant 0 : index
    %13 = vector.load %arg8[%c0_12, %c0_13] : memref<1x256xf32, #tpu.memory_space<vmem>>, vector<1x256xf32>
    %14 = vector.shape_cast %13 : vector<1x256xf32> to vector<256xf32>
    %15 = vector.shape_cast %14 : vector<256xf32> to vector<1x256xf32>
    %16 = vector.broadcast %15 : vector<1x256xf32> to vector<64x256xf32>
    %17 = arith.addf %12, %16 : vector<64x256xf32>
    %c0_14 = arith.constant 0 : index
    %c0_15 = arith.constant 0 : index
    %c0_16 = arith.constant 0 : index
    %18 = vector.load %arg4[%c0_14, %c0_15, %c0_16] : memref<1x64x256xf32, #tpu.memory_space<vmem>>, vector<1x64x256xf32>
    %19 = vector.shape_cast %18 : vector<1x64x256xf32> to vector<64x256xf32>
    %c0_17 = arith.constant 0 : index
    %c0_18 = arith.constant 0 : index
    %20 = vector.load %arg9[%c0_17, %c0_18] : memref<256x256xf32, #tpu.memory_space<vmem>>, vector<256x256xf32>
    %cst_19 = arith.constant dense<0.000000e+00> : vector<64x256xf32>
    %21 = tpu.matmul %19, %20, %cst_19 {dimension_numbers = #tpu.dot_dimension_numbers<[1], [0], [0], [1], [0, 0, 1, 1], [], []>} : vector<64x256xf32>, vector<256x256xf32>, vector<64x256xf32> -> vector<64x256xf32>
    %c0_20 = arith.constant 0 : index
    %c0_21 = arith.constant 0 : index
    %22 = vector.load %arg10[%c0_20, %c0_21] : memref<1x256xf32, #tpu.memory_space<vmem>>, vector<1x256xf32>
    %23 = vector.shape_cast %22 : vector<1x256xf32> to vector<256xf32>
    %24 = vector.shape_cast %23 : vector<256xf32> to vector<1x256xf32>
    %25 = vector.broadcast %24 : vector<1x256xf32> to vector<64x256xf32>
    %26 = arith.addf %21, %25 : vector<64x256xf32>
    %cst_22 = arith.constant 0.000000e+00 : f32
    %27 = vector.broadcast %cst_22 : f32 to vector<32x256xf32>
    %28 = vector.extract_strided_slice %8 {offsets = [0, 0], sizes = [32, 32], strides = [1, 1]} : vector<32x256xf32> to vector<32x32xf32>
    %29 = vector.extract_strided_slice %17 {offsets = [0, 0], sizes = [64, 32], strides = [1, 1]} : vector<64x256xf32> to vector<64x32xf32>
    %30 = vector.extract_strided_slice %26 {offsets = [0, 0], sizes = [64, 32], strides = [1, 1]} : vector<64x256xf32> to vector<64x32xf32>
    "tpu.trace_start"() <{level = 10 : i32, message = "qc,kc->qk"}> : () -> ()
    %cst_23 = arith.constant dense<0.000000e+00> : vector<32x64xf32>
    %31 = tpu.matmul %28, %29, %cst_23 {dimension_numbers = #tpu.dot_dimension_numbers<[1], [1], [0], [0], [0, 0, 1, 0], [], []>} : vector<32x32xf32>, vector<64x32xf32>, vector<32x64xf32> -> vector<32x64xf32>
    "tpu.trace_stop"() : () -> ()
    %cst_24 = arith.constant dense<0xFF800000> : vector<32xf32>
    %32 = vector.multi_reduction <maximumf>, %31, %cst_24 [1] : vector<32x64xf32> to vector<32xf32>
    %33 = vector.shape_cast %32 : vector<32xf32> to vector<32x1xf32>
    %34 = vector.broadcast %33 : vector<32x1xf32> to vector<32x64xf32>
    %35 = arith.subf %31, %34 : vector<32x64xf32>
    %36 = math.exp %35 : vector<32x64xf32>
    %cst_25 = arith.constant dense<0.000000e+00> : vector<32xf32>
    %37 = vector.multi_reduction <add>, %36, %cst_25 [1] : vector<32x64xf32> to vector<32xf32>
    %38 = vector.shape_cast %37 : vector<32xf32> to vector<32x1xf32>
    %cst_26 = arith.constant dense<0.000000e+00> : vector<32x32xf32>
    %39 = tpu.matmul %36, %30, %cst_26 {dimension_numbers = #tpu.dot_dimension_numbers<[1], [0], [0], [1], [0, 0, 1, 1], [], []>} : vector<32x64xf32>, vector<64x32xf32>, vector<32x32xf32> -> vector<32x32xf32>
    %40 = tpu.reciprocal %38 {approx = true} : vector<32x1xf32> -> vector<32x1xf32>
    %41 = vector.broadcast %40 : vector<32x1xf32> to vector<32x32xf32>
    %42 = arith.mulf %39, %41 : vector<32x32xf32>
    %c0_27 = arith.constant 0 : index
    %c0_28 = arith.constant 0 : index
    %c0_29 = arith.constant 0 : index
    %43 = vector.load %arg11[%c0_27, %c0_28, %c0_29] : memref<8x32x256xf32, #tpu.memory_space<vmem>>, vector<1x32x256xf32>
    %44 = vector.shape_cast %43 : vector<1x32x256xf32> to vector<32x256xf32>
    %cst_30 = arith.constant dense<0.000000e+00> : vector<32x256xf32>
    %45 = tpu.matmul %42, %44, %cst_30 {dimension_numbers = #tpu.dot_dimension_numbers<[1], [0], [0], [1], [0, 0, 1, 1], [], []>} : vector<32x32xf32>, vector<32x256xf32>, vector<32x256xf32> -> vector<32x256xf32>
    %46 = arith.addf %27, %45 : vector<32x256xf32>
    %47 = vector.extract_strided_slice %8 {offsets = [0, 32], sizes = [32, 32], strides = [1, 1]} : vector<32x256xf32> to vector<32x32xf32>
    %48 = vector.extract_strided_slice %17 {offsets = [0, 32], sizes = [64, 32], strides = [1, 1]} : vector<64x256xf32> to vector<64x32xf32>
    %49 = vector.extract_strided_slice %26 {offsets = [0, 32], sizes = [64, 32], strides = [1, 1]} : vector<64x256xf32> to vector<64x32xf32>
    "tpu.trace_start"() <{level = 10 : i32, message = "qc,kc->qk"}> : () -> ()
    %cst_31 = arith.constant dense<0.000000e+00> : vector<32x64xf32>
    %50 = tpu.matmul %47, %48, %cst_31 {dimension_numbers = #tpu.dot_dimension_numbers<[1], [1], [0], [0], [0, 0, 1, 0], [], []>} : vector<32x32xf32>, vector<64x32xf32>, vector<32x64xf32> -> vector<32x64xf32>
    "tpu.trace_stop"() : () -> ()
    %cst_32 = arith.constant dense<0xFF800000> : vector<32xf32>
    %51 = vector.multi_reduction <maximumf>, %50, %cst_32 [1] : vector<32x64xf32> to vector<32xf32>
    %52 = vector.shape_cast %51 : vector<32xf32> to vector<32x1xf32>
    %53 = vector.broadcast %52 : vector<32x1xf32> to vector<32x64xf32>
    %54 = arith.subf %50, %53 : vector<32x64xf32>
    %55 = math.exp %54 : vector<32x64xf32>
    %cst_33 = arith.constant dense<0.000000e+00> : vector<32xf32>
    %56 = vector.multi_reduction <add>, %55, %cst_33 [1] : vector<32x64xf32> to vector<32xf32>
    %57 = vector.shape_cast %56 : vector<32xf32> to vector<32x1xf32>
    %cst_34 = arith.constant dense<0.000000e+00> : vector<32x32xf32>
    %58 = tpu.matmul %55, %49, %cst_34 {dimension_numbers = #tpu.dot_dimension_numbers<[1], [0], [0], [1], [0, 0, 1, 1], [], []>} : vector<32x64xf32>, vector<64x32xf32>, vector<32x32xf32> -> vector<32x32xf32>
    %59 = tpu.reciprocal %57 {approx = true} : vector<32x1xf32> -> vector<32x1xf32>
    %60 = vector.broadcast %59 : vector<32x1xf32> to vector<32x32xf32>
    %61 = arith.mulf %58, %60 : vector<32x32xf32>
    %c1 = arith.constant 1 : index
    %c0_35 = arith.constant 0 : index
    %c0_36 = arith.constant 0 : index
    %62 = vector.load %arg11[%c1, %c0_35, %c0_36] : memref<8x32x256xf32, #tpu.memory_space<vmem>>, vector<1x32x256xf32>
    %63 = vector.shape_cast %62 : vector<1x32x256xf32> to vector<32x256xf32>
    %cst_37 = arith.constant dense<0.000000e+00> : vector<32x256xf32>
    %64 = tpu.matmul %61, %63, %cst_37 {dimension_numbers = #tpu.dot_dimension_numbers<[1], [0], [0], [1], [0, 0, 1, 1], [], []>} : vector<32x32xf32>, vector<32x256xf32>, vector<32x256xf32> -> vector<32x256xf32>
    %65 = arith.addf %46, %64 : vector<32x256xf32>
    %66 = vector.extract_strided_slice %8 {offsets = [0, 64], sizes = [32, 32], strides = [1, 1]} : vector<32x256xf32> to vector<32x32xf32>
    %67 = vector.extract_strided_slice %17 {offsets = [0, 64], sizes = [64, 32], strides = [1, 1]} : vector<64x256xf32> to vector<64x32xf32>
    %68 = vector.extract_strided_slice %26 {offsets = [0, 64], sizes = [64, 32], strides = [1, 1]} : vector<64x256xf32> to vector<64x32xf32>
    "tpu.trace_start"() <{level = 10 : i32, message = "qc,kc->qk"}> : () -> ()
    %cst_38 = arith.constant dense<0.000000e+00> : vector<32x64xf32>
    %69 = tpu.matmul %66, %67, %cst_38 {dimension_numbers = #tpu.dot_dimension_numbers<[1], [1], [0], [0], [0, 0, 1, 0], [], []>} : vector<32x32xf32>, vector<64x32xf32>, vector<32x64xf32> -> vector<32x64xf32>
    "tpu.trace_stop"() : () -> ()
    %cst_39 = arith.constant dense<0xFF800000> : vector<32xf32>
    %70 = vector.multi_reduction <maximumf>, %69, %cst_39 [1] : vector<32x64xf32> to vector<32xf32>
    %71 = vector.shape_cast %70 : vector<32xf32> to vector<32x1xf32>
    %72 = vector.broadcast %71 : vector<32x1xf32> to vector<32x64xf32>
    %73 = arith.subf %69, %72 : vector<32x64xf32>
    %74 = math.exp %73 : vector<32x64xf32>
    %cst_40 = arith.constant dense<0.000000e+00> : vector<32xf32>
    %75 = vector.multi_reduction <add>, %74, %cst_40 [1] : vector<32x64xf32> to vector<32xf32>
    %76 = vector.shape_cast %75 : vector<32xf32> to vector<32x1xf32>
    %cst_41 = arith.constant dense<0.000000e+00> : vector<32x32xf32>
    %77 = tpu.matmul %74, %68, %cst_41 {dimension_numbers = #tpu.dot_dimension_numbers<[1], [0], [0], [1], [0, 0, 1, 1], [], []>} : vector<32x64xf32>, vector<64x32xf32>, vector<32x32xf32> -> vector<32x32xf32>
    %78 = tpu.reciprocal %76 {approx = true} : vector<32x1xf32> -> vector<32x1xf32>
    %79 = vector.broadcast %78 : vector<32x1xf32> to vector<32x32xf32>
    %80 = arith.mulf %77, %79 : vector<32x32xf32>
    %c2 = arith.constant 2 : index
    %c0_42 = arith.constant 0 : index
    %c0_43 = arith.constant 0 : index
    %81 = vector.load %arg11[%c2, %c0_42, %c0_43] : memref<8x32x256xf32, #tpu.memory_space<vmem>>, vector<1x32x256xf32>
    %82 = vector.shape_cast %81 : vector<1x32x256xf32> to vector<32x256xf32>
    %cst_44 = arith.constant dense<0.000000e+00> : vector<32x256xf32>
    %83 = tpu.matmul %80, %82, %cst_44 {dimension_numbers = #tpu.dot_dimension_numbers<[1], [0], [0], [1], [0, 0, 1, 1], [], []>} : vector<32x32xf32>, vector<32x256xf32>, vector<32x256xf32> -> vector<32x256xf32>
    %84 = arith.addf %65, %83 : vector<32x256xf32>
    %85 = vector.extract_strided_slice %8 {offsets = [0, 96], sizes = [32, 32], strides = [1, 1]} : vector<32x256xf32> to vector<32x32xf32>
    %86 = vector.extract_strided_slice %17 {offsets = [0, 96], sizes = [64, 32], strides = [1, 1]} : vector<64x256xf32> to vector<64x32xf32>
    %87 = vector.extract_strided_slice %26 {offsets = [0, 96], sizes = [64, 32], strides = [1, 1]} : vector<64x256xf32> to vector<64x32xf32>
    "tpu.trace_start"() <{level = 10 : i32, message = "qc,kc->qk"}> : () -> ()
    %cst_45 = arith.constant dense<0.000000e+00> : vector<32x64xf32>
    %88 = tpu.matmul %85, %86, %cst_45 {dimension_numbers = #tpu.dot_dimension_numbers<[1], [1], [0], [0], [0, 0, 1, 0], [], []>} : vector<32x32xf32>, vector<64x32xf32>, vector<32x64xf32> -> vector<32x64xf32>
    "tpu.trace_stop"() : () -> ()
    %cst_46 = arith.constant dense<0xFF800000> : vector<32xf32>
    %89 = vector.multi_reduction <maximumf>, %88, %cst_46 [1] : vector<32x64xf32> to vector<32xf32>
    %90 = vector.shape_cast %89 : vector<32xf32> to vector<32x1xf32>
    %91 = vector.broadcast %90 : vector<32x1xf32> to vector<32x64xf32>
    %92 = arith.subf %88, %91 : vector<32x64xf32>
    %93 = math.exp %92 : vector<32x64xf32>
    %cst_47 = arith.constant dense<0.000000e+00> : vector<32xf32>
    %94 = vector.multi_reduction <add>, %93, %cst_47 [1] : vector<32x64xf32> to vector<32xf32>
    %95 = vector.shape_cast %94 : vector<32xf32> to vector<32x1xf32>
    %cst_48 = arith.constant dense<0.000000e+00> : vector<32x32xf32>
    %96 = tpu.matmul %93, %87, %cst_48 {dimension_numbers = #tpu.dot_dimension_numbers<[1], [0], [0], [1], [0, 0, 1, 1], [], []>} : vector<32x64xf32>, vector<64x32xf32>, vector<32x32xf32> -> vector<32x32xf32>
    %97 = tpu.reciprocal %95 {approx = true} : vector<32x1xf32> -> vector<32x1xf32>
    %98 = vector.broadcast %97 : vector<32x1xf32> to vector<32x32xf32>
    %99 = arith.mulf %96, %98 : vector<32x32xf32>
    %c3 = arith.constant 3 : index
    %c0_49 = arith.constant 0 : index
    %c0_50 = arith.constant 0 : index
    %100 = vector.load %arg11[%c3, %c0_49, %c0_50] : memref<8x32x256xf32, #tpu.memory_space<vmem>>, vector<1x32x256xf32>
    %101 = vector.shape_cast %100 : vector<1x32x256xf32> to vector<32x256xf32>
    %cst_51 = arith.constant dense<0.000000e+00> : vector<32x256xf32>
    %102 = tpu.matmul %99, %101, %cst_51 {dimension_numbers = #tpu.dot_dimension_numbers<[1], [0], [0], [1], [0, 0, 1, 1], [], []>} : vector<32x32xf32>, vector<32x256xf32>, vector<32x256xf32> -> vector<32x256xf32>
    %103 = arith.addf %84, %102 : vector<32x256xf32>
    %104 = vector.extract_strided_slice %8 {offsets = [0, 128], sizes = [32, 32], strides = [1, 1]} : vector<32x256xf32> to vector<32x32xf32>
    %105 = vector.extract_strided_slice %17 {offsets = [0, 128], sizes = [64, 32], strides = [1, 1]} : vector<64x256xf32> to vector<64x32xf32>
    %106 = vector.extract_strided_slice %26 {offsets = [0, 128], sizes = [64, 32], strides = [1, 1]} : vector<64x256xf32> to vector<64x32xf32>
    "tpu.trace_start"() <{level = 10 : i32, message = "qc,kc->qk"}> : () -> ()
    %cst_52 = arith.constant dense<0.000000e+00> : vector<32x64xf32>
    %107 = tpu.matmul %104, %105, %cst_52 {dimension_numbers = #tpu.dot_dimension_numbers<[1], [1], [0], [0], [0, 0, 1, 0], [], []>} : vector<32x32xf32>, vector<64x32xf32>, vector<32x64xf32> -> vector<32x64xf32>
    "tpu.trace_stop"() : () -> ()
    %cst_53 = arith.constant dense<0xFF800000> : vector<32xf32>
    %108 = vector.multi_reduction <maximumf>, %107, %cst_53 [1] : vector<32x64xf32> to vector<32xf32>
    %109 = vector.shape_cast %108 : vector<32xf32> to vector<32x1xf32>
    %110 = vector.broadcast %109 : vector<32x1xf32> to vector<32x64xf32>
    %111 = arith.subf %107, %110 : vector<32x64xf32>
    %112 = math.exp %111 : vector<32x64xf32>
    %cst_54 = arith.constant dense<0.000000e+00> : vector<32xf32>
    %113 = vector.multi_reduction <add>, %112, %cst_54 [1] : vector<32x64xf32> to vector<32xf32>
    %114 = vector.shape_cast %113 : vector<32xf32> to vector<32x1xf32>
    %cst_55 = arith.constant dense<0.000000e+00> : vector<32x32xf32>
    %115 = tpu.matmul %112, %106, %cst_55 {dimension_numbers = #tpu.dot_dimension_numbers<[1], [0], [0], [1], [0, 0, 1, 1], [], []>} : vector<32x64xf32>, vector<64x32xf32>, vector<32x32xf32> -> vector<32x32xf32>
    %116 = tpu.reciprocal %114 {approx = true} : vector<32x1xf32> -> vector<32x1xf32>
    %117 = vector.broadcast %116 : vector<32x1xf32> to vector<32x32xf32>
    %118 = arith.mulf %115, %117 : vector<32x32xf32>
    %c4 = arith.constant 4 : index
    %c0_56 = arith.constant 0 : index
    %c0_57 = arith.constant 0 : index
    %119 = vector.load %arg11[%c4, %c0_56, %c0_57] : memref<8x32x256xf32, #tpu.memory_space<vmem>>, vector<1x32x256xf32>
    %120 = vector.shape_cast %119 : vector<1x32x256xf32> to vector<32x256xf32>
    %cst_58 = arith.constant dense<0.000000e+00> : vector<32x256xf32>
    %121 = tpu.matmul %118, %120, %cst_58 {dimension_numbers = #tpu.dot_dimension_numbers<[1], [0], [0], [1], [0, 0, 1, 1], [], []>} : vector<32x32xf32>, vector<32x256xf32>, vector<32x256xf32> -> vector<32x256xf32>
    %122 = arith.addf %103, %121 : vector<32x256xf32>
    %123 = vector.extract_strided_slice %8 {offsets = [0, 160], sizes = [32, 32], strides = [1, 1]} : vector<32x256xf32> to vector<32x32xf32>
    %124 = vector.extract_strided_slice %17 {offsets = [0, 160], sizes = [64, 32], strides = [1, 1]} : vector<64x256xf32> to vector<64x32xf32>
    %125 = vector.extract_strided_slice %26 {offsets = [0, 160], sizes = [64, 32], strides = [1, 1]} : vector<64x256xf32> to vector<64x32xf32>
    "tpu.trace_start"() <{level = 10 : i32, message = "qc,kc->qk"}> : () -> ()
    %cst_59 = arith.constant dense<0.000000e+00> : vector<32x64xf32>
    %126 = tpu.matmul %123, %124, %cst_59 {dimension_numbers = #tpu.dot_dimension_numbers<[1], [1], [0], [0], [0, 0, 1, 0], [], []>} : vector<32x32xf32>, vector<64x32xf32>, vector<32x64xf32> -> vector<32x64xf32>
    "tpu.trace_stop"() : () -> ()
    %cst_60 = arith.constant dense<0xFF800000> : vector<32xf32>
    %127 = vector.multi_reduction <maximumf>, %126, %cst_60 [1] : vector<32x64xf32> to vector<32xf32>
    %128 = vector.shape_cast %127 : vector<32xf32> to vector<32x1xf32>
    %129 = vector.broadcast %128 : vector<32x1xf32> to vector<32x64xf32>
    %130 = arith.subf %126, %129 : vector<32x64xf32>
    %131 = math.exp %130 : vector<32x64xf32>
    %cst_61 = arith.constant dense<0.000000e+00> : vector<32xf32>
    %132 = vector.multi_reduction <add>, %131, %cst_61 [1] : vector<32x64xf32> to vector<32xf32>
    %133 = vector.shape_cast %132 : vector<32xf32> to vector<32x1xf32>
    %cst_62 = arith.constant dense<0.000000e+00> : vector<32x32xf32>
    %134 = tpu.matmul %131, %125, %cst_62 {dimension_numbers = #tpu.dot_dimension_numbers<[1], [0], [0], [1], [0, 0, 1, 1], [], []>} : vector<32x64xf32>, vector<64x32xf32>, vector<32x32xf32> -> vector<32x32xf32>
    %135 = tpu.reciprocal %133 {approx = true} : vector<32x1xf32> -> vector<32x1xf32>
    %136 = vector.broadcast %135 : vector<32x1xf32> to vector<32x32xf32>
    %137 = arith.mulf %134, %136 : vector<32x32xf32>
    %c5 = arith.constant 5 : index
    %c0_63 = arith.constant 0 : index
    %c0_64 = arith.constant 0 : index
    %138 = vector.load %arg11[%c5, %c0_63, %c0_64] : memref<8x32x256xf32, #tpu.memory_space<vmem>>, vector<1x32x256xf32>
    %139 = vector.shape_cast %138 : vector<1x32x256xf32> to vector<32x256xf32>
    %cst_65 = arith.constant dense<0.000000e+00> : vector<32x256xf32>
    %140 = tpu.matmul %137, %139, %cst_65 {dimension_numbers = #tpu.dot_dimension_numbers<[1], [0], [0], [1], [0, 0, 1, 1], [], []>} : vector<32x32xf32>, vector<32x256xf32>, vector<32x256xf32> -> vector<32x256xf32>
    %141 = arith.addf %122, %140 : vector<32x256xf32>
    %142 = vector.extract_strided_slice %8 {offsets = [0, 192], sizes = [32, 32], strides = [1, 1]} : vector<32x256xf32> to vector<32x32xf32>
    %143 = vector.extract_strided_slice %17 {offsets = [0, 192], sizes = [64, 32], strides = [1, 1]} : vector<64x256xf32> to vector<64x32xf32>
    %144 = vector.extract_strided_slice %26 {offsets = [0, 192], sizes = [64, 32], strides = [1, 1]} : vector<64x256xf32> to vector<64x32xf32>
    "tpu.trace_start"() <{level = 10 : i32, message = "qc,kc->qk"}> : () -> ()
    %cst_66 = arith.constant dense<0.000000e+00> : vector<32x64xf32>
    %145 = tpu.matmul %142, %143, %cst_66 {dimension_numbers = #tpu.dot_dimension_numbers<[1], [1], [0], [0], [0, 0, 1, 0], [], []>} : vector<32x32xf32>, vector<64x32xf32>, vector<32x64xf32> -> vector<32x64xf32>
    "tpu.trace_stop"() : () -> ()
    %cst_67 = arith.constant dense<0xFF800000> : vector<32xf32>
    %146 = vector.multi_reduction <maximumf>, %145, %cst_67 [1] : vector<32x64xf32> to vector<32xf32>
    %147 = vector.shape_cast %146 : vector<32xf32> to vector<32x1xf32>
    %148 = vector.broadcast %147 : vector<32x1xf32> to vector<32x64xf32>
    %149 = arith.subf %145, %148 : vector<32x64xf32>
    %150 = math.exp %149 : vector<32x64xf32>
    %cst_68 = arith.constant dense<0.000000e+00> : vector<32xf32>
    %151 = vector.multi_reduction <add>, %150, %cst_68 [1] : vector<32x64xf32> to vector<32xf32>
    %152 = vector.shape_cast %151 : vector<32xf32> to vector<32x1xf32>
    %cst_69 = arith.constant dense<0.000000e+00> : vector<32x32xf32>
    %153 = tpu.matmul %150, %144, %cst_69 {dimension_numbers = #tpu.dot_dimension_numbers<[1], [0], [0], [1], [0, 0, 1, 1], [], []>} : vector<32x64xf32>, vector<64x32xf32>, vector<32x32xf32> -> vector<32x32xf32>
    %154 = tpu.reciprocal %152 {approx = true} : vector<32x1xf32> -> vector<32x1xf32>
    %155 = vector.broadcast %154 : vector<32x1xf32> to vector<32x32xf32>
    %156 = arith.mulf %153, %155 : vector<32x32xf32>
    %c6 = arith.constant 6 : index
    %c0_70 = arith.constant 0 : index
    %c0_71 = arith.constant 0 : index
    %157 = vector.load %arg11[%c6, %c0_70, %c0_71] : memref<8x32x256xf32, #tpu.memory_space<vmem>>, vector<1x32x256xf32>
    %158 = vector.shape_cast %157 : vector<1x32x256xf32> to vector<32x256xf32>
    %cst_72 = arith.constant dense<0.000000e+00> : vector<32x256xf32>
    %159 = tpu.matmul %156, %158, %cst_72 {dimension_numbers = #tpu.dot_dimension_numbers<[1], [0], [0], [1], [0, 0, 1, 1], [], []>} : vector<32x32xf32>, vector<32x256xf32>, vector<32x256xf32> -> vector<32x256xf32>
    %160 = arith.addf %141, %159 : vector<32x256xf32>
    %161 = vector.extract_strided_slice %8 {offsets = [0, 224], sizes = [32, 32], strides = [1, 1]} : vector<32x256xf32> to vector<32x32xf32>
    %162 = vector.extract_strided_slice %17 {offsets = [0, 224], sizes = [64, 32], strides = [1, 1]} : vector<64x256xf32> to vector<64x32xf32>
    %163 = vector.extract_strided_slice %26 {offsets = [0, 224], sizes = [64, 32], strides = [1, 1]} : vector<64x256xf32> to vector<64x32xf32>
    "tpu.trace_start"() <{level = 10 : i32, message = "qc,kc->qk"}> : () -> ()
    %cst_73 = arith.constant dense<0.000000e+00> : vector<32x64xf32>
    %164 = tpu.matmul %161, %162, %cst_73 {dimension_numbers = #tpu.dot_dimension_numbers<[1], [1], [0], [0], [0, 0, 1, 0], [], []>} : vector<32x32xf32>, vector<64x32xf32>, vector<32x64xf32> -> vector<32x64xf32>
    "tpu.trace_stop"() : () -> ()
    %cst_74 = arith.constant dense<0xFF800000> : vector<32xf32>
    %165 = vector.multi_reduction <maximumf>, %164, %cst_74 [1] : vector<32x64xf32> to vector<32xf32>
    %166 = vector.shape_cast %165 : vector<32xf32> to vector<32x1xf32>
    %167 = vector.broadcast %166 : vector<32x1xf32> to vector<32x64xf32>
    %168 = arith.subf %164, %167 : vector<32x64xf32>
    %169 = math.exp %168 : vector<32x64xf32>
    %cst_75 = arith.constant dense<0.000000e+00> : vector<32xf32>
    %170 = vector.multi_reduction <add>, %169, %cst_75 [1] : vector<32x64xf32> to vector<32xf32>
    %171 = vector.shape_cast %170 : vector<32xf32> to vector<32x1xf32>
    %cst_76 = arith.constant dense<0.000000e+00> : vector<32x32xf32>
    %172 = tpu.matmul %169, %163, %cst_76 {dimension_numbers = #tpu.dot_dimension_numbers<[1], [0], [0], [1], [0, 0, 1, 1], [], []>} : vector<32x64xf32>, vector<64x32xf32>, vector<32x32xf32> -> vector<32x32xf32>
    %173 = tpu.reciprocal %171 {approx = true} : vector<32x1xf32> -> vector<32x1xf32>
    %174 = vector.broadcast %173 : vector<32x1xf32> to vector<32x32xf32>
    %175 = arith.mulf %172, %174 : vector<32x32xf32>
    %c7 = arith.constant 7 : index
    %c0_77 = arith.constant 0 : index
    %c0_78 = arith.constant 0 : index
    %176 = vector.load %arg11[%c7, %c0_77, %c0_78] : memref<8x32x256xf32, #tpu.memory_space<vmem>>, vector<1x32x256xf32>
    %177 = vector.shape_cast %176 : vector<1x32x256xf32> to vector<32x256xf32>
    %cst_79 = arith.constant dense<0.000000e+00> : vector<32x256xf32>
    %178 = tpu.matmul %175, %177, %cst_79 {dimension_numbers = #tpu.dot_dimension_numbers<[1], [0], [0], [1], [0, 0, 1, 1], [], []>} : vector<32x32xf32>, vector<32x256xf32>, vector<32x256xf32> -> vector<32x256xf32>
    %179 = arith.addf %160, %178 : vector<32x256xf32>
    %c0_80 = arith.constant 0 : index
    %c0_81 = arith.constant 0 : index
    %180 = vector.load %arg12[%c0_80, %c0_81] : memref<1x256xf32, #tpu.memory_space<vmem>>, vector<1x256xf32>
    %181 = vector.shape_cast %180 : vector<1x256xf32> to vector<256xf32>
    %182 = vector.shape_cast %181 : vector<256xf32> to vector<1x256xf32>
    %183 = vector.broadcast %182 : vector<1x256xf32> to vector<32x256xf32>
    %184 = arith.addf %179, %183 : vector<32x256xf32>
    %c0_82 = arith.constant 0 : index
    %c0_83 = arith.constant 0 : index
    %c0_84 = arith.constant 0 : index
    %185 = vector.load %arg13[%c0_82, %c0_83, %c0_84] : memref<1x32x256xf32, #tpu.memory_space<vmem>>, vector<1x32x256xf32>
    %186 = vector.shape_cast %185 : vector<1x32x256xf32> to vector<32x256xf32>
    %187 = vector.shape_cast %184 : vector<32x256xf32> to vector<1x32x256xf32>
    tpu.vector_store %arg13[%c0_82, %c0_83, %c0_84], %187 {strides = array<i32>} : memref<1x32x256xf32, #tpu.memory_space<vmem>>, vector<1x32x256xf32>,
    return
  }
  func.func @transform_0(%arg0: i32, %arg1: i32) -> (i32, i32, i32) {
    %c0_i32 = arith.constant 0 : i32
    %c0_i32_0 = arith.constant 0 : i32
    return %arg0, %arg1, %c0_i32 : i32, i32, i32
  }
  func.func @transform_1(%arg0: i32, %arg1: i32) -> (i32, i32, i32) {
    %c0_i32 = arith.constant 0 : i32
    %c0_i32_0 = arith.constant 0 : i32
    %c0_i32_1 = arith.constant 0 : i32
    return %arg0, %c0_i32, %c0_i32_0 : i32, i32, i32
  }
  func.func @transform_2(%arg0: i32, %arg1: i32) -> (i32, i32, i32) {
    %c0_i32 = arith.constant 0 : i32
    %c0_i32_0 = arith.constant 0 : i32
    %c0_i32_1 = arith.constant 0 : i32
    return %arg0, %c0_i32, %c0_i32_0 : i32, i32, i32
  }
  func.func @transform_3(%arg0: i32, %arg1: i32) -> (i32, i32) {
    %c0_i32 = arith.constant 0 : i32
    %c0_i32_0 = arith.constant 0 : i32
    %c0_i32_1 = arith.constant 0 : i32
    return %c0_i32, %c0_i32_0 : i32, i32
  }
  func.func @transform_4(%arg0: i32, %arg1: i32) -> (i32, i32) {
    %c0_i32 = arith.constant 0 : i32
    %c0_i32_0 = arith.constant 0 : i32
    %c0_i32_1 = arith.constant 0 : i32
    return %c0_i32, %c0_i32_0 : i32, i32
  }
  func.func @transform_5(%arg0: i32, %arg1: i32) -> (i32, i32) {
    %c0_i32 = arith.constant 0 : i32
    %c0_i32_0 = arith.constant 0 : i32
    %c0_i32_1 = arith.constant 0 : i32
    return %c0_i32, %c0_i32_0 : i32, i32
  }
  func.func @transform_6(%arg0: i32, %arg1: i32) -> (i32, i32) {
    %c0_i32 = arith.constant 0 : i32
    %c0_i32_0 = arith.constant 0 : i32
    %c0_i32_1 = arith.constant 0 : i32
    return %c0_i32, %c0_i32_0 : i32, i32
  }
  func.func @transform_7(%arg0: i32, %arg1: i32) -> (i32, i32) {
    %c0_i32 = arith.constant 0 : i32
    %c0_i32_0 = arith.constant 0 : i32
    %c0_i32_1 = arith.constant 0 : i32
    return %c0_i32, %c0_i32_0 : i32, i32
  }
  func.func @transform_8(%arg0: i32, %arg1: i32) -> (i32, i32) {
    %c0_i32 = arith.constant 0 : i32
    %c0_i32_0 = arith.constant 0 : i32
    %c0_i32_1 = arith.constant 0 : i32
    return %c0_i32, %c0_i32_0 : i32, i32
  }
  func.func @transform_9(%arg0: i32, %arg1: i32) -> (i32, i32, i32) {
    %c0_i32 = arith.constant 0 : i32
    %c0_i32_0 = arith.constant 0 : i32
    %c0_i32_1 = arith.constant 0 : i32
    %c0_i32_2 = arith.constant 0 : i32
    return %c0_i32, %c0_i32_0, %c0_i32_1 : i32, i32, i32
  }
  func.func @transform_10(%arg0: i32, %arg1: i32) -> (i32, i32) {
    %c0_i32 = arith.constant 0 : i32
    %c0_i32_0 = arith.constant 0 : i32
    %c0_i32_1 = arith.constant 0 : i32
    return %c0_i32, %c0_i32_0 : i32, i32
  }
  func.func @transform_11(%arg0: i32, %arg1: i32) -> (i32, i32, i32) {
    %c0_i32 = arith.constant 0 : i32
    %c0_i32_0 = arith.constant 0 : i32
    return %arg0, %arg1, %c0_i32 : i32, i32, i32
  }
}

</mosaic_0001>

<llo_original>
// kernel: tpu_custom_call.1
$region0: #{tpu_custom_call.1}
  #allocation0 [shape = 'u32[]', space=smem, size = 0x4, offset = 0x4, fixed_abs, tag = 'smem constant byte address 0x4 - core index']
  #allocation1 [shape = 'u32[144,128]{1,0:T(1,128)}', space=vmem, size = 0x12000, scoped, tag = 'internal scratch']
  %s0 = inlined_call_operand.hbm [shape: f32[2,32,256], index: 0, kind: input, shape index: {}]
  %s1 = inlined_call_operand.hbm [shape: f32[2,64,256], index: 1, kind: input, shape index: {}]
  %s2 = inlined_call_operand.hbm [shape: f32[2,64,256], index: 2, kind: input, shape index: {}]
  %s3 = inlined_call_operand.hbm [shape: f32[256,256], index: 3, kind: input, shape index: {}]
  %s4 = inlined_call_operand.vmem [shape: f32[1,256], index: 4, kind: input, shape index: {}]
  %s5 = inlined_call_operand.hbm [shape: f32[256,256], index: 5, kind: input, shape index: {}]
  %s6 = inlined_call_operand.vmem [shape: f32[1,256], index: 6, kind: input, shape index: {}]
  %s7 = inlined_call_operand.hbm [shape: f32[256,256], index: 7, kind: input, shape index: {}]
  %s8 = inlined_call_operand.vmem [shape: f32[1,256], index: 8, kind: input, shape index: {}]
  %s9 = inlined_call_operand.hbm [shape: f32[8,32,256], index: 9, kind: input, shape index: {}]
  %s10 = inlined_call_operand.vmem [shape: f32[1,256], index: 10, kind: input, shape index: {}]
  %s11 = inlined_call_operand.hbm [shape: f32[2,32,256], index: 11, kind: output, shape index: {}]
  %s12 = sld [smem:[#allocation0]]
  $region105: #{tpu_custom_call.1} parent=0
    _
  %s14 = ssub.s32 1, %s12
  %s15 = scalar_select 0, %s14, %s12
  $region1: #{tpu_custom_call.1} parent=0
    #allocation2 [shape = 'u8[65536]{0}', space=vmem, size = 0x10000, scoped, tag = 'input window, operand 0']
    #allocation3 [shape = 's32[2]{0}', space=sflag, size = 0x8, scoped, tag = 'scoped memory for tpu_custom_call.1']
    #allocation4 [shape = 's32[2]{0}', space=sflag, size = 0x8, scoped, tag = 'scoped memory for tpu_custom_call.1']
    #allocation5 [shape = 'u8[131072]{0}', space=vmem, size = 0x20000, scoped, tag = 'input window, operand 1']
    #allocation6 [shape = 's32[2]{0}', space=sflag, size = 0x8, scoped, tag = 'scoped memory for tpu_custom_call.1']
    #allocation7 [shape = 'u8[131072]{0}', space=vmem, size = 0x20000, scoped, tag = 'input window, operand 2']
    #allocation8 [shape = 'u8[262144]{0}', space=vmem, size = 0x40000, scoped, tag = 'input window, operand 3, single buffered']
    #allocation9 [shape = 's32[1]{0}', space=sflag, size = 0x4, scoped, tag = 'scoped memory for tpu_custom_call.1']
    #allocation10 [shape = 'u8[262144]{0}', space=vmem, size = 0x40000, scoped, tag = 'input window, operand 5, single buffered']
    #allocation11 [shape = 'u8[262144]{0}', space=vmem, size = 0x40000, scoped, tag = 'input window, operand 7, single buffered']
    #allocation12 [shape = 's32[1]{0}', space=sflag, size = 0x4, scoped, tag = 'scoped memory for tpu_custom_call.1']
    #allocation13 [shape = 'u8[262144]{0}', space=vmem, size = 0x40000, scoped, tag = 'input window, operand 9, single buffered']
    #allocation14 [shape = 'u8[65536]{0}', space=vmem, size = 0x10000, scoped, tag = 'output window, operand 0']
    %16 = vsyncpa [#allocation3], 0
    %s17 = scalar_lea.sflag [#allocation3], 1
    %18 = vsyncpa %s17, 0
    %19 = vsyncpa [#allocation6], 0
    %s20 = scalar_lea.sflag [#allocation6], 1
    %21 = vsyncpa %s20, 0
    %22 = vsyncpa [#allocation9], 0
    %23 = vsyncpa [#allocation12], 0
    %24 = vsyncpa [#allocation4], 0
    %s25 = scalar_lea.sflag [#allocation4], 1
    %26 = vsyncpa %s25, 0
    loop: start=0, step=1, limit=4
    $region2: #{tpu_custom_call.1} parent=1 // loop_pre_header
      _
    $region3: #{tpu_custom_call.1} parent=1 // loop_header
      %s28 = sphi 0, %s32
      %p29 = scmp.ge.s32.totalorder %s28, 4
      %s35 = sphi 0, %s47
      %s36 = sphi 0, %s43
      %s37 = sphi 0, %s35
      %s38 = sphi 0, %s36
      %s39 = sphi 0, %s37
      %s40 = sphi 0, %s38
      %s52 = sphi 0, %s54
      %s55 = sphi 0, %s52
      %s56 = sphi 0, %s55
      %s72 = sphi 0, %s56
      %s78 = sphi 0, %s80
      %s81 = sphi 0, %s78
      %s82 = sphi 0, %s81
      %s98 = sphi 0, %s82
      %s104 = sphi 0, %s106
      %s107 = sphi 0, %s104
      %s108 = sphi 0, %s107
      %s124 = sphi 0, %s108
      %s128 = sphi 0, %s128
      %s130 = sphi 0, %s128
      %s131 = sphi 0, %s130
      %s145 = sphi 0, %s131
      %s149 = sphi 0, %s149
      %s151 = sphi 0, %s149
      %s152 = sphi 0, %s151
      %s166 = sphi 0, %s152
      %s170 = sphi 0, %s170
      %s172 = sphi 0, %s170
      %s173 = sphi 0, %s172
      %s187 = sphi 0, %s173
      %s191 = sphi 0, %s191
      %s193 = sphi 0, %s191
      %s194 = sphi 0, %s193
      %s208 = sphi 0, %s194
      %s212 = sphi 0, %s212
      %s214 = sphi 0, %s212
      %s215 = sphi 0, %s214
      %s229 = sphi 0, %s215
      %s233 = sphi 0, %s233
      %s235 = sphi 0, %s233
      %s236 = sphi 0, %s235
      %s250 = sphi 0, %s236
      %s254 = sphi 0, %s254
      %s256 = sphi 0, %s254
      %s257 = sphi 0, %s256
      %s271 = sphi 0, %s257
      %s275 = sphi 0, %s275
      %s277 = sphi 0, %s275
      %s278 = sphi 0, %s277
      %s292 = sphi 0, %s278
      %s300 = sphi 0, %s302
      %s303 = sphi 0, %s300
      %s304 = sphi 0, %s303
      %s320 = sphi 0, %s304
    $region4: #{tpu_custom_call.1} parent=1 // loop_header_branch
      %31 = sbr.rel (%p29) target = $region8
    $region5: #{tpu_custom_call.1} parent=1 // loop_body
      %s33 = ssub.s32 %s28, 1
      %s34 = ssub.s32 %s28, 2
      %s41 = sadd.s32 1, %s36
      %p42 = scmp.ge.s32.totalorder %s41, 1
      %s43 = scalar_select %p42, 0, %s41
      %s44 = sadd.s32 1, %s35
      %s45 = scalar_select %p42, %s44, %s35
      %p46 = scmp.ge.s32.totalorder %s45, 2
      %s47 = scalar_select %p46, 0, %s45
      %s48 = ssub.s32 %s35, %s47
      %s49 = ssub.s32 %s36, %s43
      %s50 = sor.u32 %s48, %s49
      %p51 = scmp.eq.s32.totalorder %s50, 0
      %s53 = sadd.s32 %s52, 1
      %s54 = scalar_select %p51, %s52, %s53
      %p57 = pneg %p51
      %p58 = scmp.eq.s32.totalorder %s28, 1
      %p59 = por %p57, %p58
      %p60 = scmp.ne.s32.totalorder %s52, %s55
      %p61 = scmp.eq.s32.totalorder %s28, 0
      %p62 = por %p60, %p61
      %p63 = scmp.ne.s32.totalorder %s52, %s55
      %p64 = scmp.eq.s32.totalorder %s33, 1
      %p65 = por %p63, %p64
      %p66 = scmp.ne.s32.totalorder %s55, %s56
      %p67 = scmp.eq.s32.totalorder %s33, 0
      %p68 = por %p66, %p67
      %p69 = scmp.ne.s32.totalorder %s55, %s56
      %p70 = scmp.eq.s32.totalorder %s34, 1
      %p71 = por %p69, %p70
      %p73 = scmp.ne.s32.totalorder %s56, %s72
      %p74 = scmp.eq.s32.totalorder %s34, 0
      %p75 = por %p73, %p74
      %s76 = ssub.s32 %s35, %s47
      %p77 = scmp.eq.s32.totalorder %s76, 0
      %s79 = sadd.s32 %s78, 1
      %s80 = scalar_select %p77, %s78, %s79
      %p83 = pneg %p77
      %p84 = scmp.eq.s32.totalorder %s28, 1
      %p85 = por %p83, %p84
      %p86 = scmp.ne.s32.totalorder %s78, %s81
      %p87 = scmp.eq.s32.totalorder %s28, 0
      %p88 = por %p86, %p87
      %p89 = scmp.ne.s32.totalorder %s78, %s81
      %p90 = scmp.eq.s32.totalorder %s33, 1
      %p91 = por %p89, %p90
      %p92 = scmp.ne.s32.totalorder %s81, %s82
      %p93 = scmp.eq.s32.totalorder %s33, 0
      %p94 = por %p92, %p93
      %p95 = scmp.ne.s32.totalorder %s81, %s82
      %p96 = scmp.eq.s32.totalorder %s34, 1
      %p97 = por %p95, %p96
      %p99 = scmp.ne.s32.totalorder %s82, %s98
      %p100 = scmp.eq.s32.totalorder %s34, 0
      %p101 = por %p99, %p100
      %s102 = ssub.s32 %s35, %s47
      %p103 = scmp.eq.s32.totalorder %s102, 0
      %s105 = sadd.s32 %s104, 1
      %s106 = scalar_select %p103, %s104, %s105
      %p109 = pneg %p103
      %p110 = scmp.eq.s32.totalorder %s28, 1
      %p111 = por %p109, %p110
      %p112 = scmp.ne.s32.totalorder %s104, %s107
      %p113 = scmp.eq.s32.totalorder %s28, 0
      %p114 = por %p112, %p113
      %p115 = scmp.ne.s32.totalorder %s104, %s107
      %p116 = scmp.eq.s32.totalorder %s33, 1
      %p117 = por %p115, %p116
      %p118 = scmp.ne.s32.totalorder %s107, %s108
      %p119 = scmp.eq.s32.totalorder %s33, 0
      %p120 = por %p118, %p119
      %p121 = scmp.ne.s32.totalorder %s107, %s108
      %p122 = scmp.eq.s32.totalorder %s34, 1
      %p123 = por %p121, %p122
      %p125 = scmp.ne.s32.totalorder %s108, %s124
      %p126 = scmp.eq.s32.totalorder %s34, 0
      %p127 = por %p125, %p126
      %s129 = sadd.s32 %s128, 1
      %p132 = scmp.eq.s32.totalorder %s28, 1
      %p133 = scmp.ne.s32.totalorder %s128, %s130
      %p134 = scmp.eq.s32.totalorder %s28, 0
      %p135 = por %p133, %p134
      %p136 = scmp.ne.s32.totalorder %s128, %s130
      %p137 = scmp.eq.s32.totalorder %s33, 1
      %p138 = por %p136, %p137
      %p139 = scmp.ne.s32.totalorder %s130, %s131
      %p140 = scmp.eq.s32.totalorder %s33, 0
      %p141 = por %p139, %p140
      %p142 = scmp.ne.s32.totalorder %s130, %s131
      %p143 = scmp.eq.s32.totalorder %s34, 1
      %p144 = por %p142, %p143
      %p146 = scmp.ne.s32.totalorder %s131, %s145
      %p147 = scmp.eq.s32.totalorder %s34, 0
      %p148 = por %p146, %p147
      %s150 = sadd.s32 %s149, 1
      %p153 = scmp.eq.s32.totalorder %s28, 1
      %p154 = scmp.ne.s32.totalorder %s149, %s151
      %p155 = scmp.eq.s32.totalorder %s28, 0
      %p156 = por %p154, %p155
      %p157 = scmp.ne.s32.totalorder %s149, %s151
      %p158 = scmp.eq.s32.totalorder %s33, 1
      %p159 = por %p157, %p158
      %p160 = scmp.ne.s32.totalorder %s151, %s152
      %p161 = scmp.eq.s32.totalorder %s33, 0
      %p162 = por %p160, %p161
      %p163 = scmp.ne.s32.totalorder %s151, %s152
      %p164 = scmp.eq.s32.totalorder %s34, 1
      %p165 = por %p163, %p164
      %p167 = scmp.ne.s32.totalorder %s152, %s166
      %p168 = scmp.eq.s32.totalorder %s34, 0
      %p169 = por %p167, %p168
      %s171 = sadd.s32 %s170, 1
      %p174 = scmp.eq.s32.totalorder %s28, 1
      %p175 = scmp.ne.s32.totalorder %s170, %s172
      %p176 = scmp.eq.s32.totalorder %s28, 0
      %p177 = por %p175, %p176
      %p178 = scmp.ne.s32.totalorder %s170, %s172
      %p179 = scmp.eq.s32.totalorder %s33, 1
      %p180 = por %p178, %p179
      %p181 = scmp.ne.s32.totalorder %s172, %s173
      %p182 = scmp.eq.s32.totalorder %s33, 0
      %p183 = por %p181, %p182
      %p184 = scmp.ne.s32.totalorder %s172, %s173
      %p185 = scmp.eq.s32.totalorder %s34, 1
      %p186 = por %p184, %p185
      %p188 = scmp.ne.s32.totalorder %s173, %s187
      %p189 = scmp.eq.s32.totalorder %s34, 0
      %p190 = por %p188, %p189
      %s192 = sadd.s32 %s191, 1
      %p195 = scmp.eq.s32.totalorder %s28, 1
      %p196 = scmp.ne.s32.totalorder %s191, %s193
      %p197 = scmp.eq.s32.totalorder %s28, 0
      %p198 = por %p196, %p197
      %p199 = scmp.ne.s32.totalorder %s191, %s193
      %p200 = scmp.eq.s32.totalorder %s33, 1
      %p201 = por %p199, %p200
      %p202 = scmp.ne.s32.totalorder %s193, %s194
      %p203 = scmp.eq.s32.totalorder %s33, 0
      %p204 = por %p202, %p203
      %p205 = scmp.ne.s32.totalorder %s193, %s194
      %p206 = scmp.eq.s32.totalorder %s34, 1
      %p207 = por %p205, %p206
      %p209 = scmp.ne.s32.totalorder %s194, %s208
      %p210 = scmp.eq.s32.totalorder %s34, 0
      %p211 = por %p209, %p210
      %s213 = sadd.s32 %s212, 1
      %p216 = scmp.eq.s32.totalorder %s28, 1
      %p217 = scmp.ne.s32.totalorder %s212, %s214
      %p218 = scmp.eq.s32.totalorder %s28, 0
      %p219 = por %p217, %p218
      %p220 = scmp.ne.s32.totalorder %s212, %s214
      %p221 = scmp.eq.s32.totalorder %s33, 1
      %p222 = por %p220, %p221
      %p223 = scmp.ne.s32.totalorder %s214, %s215
      %p224 = scmp.eq.s32.totalorder %s33, 0
      %p225 = por %p223, %p224
      %p226 = scmp.ne.s32.totalorder %s214, %s215
      %p227 = scmp.eq.s32.totalorder %s34, 1
      %p228 = por %p226, %p227
      %p230 = scmp.ne.s32.totalorder %s215, %s229
      %p231 = scmp.eq.s32.totalorder %s34, 0
      %p232 = por %p230, %p231
      %s234 = sadd.s32 %s233, 1
      %p237 = scmp.eq.s32.totalorder %s28, 1
      %p238 = scmp.ne.s32.totalorder %s233, %s235
      %p239 = scmp.eq.s32.totalorder %s28, 0
      %p240 = por %p238, %p239
      %p241 = scmp.ne.s32.totalorder %s233, %s235
      %p242 = scmp.eq.s32.totalorder %s33, 1
      %p243 = por %p241, %p242
      %p244 = scmp.ne.s32.totalorder %s235, %s236
      %p245 = scmp.eq.s32.totalorder %s33, 0
      %p246 = por %p244, %p245
      %p247 = scmp.ne.s32.totalorder %s235, %s236
      %p248 = scmp.eq.s32.totalorder %s34, 1
      %p249 = por %p247, %p248
      %p251 = scmp.ne.s32.totalorder %s236, %s250
      %p252 = scmp.eq.s32.totalorder %s34, 0
      %p253 = por %p251, %p252
      %s255 = sadd.s32 %s254, 1
      %p258 = scmp.eq.s32.totalorder %s28, 1
      %p259 = scmp.ne.s32.totalorder %s254, %s256
      %p260 = scmp.eq.s32.totalorder %s28, 0
      %p261 = por %p259, %p260
      %p262 = scmp.ne.s32.totalorder %s254, %s256
      %p263 = scmp.eq.s32.totalorder %s33, 1
      %p264 = por %p262, %p263
      %p265 = scmp.ne.s32.totalorder %s256, %s257
      %p266 = scmp.eq.s32.totalorder %s33, 0
      %p267 = por %p265, %p266
      %p268 = scmp.ne.s32.totalorder %s256, %s257
      %p269 = scmp.eq.s32.totalorder %s34, 1
      %p270 = por %p268, %p269
      %p272 = scmp.ne.s32.totalorder %s257, %s271
      %p273 = scmp.eq.s32.totalorder %s34, 0
      %p274 = por %p272, %p273
      %s276 = sadd.s32 %s275, 1
      %p279 = scmp.eq.s32.totalorder %s28, 1
      %p280 = scmp.ne.s32.totalorder %s275, %s277
      %p281 = scmp.eq.s32.totalorder %s28, 0
      %p282 = por %p280, %p281
      %p283 = scmp.ne.s32.totalorder %s275, %s277
      %p284 = scmp.eq.s32.totalorder %s33, 1
      %p285 = por %p283, %p284
      %p286 = scmp.ne.s32.totalorder %s277, %s278
      %p287 = scmp.eq.s32.totalorder %s33, 0
      %p288 = por %p286, %p287
      %p289 = scmp.ne.s32.totalorder %s277, %s278
      %p290 = scmp.eq.s32.totalorder %s34, 1
      %p291 = por %p289, %p290
      %p293 = scmp.ne.s32.totalorder %s278, %s292
      %p294 = scmp.eq.s32.totalorder %s34, 0
      %p295 = por %p293, %p294
      %s296 = ssub.s32 %s35, %s47
      %s297 = ssub.s32 %s36, %s43
      %s298 = sor.u32 %s296, %s297
      %p299 = scmp.eq.s32.totalorder %s298, 0
      %s301 = sadd.s32 %s300, 1
      %s302 = scalar_select %p299, %s300, %s301
      %p305 = pneg %p299
      %p306 = scmp.eq.s32.totalorder %s28, 1
      %p307 = por %p305, %p306
      %p308 = scmp.ne.s32.totalorder %s300, %s303
      %p309 = scmp.eq.s32.totalorder %s28, 0
      %p310 = por %p308, %p309
      %p311 = scmp.ne.s32.totalorder %s300, %s303
      %p312 = scmp.eq.s32.totalorder %s33, 1
      %p313 = por %p311, %p312
      %p314 = scmp.ne.s32.totalorder %s303, %s304
      %p315 = scmp.eq.s32.totalorder %s33, 0
      %p316 = por %p314, %p315
      %p317 = scmp.ne.s32.totalorder %s303, %s304
      %p318 = scmp.eq.s32.totalorder %s34, 1
      %p319 = por %p317, %p318
      %p321 = scmp.ne.s32.totalorder %s304, %s320
      %p322 = scmp.eq.s32.totalorder %s34, 0
      %p323 = por %p321, %p322
      %p324 = scmp.le.s32.totalorder 1, %s28
      %p325 = scmp.lt.s32.totalorder %s28, 3
      %p326 = pnand %p324, %p325
      %p327 = pneg %p326
      // Predicated region
      $region9: #{tpu_custom_call.1} parent=5 // pred_check
        _
      $region10: #{tpu_custom_call.1} parent=5 // pred_check_branch
        %329 = sbr.rel (%p326) target = $region12
      $region11: #{tpu_custom_call.1} parent=5 // pred_region
        %s330 = ssub.s32 %s28, 1
        // Predicated region
        $region13: #{tpu_custom_call.1} parent=11 // pred_check
          %p331 = pneg %p141
        $region14: #{tpu_custom_call.1} parent=11 // pred_check_branch
          %333 = sbr.rel (%p331) target = $region16
        $region15: #{tpu_custom_call.1} parent=11 // pred_region
          %s335 = ssub.s32 8192, 8192
          %336 = vsyncadd [#allocation9], %s335
          %s337 = sshll.u32 [#allocation8], 4
          %s338 = int_to_ptr.vmem [resolvable:$true] %s337
          %343 = dma.hbm_to_vmem [thread:$0]  %s3, 8192, %s338, [#allocation9], 256, 256, 16
        $region16: #{tpu_custom_call.1} parent=11 // pred_fallthru
          _
        // Predicated region
        $region17: #{tpu_custom_call.1} parent=11 // pred_check
          %p344 = pneg %p162
        $region18: #{tpu_custom_call.1} parent=11 // pred_check_branch
          %346 = sbr.rel (%p344) target = $region20
        $region19: #{tpu_custom_call.1} parent=11 // pred_region
          _
        $region20: #{tpu_custom_call.1} parent=11 // pred_fallthru
          _
        // Predicated region
        $region21: #{tpu_custom_call.1} parent=11 // pred_check
          %p347 = pneg %p183
        $region22: #{tpu_custom_call.1} parent=11 // pred_check_branch
          %349 = sbr.rel (%p347) target = $region24
        $region23: #{tpu_custom_call.1} parent=11 // pred_region
          %s351 = ssub.s32 8192, 8192
          %352 = vsyncadd [#allocation9], %s351
          %s353 = sshll.u32 [#allocation10], 4
          %s354 = int_to_ptr.vmem [resolvable:$true] %s353
          %359 = dma.hbm_to_vmem [thread:$0]  %s5, 8192, %s354, [#allocation9], 256, 256, 16
        $region24: #{tpu_custom_call.1} parent=11 // pred_fallthru
          _
        // Predicated region
        $region25: #{tpu_custom_call.1} parent=11 // pred_check
          %p360 = pneg %p204
        $region26: #{tpu_custom_call.1} parent=11 // pred_check_branch
          %362 = sbr.rel (%p360) target = $region28
        $region27: #{tpu_custom_call.1} parent=11 // pred_region
          _
        $region28: #{tpu_custom_call.1} parent=11 // pred_fallthru
          _
        // Predicated region
        $region29: #{tpu_custom_call.1} parent=11 // pred_check
          %p363 = pneg %p225
        $region30: #{tpu_custom_call.1} parent=11 // pred_check_branch
          %365 = sbr.rel (%p363) target = $region32
        $region31: #{tpu_custom_call.1} parent=11 // pred_region
          %s367 = ssub.s32 8192, 8192
          %368 = vsyncadd [#allocation12], %s367
          %s369 = sshll.u32 [#allocation11], 4
          %s370 = int_to_ptr.vmem [resolvable:$true] %s369
          %375 = dma.hbm_to_vmem [thread:$0]  %s7, 8192, %s370, [#allocation12], 256, 256, 16
        $region32: #{tpu_custom_call.1} parent=11 // pred_fallthru
          _
        // Predicated region
        $region33: #{tpu_custom_call.1} parent=11 // pred_check
          %p376 = pneg %p246
        $region34: #{tpu_custom_call.1} parent=11 // pred_check_branch
          %378 = sbr.rel (%p376) target = $region36
        $region35: #{tpu_custom_call.1} parent=11 // pred_region
          _
        $region36: #{tpu_custom_call.1} parent=11 // pred_fallthru
          _
        // Predicated region
        $region37: #{tpu_custom_call.1} parent=11 // pred_check
          %p379 = pneg %p267
        $region38: #{tpu_custom_call.1} parent=11 // pred_check_branch
          %381 = sbr.rel (%p379) target = $region40
        $region39: #{tpu_custom_call.1} parent=11 // pred_region
          %s383 = ssub.s32 8192, 8192
          %384 = vsyncadd [#allocation12], %s383
          %s385 = sshll.u32 [#allocation13], 4
          %s386 = int_to_ptr.vmem [resolvable:$true] %s385
          %391 = dma.hbm_to_vmem [thread:$0]  %s9, 8192, %s386, [#allocation12], 256, 256, 16
        $region40: #{tpu_custom_call.1} parent=11 // pred_fallthru
          _
        // Predicated region
        $region41: #{tpu_custom_call.1} parent=11 // pred_check
          %p392 = pneg %p288
        $region42: #{tpu_custom_call.1} parent=11 // pred_check_branch
          %394 = sbr.rel (%p392) target = $region44
        $region43: #{tpu_custom_call.1} parent=11 // pred_region
          _
        $region44: #{tpu_custom_call.1} parent=11 // pred_fallthru
          _
      $region12: #{tpu_custom_call.1} parent=5 // pred_fallthru
        _
      %p395 = scmp.lt.s32.totalorder %s28, 2
      // Predicated region
      $region45: #{tpu_custom_call.1} parent=5 // pred_check
        %p396 = pneg %p395
      $region46: #{tpu_custom_call.1} parent=5 // pred_check_branch
        %398 = sbr.rel (%p396) target = $region48
      $region47: #{tpu_custom_call.1} parent=5 // pred_region
        // Predicated region
        $region49: #{tpu_custom_call.1} parent=47 // pred_check
          %p399 = pneg %p62
        $region50: #{tpu_custom_call.1} parent=47 // pred_check_branch
          %401 = sbr.rel (%p399) target = $region52
        $region51: #{tpu_custom_call.1} parent=47 // pred_region
          %s402 = sand.u32 %s52, 1
          %s403 = scalar_lea.sflag [#allocation3], %s402
          %s404 = sand.u32 %s52, 1
          %s405 = smul.addr %s404, 64
          %s406 = scalar_lea.vmem [#allocation2], %s405
          %s407 = smul.u32 4, %s36
          %s409 = ssub.s32 1024, 1024
          %410 = vsyncadd %s403, %s409
          %s411 = smul.addr %s407, 2
          %s412 = smul.addr %s35, 8
          %s413 = sadd.s32 %s411, %s412
          %s414 = smul.addr %s413, 128
          %s415 = scalar_lea.hbm %s0, %s414
          %s416 = sshll.u32 %s406, 4
          %s417 = int_to_ptr.vmem [resolvable:$true] %s416
          %422 = dma.hbm_to_vmem [thread:$0]  %s415, 1024, %s417, %s403, 256, 256, 16
        $region52: #{tpu_custom_call.1} parent=47 // pred_fallthru
          _
        // Predicated region
        $region53: #{tpu_custom_call.1} parent=47 // pred_check
          %p423 = pneg %p88
        $region54: #{tpu_custom_call.1} parent=47 // pred_check_branch
          %425 = sbr.rel (%p423) target = $region56
        $region55: #{tpu_custom_call.1} parent=47 // pred_region
          %s426 = sand.u32 %s28, 1
          %s427 = scalar_lea.sflag [#allocation6], %s426
          %s428 = sand.u32 %s78, 1
          %s429 = smul.addr %s428, 128
          %s430 = scalar_lea.vmem [#allocation5], %s429
          %s432 = ssub.s32 2048, 2048
          %433 = vsyncadd %s427, %s432
          %s434 = smul.addr %s35, 16
          %s435 = smul.addr %s434, 128
          %s436 = scalar_lea.hbm %s1, %s435
          %s437 = sshll.u32 %s430, 4
          %s438 = int_to_ptr.vmem [resolvable:$true] %s437
          %443 = dma.hbm_to_vmem [thread:$0]  %s436, 2048, %s438, %s427, 256, 256, 16
        $region56: #{tpu_custom_call.1} parent=47 // pred_fallthru
          _
        // Predicated region
        $region57: #{tpu_custom_call.1} parent=47 // pred_check
          %p444 = pneg %p114
        $region58: #{tpu_custom_call.1} parent=47 // pred_check_branch
          %446 = sbr.rel (%p444) target = $region60
        $region59: #{tpu_custom_call.1} parent=47 // pred_region
          %s447 = sand.u32 %s28, 1
          %s448 = scalar_lea.sflag [#allocation6], %s447
          %s449 = sand.u32 %s104, 1
          %s450 = smul.addr %s449, 128
          %s451 = scalar_lea.vmem [#allocation7], %s450
          %s453 = ssub.s32 2048, 2048
          %454 = vsyncadd %s448, %s453
          %s455 = smul.addr %s35, 16
          %s456 = smul.addr %s455, 128
          %s457 = scalar_lea.hbm %s2, %s456
          %s458 = sshll.u32 %s451, 4
          %s459 = int_to_ptr.vmem [resolvable:$true] %s458
          %464 = dma.hbm_to_vmem [thread:$0]  %s457, 2048, %s459, %s448, 256, 256, 16
        $region60: #{tpu_custom_call.1} parent=47 // pred_fallthru
          _
      $region48: #{tpu_custom_call.1} parent=5 // pred_fallthru
        _
      %p465 = scmp.le.s32.totalorder 1, %s28
      %p466 = scmp.lt.s32.totalorder %s28, 3
      %p467 = pnand %p465, %p466
      %p468 = pneg %p467
      // Predicated region
      $region61: #{tpu_custom_call.1} parent=5 // pred_check
        _
      $region62: #{tpu_custom_call.1} parent=5 // pred_check_branch
        %470 = sbr.rel (%p467) target = $region64
      $region63: #{tpu_custom_call.1} parent=5 // pred_region
        %s471 = ssub.s32 %s28, 1
        %s472 = sand.u32 %s55, 1
        %s473 = scalar_lea.sflag [#allocation3], %s472
        %s474 = sand.u32 %s55, 1
        %s475 = smul.addr %s474, 64
        %s476 = scalar_lea.vmem [#allocation2], %s475
        // Predicated region
        $region65: #{tpu_custom_call.1} parent=63 // pred_check
          %p477 = pneg %p68
        $region66: #{tpu_custom_call.1} parent=63 // pred_check_branch
          %479 = sbr.rel (%p477) target = $region68
        $region67: #{tpu_custom_call.1} parent=63 // pred_region
          %480 = dma.done %s473, 1024
        $region68: #{tpu_custom_call.1} parent=63 // pred_fallthru
          _
        %s481 = sand.u32 %s33, 1
        %s482 = scalar_lea.sflag [#allocation6], %s481
        %s483 = sand.u32 %s81, 1
        %s484 = smul.addr %s483, 128
        %s485 = scalar_lea.vmem [#allocation5], %s484
        // Predicated region
        $region69: #{tpu_custom_call.1} parent=63 // pred_check
          %p486 = pneg %p94
        $region70: #{tpu_custom_call.1} parent=63 // pred_check_branch
          %488 = sbr.rel (%p486) target = $region72
        $region71: #{tpu_custom_call.1} parent=63 // pred_region
          %489 = dma.done %s482, 2048
        $region72: #{tpu_custom_call.1} parent=63 // pred_fallthru
          _
        %s490 = sand.u32 %s33, 1
        %s491 = scalar_lea.sflag [#allocation6], %s490
        %s492 = sand.u32 %s107, 1
        %s493 = smul.addr %s492, 128
        %s494 = scalar_lea.vmem [#allocation7], %s493
        // Predicated region
        $region73: #{tpu_custom_call.1} parent=63 // pred_check
          %p495 = pneg %p120
        $region74: #{tpu_custom_call.1} parent=63 // pred_check_branch
          %497 = sbr.rel (%p495) target = $region76
        $region75: #{tpu_custom_call.1} parent=63 // pred_region
          %498 = dma.done %s491, 2048
        $region76: #{tpu_custom_call.1} parent=63 // pred_fallthru
          _
        // Predicated region
        $region77: #{tpu_custom_call.1} parent=63 // pred_check
          %p499 = pneg %p141
        $region78: #{tpu_custom_call.1} parent=63 // pred_check_branch
          %501 = sbr.rel (%p499) target = $region80
        $region79: #{tpu_custom_call.1} parent=63 // pred_region
          %502 = dma.done [#allocation9], 8192
        $region80: #{tpu_custom_call.1} parent=63 // pred_fallthru
          _
        // Predicated region
        $region81: #{tpu_custom_call.1} parent=63 // pred_check
          %p503 = pneg %p183
        $region82: #{tpu_custom_call.1} parent=63 // pred_check_branch
          %505 = sbr.rel (%p503) target = $region84
        $region83: #{tpu_custom_call.1} parent=63 // pred_region
          %506 = dma.done [#allocation9], 8192
        $region84: #{tpu_custom_call.1} parent=63 // pred_fallthru
          _
        // Predicated region
        $region85: #{tpu_custom_call.1} parent=63 // pred_check
          %p507 = pneg %p225
        $region86: #{tpu_custom_call.1} parent=63 // pred_check_branch
          %509 = sbr.rel (%p507) target = $region88
        $region87: #{tpu_custom_call.1} parent=63 // pred_region
          %510 = dma.done [#allocation12], 8192
        $region88: #{tpu_custom_call.1} parent=63 // pred_fallthru
          _
        // Predicated region
        $region89: #{tpu_custom_call.1} parent=63 // pred_check
          %p511 = pneg %p267
        $region90: #{tpu_custom_call.1} parent=63 // pred_check_branch
          %513 = sbr.rel (%p511) target = $region92
        $region91: #{tpu_custom_call.1} parent=63 // pred_region
          %514 = dma.done [#allocation12], 8192
        $region92: #{tpu_custom_call.1} parent=63 // pred_fallthru
          _
        %s515 = sand.u32 %s55, 1
        %s516 = scalar_lea.sflag [#allocation3], %s515
        %s517 = sand.u32 %s55, 1
        %s518 = smul.addr %s517, 64
        %s519 = scalar_lea.vmem [#allocation2], %s518
        %p520 = pneg %p68
        %p521 = pneg %p65
        %s522 = sand.u32 %s33, 1
        %s523 = scalar_lea.sflag [#allocation6], %s522
        %s524 = sand.u32 %s81, 1
        %s525 = smul.addr %s524, 128
        %s526 = scalar_lea.vmem [#allocation5], %s525
        %p527 = pneg %p94
        %p528 = pneg %p91
        %s529 = sand.u32 %s33, 1
        %s530 = scalar_lea.sflag [#allocation6], %s529
        %s531 = sand.u32 %s107, 1
        %s532 = smul.addr %s531, 128
        %s533 = scalar_lea.vmem [#allocation7], %s532
        %p534 = pneg %p120
        %p535 = pneg %p117
        %p536 = pneg %p141
        %p537 = pneg %p138
        %p538 = pneg %p162
        %p539 = pneg %p159
        %p540 = pneg %p183
        %p541 = pneg %p180
        %p542 = pneg %p204
        %p543 = pneg %p201
        %p544 = pneg %p225
        %p545 = pneg %p222
        %p546 = pneg %p246
        %p547 = pneg %p243
        %p548 = pneg %p267
        %p549 = pneg %p264
        %p550 = pneg %p288
        %p551 = pneg %p285
        %p552 = pneg %p316
        %p553 = pneg %p313
        %s554 = sand.u32 %s303, 1
        %s555 = scalar_lea.sflag [#allocation4], %s554
        %s556 = sand.u32 %s303, 1
        %s557 = smul.addr %s556, 64
        %s558 = scalar_lea.vmem [#allocation14], %s557
        %s559 = smul.u32 4, %s38
        %s560 = smul.u32 4, %s38
        %v561 = vld [vmem:[%s476] sm:$0xff]
        %v562 = vld [vmem:[%s476 + $0x8] sm:$0xff]
        %v563 = vld [vmem:[%s476 + $0x10] sm:$0xff]
        %v564 = vld [vmem:[%s476 + $0x18] sm:$0xff]
        %v565 = vld [vmem:[%s476 + $0x20] sm:$0xff]
        %v566 = vld [vmem:[%s476 + $0x28] sm:$0xff]
        %v567 = vld [vmem:[%s476 + $0x30] sm:$0xff]
        %v568 = vld [vmem:[%s476 + $0x38] sm:$0xff]
        %v569 = vld [vmem:[#allocation8] sm:$0xff]
        %v570 = vld [vmem:[#allocation8 + $0x8] sm:$0xff]
        %v571 = vld [vmem:[#allocation8 + $0x10] sm:$0xff]
        %v572 = vld [vmem:[#allocation8 + $0x18] sm:$0xff]
        %v573 = vld [vmem:[#allocation8 + $0x20] sm:$0xff]
        %v574 = vld [vmem:[#allocation8 + $0x28] sm:$0xff]
        %v575 = vld [vmem:[#allocation8 + $0x30] sm:$0xff]
        %v576 = vld [vmem:[#allocation8 + $0x38] sm:$0xff]
        %v577 = vld [vmem:[#allocation8 + $0x40] sm:$0xff]
        %v578 = vld [vmem:[#allocation8 + $0x48] sm:$0xff]
        %v579 = vld [vmem:[#allocation8 + $0x50] sm:$0xff]
        %v580 = vld [vmem:[#allocation8 + $0x58] sm:$0xff]
        %v581 = vld [vmem:[#allocation8 + $0x60] sm:$0xff]
        %v582 = vld [vmem:[#allocation8 + $0x68] sm:$0xff]
        %v583 = vld [vmem:[#allocation8 + $0x70] sm:$0xff]
        %v584 = vld [vmem:[#allocation8 + $0x78] sm:$0xff]
        %v585 = vld [vmem:[#allocation8 + $0x80] sm:$0xff]
        %v586 = vld [vmem:[#allocation8 + $0x88] sm:$0xff]
        %v587 = vld [vmem:[#allocation8 + $0x90] sm:$0xff]
        %v588 = vld [vmem:[#allocation8 + $0x98] sm:$0xff]
        %v589 = vld [vmem:[#allocation8 + $0xa0] sm:$0xff]
        %v590 = vld [vmem:[#allocation8 + $0xa8] sm:$0xff]
        %v591 = vld [vmem:[#allocation8 + $0xb0] sm:$0xff]
        %v592 = vld [vmem:[#allocation8 + $0xb8] sm:$0xff]
        %v593 = vld [vmem:[#allocation8 + $0xc0] sm:$0xff]
        %v594 = vld [vmem:[#allocation8 + $0xc8] sm:$0xff]
        %v595 = vld [vmem:[#allocation8 + $0xd0] sm:$0xff]
        %v596 = vld [vmem:[#allocation8 + $0xd8] sm:$0xff]
        %v597 = vld [vmem:[#allocation8 + $0xe0] sm:$0xff]
        %v598 = vld [vmem:[#allocation8 + $0xe8] sm:$0xff]
        %v599 = vld [vmem:[#allocation8 + $0xf0] sm:$0xff]
        %v600 = vld [vmem:[#allocation8 + $0xf8] sm:$0xff]
        %v601 = vld [vmem:[#allocation8 + $0x100] sm:$0xff]
        %v602 = vld [vmem:[#allocation8 + $0x108] sm:$0xff]
        %v603 = vld [vmem:[#allocation8 + $0x110] sm:$0xff]
        %v604 = vld [vmem:[#allocation8 + $0x118] sm:$0xff]
        %v605 = vld [vmem:[#allocation8 + $0x120] sm:$0xff]
        %v606 = vld [vmem:[#allocation8 + $0x128] sm:$0xff]
        %v607 = vld [vmem:[#allocation8 + $0x130] sm:$0xff]
        %v608 = vld [vmem:[#allocation8 + $0x138] sm:$0xff]
        %v609 = vld [vmem:[#allocation8 + $0x140] sm:$0xff]
        %v610 = vld [vmem:[#allocation8 + $0x148] sm:$0xff]
        %v611 = vld [vmem:[#allocation8 + $0x150] sm:$0xff]
        %v612 = vld [vmem:[#allocation8 + $0x158] sm:$0xff]
        %v613 = vld [vmem:[#allocation8 + $0x160] sm:$0xff]
        %v614 = vld [vmem:[#allocation8 + $0x168] sm:$0xff]
        %v615 = vld [vmem:[#allocation8 + $0x170] sm:$0xff]
        %v616 = vld [vmem:[#allocation8 + $0x178] sm:$0xff]
        %v617 = vld [vmem:[#allocation8 + $0x180] sm:$0xff]
        %v618 = vld [vmem:[#allocation8 + $0x188] sm:$0xff]
        %v619 = vld [vmem:[#allocation8 + $0x190] sm:$0xff]
        %v620 = vld [vmem:[#allocation8 + $0x198] sm:$0xff]
        %v621 = vld [vmem:[#allocation8 + $0x1a0] sm:$0xff]
        %v622 = vld [vmem:[#allocation8 + $0x1a8] sm:$0xff]
        %v623 = vld [vmem:[#allocation8 + $0x1b0] sm:$0xff]
        %v624 = vld [vmem:[#allocation8 + $0x1b8] sm:$0xff]
        %v625 = vld [vmem:[#allocation8 + $0x1c0] sm:$0xff]
        %v626 = vld [vmem:[#allocation8 + $0x1c8] sm:$0xff]
        %v627 = vld [vmem:[#allocation8 + $0x1d0] sm:$0xff]
        %v628 = vld [vmem:[#allocation8 + $0x1d8] sm:$0xff]
        %v629 = vld [vmem:[#allocation8 + $0x1e0] sm:$0xff]
        %v630 = vld [vmem:[#allocation8 + $0x1e8] sm:$0xff]
        %v631 = vld [vmem:[#allocation8 + $0x1f0] sm:$0xff]
        %v632 = vld [vmem:[#allocation8 + $0x1f8] sm:$0xff]
        %v633 = vld [vmem:[%s4] sm:$0x3]
        %v635 = vlaneseq
        %v636 = vshrl.u32 %v635, 7
        %v637 = vsub.s32 0, %v636
        %v638 = vrot.slane %v633, %v637
        %v639 = vlaneseq
        %v640 = vshrl.u32 %v639, 7
        %v641 = vsub.s32 1, %v640
        %v642 = vrot.slane %v633, %v641
        %645 = vmatprep.subr.mxu0 %v570
        %646 = vmatpush1.msra.mxu0 %v569
        %647 = vmatprep.subr.mxu0 %v572
        %648 = vmatpush1.msra.mxu0 %v571
        %649 = vmatprep.subr.mxu0 %v574
        %650 = vmatpush1.msra.mxu0 %v573
        %651 = vmatprep.subr.mxu0 %v576
        %652 = vmatpush1.msra.mxu0 %v575
        %653 = vmatprep.subr.mxu0 %v578
        %654 = vmatpush1.msra.mxu0 %v577
        %655 = vmatprep.subr.mxu0 %v580
        %656 = vmatpush1.msra.mxu0 %v579
        %657 = vmatprep.subr.mxu0 %v582
        %658 = vmatpush1.msra.mxu0 %v581
        %659 = vmatprep.subr.mxu0 %v584
        %660 = vmatpush1.msra.mxu0 %v583
        %661 = vmatprep.subr.mxu0 %v586
        %662 = vmatpush1.msra.mxu0 %v585
        %663 = vmatprep.subr.mxu0 %v588
        %664 = vmatpush1.msra.mxu0 %v587
        %665 = vmatprep.subr.mxu0 %v590
        %666 = vmatpush1.msra.mxu0 %v589
        %667 = vmatprep.subr.mxu0 %v592
        %668 = vmatpush1.msra.mxu0 %v591
        %669 = vmatprep.subr.mxu0 %v594
        %670 = vmatpush1.msra.mxu0 %v593
        %671 = vmatprep.subr.mxu0 %v596
        %672 = vmatpush1.msra.mxu0 %v595
        %673 = vmatprep.subr.mxu0 %v598
        %674 = vmatpush1.msra.mxu0 %v597
        %675 = vmatprep.subr.mxu0 %v600
        %676 = vmatpush1.msra.mxu0 %v599
        %677 = vmatprep.subr.mxu0 %v602
        %678 = vmatpush1.msra.mxu0 %v601
        %679 = vmatprep.subr.mxu0 %v604
        %680 = vmatpush1.msra.mxu0 %v603
        %681 = vmatprep.subr.mxu0 %v606
        %682 = vmatpush1.msra.mxu0 %v605
        %683 = vmatprep.subr.mxu0 %v608
        %684 = vmatpush1.msra.mxu0 %v607
        %685 = vmatprep.subr.mxu0 %v610
        %686 = vmatpush1.msra.mxu0 %v609
        %687 = vmatprep.subr.mxu0 %v612
        %688 = vmatpush1.msra.mxu0 %v611
        %689 = vmatprep.subr.mxu0 %v614
        %690 = vmatpush1.msra.mxu0 %v613
        %691 = vmatprep.subr.mxu0 %v616
        %692 = vmatpush1.msra.mxu0 %v615
        %693 = vmatprep.subr.mxu0 %v618
        %694 = vmatpush1.msra.mxu0 %v617
        %695 = vmatprep.subr.mxu0 %v620
        %696 = vmatpush1.msra.mxu0 %v619
        %697 = vmatprep.subr.mxu0 %v622
        %698 = vmatpush1.msra.mxu0 %v621
        %699 = vmatprep.subr.mxu0 %v624
        %700 = vmatpush1.msra.mxu0 %v623
        %701 = vmatprep.subr.mxu0 %v626
        %702 = vmatpush1.msra.mxu0 %v625
        %703 = vmatprep.subr.mxu0 %v628
        %704 = vmatpush1.msra.mxu0 %v627
        %705 = vmatprep.subr.mxu0 %v630
        %706 = vmatpush1.msra.mxu0 %v629
        %707 = vmatprep.subr.mxu0 %v632
        %708 = vmatpush1.msra.mxu0 %v631
        %709 = vmatprep.mubr.f32.mxu0 %v562
        %710 = vmatmul.mubr.f32.gmra.mrb[0].mxu0 %v561
        %v711 = vpop.f32.mrb[0].mxu0
        %v712 = vadd.f32 %v638, %v711
        %v713 = vpop.f32.mrb[0].mxu0
        %v714 = vadd.f32 %v642, %v713
        %715 = vmatprep.mubr.f32.mxu0 %v564
        %716 = vmatmul.mubr.f32.gmra.mrb[0].mxu0 %v563
        %v717 = vpop.f32.mrb[0].mxu0
        %v718 = vadd.f32 %v638, %v717
        %v719 = vpop.f32.mrb[0].mxu0
        %v720 = vadd.f32 %v642, %v719
        %721 = vmatprep.mubr.f32.mxu0 %v566
        %722 = vmatmul.mubr.f32.gmra.mrb[0].mxu0 %v565
        %v723 = vpop.f32.mrb[0].mxu0
        %v724 = vadd.f32 %v638, %v723
        %v725 = vpop.f32.mrb[0].mxu0
        %v726 = vadd.f32 %v642, %v725
        %727 = vmatprep.mubr.f32.mxu0 %v568
        %728 = vmatmul.mubr.f32.gmra.mrb[0].mxu0 %v567
        %v729 = vpop.f32.mrb[0].mxu0
        %v730 = vadd.f32 %v638, %v729
        %v731 = vpop.f32.mrb[0].mxu0
        %v732 = vadd.f32 %v642, %v731
        %733 = vdwg.mxu0
        %v734 = vld [vmem:[%s485] sm:$0xff]
        %v735 = vld [vmem:[%s485 + $0x8] sm:$0xff]
        %v736 = vld [vmem:[%s485 + $0x10] sm:$0xff]
        %v737 = vld [vmem:[%s485 + $0x18] sm:$0xff]
        %v738 = vld [vmem:[%s485 + $0x20] sm:$0xff]
        %v739 = vld [vmem:[%s485 + $0x28] sm:$0xff]
        %v740 = vld [vmem:[%s485 + $0x30] sm:$0xff]
        %v741 = vld [vmem:[%s485 + $0x38] sm:$0xff]
        %v742 = vld [vmem:[%s485 + $0x40] sm:$0xff]
        %v743 = vld [vmem:[%s485 + $0x48] sm:$0xff]
        %v744 = vld [vmem:[%s485 + $0x50] sm:$0xff]
        %v745 = vld [vmem:[%s485 + $0x58] sm:$0xff]
        %v746 = vld [vmem:[%s485 + $0x60] sm:$0xff]
        %v747 = vld [vmem:[%s485 + $0x68] sm:$0xff]
        %v748 = vld [vmem:[%s485 + $0x70] sm:$0xff]
        %v749 = vld [vmem:[%s485 + $0x78] sm:$0xff]
        %v750 = vld [vmem:[#allocation10] sm:$0xff]
        %v751 = vld [vmem:[#allocation10 + $0x8] sm:$0xff]
        %v752 = vld [vmem:[#allocation10 + $0x10] sm:$0xff]
        %v753 = vld [vmem:[#allocation10 + $0x18] sm:$0xff]
        %v754 = vld [vmem:[#allocation10 + $0x20] sm:$0xff]
        %v755 = vld [vmem:[#allocation10 + $0x28] sm:$0xff]
        %v756 = vld [vmem:[#allocation10 + $0x30] sm:$0xff]
        %v757 = vld [vmem:[#allocation10 + $0x38] sm:$0xff]
        %v758 = vld [vmem:[#allocation10 + $0x40] sm:$0xff]
        %v759 = vld [vmem:[#allocation10 + $0x48] sm:$0xff]
        %v760 = vld [vmem:[#allocation10 + $0x50] sm:$0xff]
        %v761 = vld [vmem:[#allocation10 + $0x58] sm:$0xff]
        %v762 = vld [vmem:[#allocation10 + $0x60] sm:$0xff]
        %v763 = vld [vmem:[#allocation10 + $0x68] sm:$0xff]
        %v764 = vld [vmem:[#allocation10 + $0x70] sm:$0xff]
        %v765 = vld [vmem:[#allocation10 + $0x78] sm:$0xff]
        %v766 = vld [vmem:[#allocation10 + $0x80] sm:$0xff]
        %v767 = vld [vmem:[#allocation10 + $0x88] sm:$0xff]
        %v768 = vld [vmem:[#allocation10 + $0x90] sm:$0xff]
        %v769 = vld [vmem:[#allocation10 + $0x98] sm:$0xff]
        %v770 = vld [vmem:[#allocation10 + $0xa0] sm:$0xff]
        %v771 = vld [vmem:[#allocation10 + $0xa8] sm:$0xff]
        %v772 = vld [vmem:[#allocation10 + $0xb0] sm:$0xff]
        %v773 = vld [vmem:[#allocation10 + $0xb8] sm:$0xff]
        %v774 = vld [vmem:[#allocation10 + $0xc0] sm:$0xff]
        %v775 = vld [vmem:[#allocation10 + $0xc8] sm:$0xff]
        %v776 = vld [vmem:[#allocation10 + $0xd0] sm:$0xff]
        %v777 = vld [vmem:[#allocation10 + $0xd8] sm:$0xff]
        %v778 = vld [vmem:[#allocation10 + $0xe0] sm:$0xff]
        %v779 = vld [vmem:[#allocation10 + $0xe8] sm:$0xff]
        %v780 = vld [vmem:[#allocation10 + $0xf0] sm:$0xff]
        %v781 = vld [vmem:[#allocation10 + $0xf8] sm:$0xff]
        %v782 = vld [vmem:[#allocation10 + $0x100] sm:$0xff]
        %v783 = vld [vmem:[#allocation10 + $0x108] sm:$0xff]
        %v784 = vld [vmem:[#allocation10 + $0x110] sm:$0xff]
        %v785 = vld [vmem:[#allocation10 + $0x118] sm:$0xff]
        %v786 = vld [vmem:[#allocation10 + $0x120] sm:$0xff]
        %v787 = vld [vmem:[#allocation10 + $0x128] sm:$0xff]
        %v788 = vld [vmem:[#allocation10 + $0x130] sm:$0xff]
        %v789 = vld [vmem:[#allocation10 + $0x138] sm:$0xff]
        %v790 = vld [vmem:[#allocation10 + $0x140] sm:$0xff]
        %v791 = vld [vmem:[#allocation10 + $0x148] sm:$0xff]
        %v792 = vld [vmem:[#allocation10 + $0x150] sm:$0xff]
        %v793 = vld [vmem:[#allocation10 + $0x158] sm:$0xff]
        %v794 = vld [vmem:[#allocation10 + $0x160] sm:$0xff]
        %v795 = vld [vmem:[#allocation10 + $0x168] sm:$0xff]
        %v796 = vld [vmem:[#allocation10 + $0x170] sm:$0xff]
        %v797 = vld [vmem:[#allocation10 + $0x178] sm:$0xff]
        %v798 = vld [vmem:[#allocation10 + $0x180] sm:$0xff]
        %v799 = vld [vmem:[#allocation10 + $0x188] sm:$0xff]
        %v800 = vld [vmem:[#allocation10 + $0x190] sm:$0xff]
        %v801 = vld [vmem:[#allocation10 + $0x198] sm:$0xff]
        %v802 = vld [vmem:[#allocation10 + $0x1a0] sm:$0xff]
        %v803 = vld [vmem:[#allocation10 + $0x1a8] sm:$0xff]
        %v804 = vld [vmem:[#allocation10 + $0x1b0] sm:$0xff]
        %v805 = vld [vmem:[#allocation10 + $0x1b8] sm:$0xff]
        %v806 = vld [vmem:[#allocation10 + $0x1c0] sm:$0xff]
        %v807 = vld [vmem:[#allocation10 + $0x1c8] sm:$0xff]
        %v808 = vld [vmem:[#allocation10 + $0x1d0] sm:$0xff]
        %v809 = vld [vmem:[#allocation10 + $0x1d8] sm:$0xff]
        %v810 = vld [vmem:[#allocation10 + $0x1e0] sm:$0xff]
        %v811 = vld [vmem:[#allocation10 + $0x1e8] sm:$0xff]
        %v812 = vld [vmem:[#allocation10 + $0x1f0] sm:$0xff]
        %v813 = vld [vmem:[#allocation10 + $0x1f8] sm:$0xff]
        %v814 = vld [vmem:[%s6] sm:$0x3]
        %v816 = vlaneseq
        %v817 = vshrl.u32 %v816, 7
        %v818 = vsub.s32 0, %v817
        %v819 = vrot.slane %v814, %v818
        %v820 = vlaneseq
        %v821 = vshrl.u32 %v820, 7
        %v822 = vsub.s32 1, %v821
        %v823 = vrot.slane %v814, %v822
        %826 = vmatprep.subr.mxu0 %v751
        %827 = vmatpush1.msra.mxu0 %v750
        %828 = vmatprep.subr.mxu0 %v753
        %829 = vmatpush1.msra.mxu0 %v752
        %830 = vmatprep.subr.mxu0 %v755
        %831 = vmatpush1.msra.mxu0 %v754
        %832 = vmatprep.subr.mxu0 %v757
        %833 = vmatpush1.msra.mxu0 %v756
        %834 = vmatprep.subr.mxu0 %v759
        %835 = vmatpush1.msra.mxu0 %v758
        %836 = vmatprep.subr.mxu0 %v761
        %837 = vmatpush1.msra.mxu0 %v760
        %838 = vmatprep.subr.mxu0 %v763
        %839 = vmatpush1.msra.mxu0 %v762
        %840 = vmatprep.subr.mxu0 %v765
        %841 = vmatpush1.msra.mxu0 %v764
        %842 = vmatprep.subr.mxu0 %v767
        %843 = vmatpush1.msra.mxu0 %v766
        %844 = vmatprep.subr.mxu0 %v769
        %845 = vmatpush1.msra.mxu0 %v768
        %846 = vmatprep.subr.mxu0 %v771
        %847 = vmatpush1.msra.mxu0 %v770
        %848 = vmatprep.subr.mxu0 %v773
        %849 = vmatpush1.msra.mxu0 %v772
        %850 = vmatprep.subr.mxu0 %v775
        %851 = vmatpush1.msra.mxu0 %v774
        %852 = vmatprep.subr.mxu0 %v777
        %853 = vmatpush1.msra.mxu0 %v776
        %854 = vmatprep.subr.mxu0 %v779
        %855 = vmatpush1.msra.mxu0 %v778
        %856 = vmatprep.subr.mxu0 %v781
        %857 = vmatpush1.msra.mxu0 %v780
        %858 = vmatprep.subr.mxu0 %v783
        %859 = vmatpush1.msra.mxu0 %v782
        %860 = vmatprep.subr.mxu0 %v785
        %861 = vmatpush1.msra.mxu0 %v784
        %862 = vmatprep.subr.mxu0 %v787
        %863 = vmatpush1.msra.mxu0 %v786
        %864 = vmatprep.subr.mxu0 %v789
        %865 = vmatpush1.msra.mxu0 %v788
        %866 = vmatprep.subr.mxu0 %v791
        %867 = vmatpush1.msra.mxu0 %v790
        %868 = vmatprep.subr.mxu0 %v793
        %869 = vmatpush1.msra.mxu0 %v792
        %870 = vmatprep.subr.mxu0 %v795
        %871 = vmatpush1.msra.mxu0 %v794
        %872 = vmatprep.subr.mxu0 %v797
        %873 = vmatpush1.msra.mxu0 %v796
        %874 = vmatprep.subr.mxu0 %v799
        %875 = vmatpush1.msra.mxu0 %v798
        %876 = vmatprep.subr.mxu0 %v801
        %877 = vmatpush1.msra.mxu0 %v800
        %878 = vmatprep.subr.mxu0 %v803
        %879 = vmatpush1.msra.mxu0 %v802
        %880 = vmatprep.subr.mxu0 %v805
        %881 = vmatpush1.msra.mxu0 %v804
        %882 = vmatprep.subr.mxu0 %v807
        %883 = vmatpush1.msra.mxu0 %v806
        %884 = vmatprep.subr.mxu0 %v809
        %885 = vmatpush1.msra.mxu0 %v808
        %886 = vmatprep.subr.mxu0 %v811
        %887 = vmatpush1.msra.mxu0 %v810
        %888 = vmatprep.subr.mxu0 %v813
        %889 = vmatpush1.msra.mxu0 %v812
        %890 = vmatprep.mubr.f32.mxu0 %v735
        %891 = vmatmul.mubr.f32.gmra.mrb[0].mxu0 %v734
        %v892 = vpop.f32.mrb[0].mxu0
        %v893 = vadd.f32 %v819, %v892
        %v894 = vpop.f32.mrb[0].mxu0
        %v895 = vadd.f32 %v823, %v894
        %896 = vmatprep.mubr.f32.mxu0 %v737
        %897 = vmatmul.mubr.f32.gmra.mrb[0].mxu0 %v736
        %v898 = vpop.f32.mrb[0].mxu0
        %v899 = vadd.f32 %v819, %v898
        %v900 = vpop.f32.mrb[0].mxu0
        %v901 = vadd.f32 %v823, %v900
        %902 = vmatprep.mubr.f32.mxu0 %v739
        %903 = vmatmul.mubr.f32.gmra.mrb[0].mxu0 %v738
        %v904 = vpop.f32.mrb[0].mxu0
        %v905 = vadd.f32 %v819, %v904
        %v906 = vpop.f32.mrb[0].mxu0
        %v907 = vadd.f32 %v823, %v906
        %908 = vmatprep.mubr.f32.mxu0 %v741
        %909 = vmatmul.mubr.f32.gmra.mrb[0].mxu0 %v740
        %v910 = vpop.f32.mrb[0].mxu0
        %v911 = vadd.f32 %v819, %v910
        %v912 = vpop.f32.mrb[0].mxu0
        %v913 = vadd.f32 %v823, %v912
        %914 = vmatprep.mubr.f32.mxu0 %v743
        %915 = vmatmul.mubr.f32.gmra.mrb[0].mxu0 %v742
        %v916 = vpop.f32.mrb[0].mxu0
        %v917 = vadd.f32 %v819, %v916
        %v918 = vpop.f32.mrb[0].mxu0
        %v919 = vadd.f32 %v823, %v918
        %920 = vmatprep.mubr.f32.mxu0 %v745
        %921 = vmatmul.mubr.f32.gmra.mrb[0].mxu0 %v744
        %v922 = vpop.f32.mrb[0].mxu0
        %v923 = vadd.f32 %v819, %v922
        %v924 = vpop.f32.mrb[0].mxu0
        %v925 = vadd.f32 %v823, %v924
        %926 = vmatprep.mubr.f32.mxu0 %v747
        %927 = vmatmul.mubr.f32.gmra.mrb[0].mxu0 %v746
        %v928 = vpop.f32.mrb[0].mxu0
        %v929 = vadd.f32 %v819, %v928
        %v930 = vpop.f32.mrb[0].mxu0
        %v931 = vadd.f32 %v823, %v930
        %932 = vmatprep.mubr.f32.mxu0 %v749
        %933 = vmatmul.mubr.f32.gmra.mrb[0].mxu0 %v748
        %v934 = vpop.f32.mrb[0].mxu0
        %v935 = vadd.f32 %v819, %v934
        %v936 = vpop.f32.mrb[0].mxu0
        %v937 = vadd.f32 %v823, %v936
        %938 = vdwg.mxu0
        %v939 = vld [vmem:[%s494] sm:$0xff]
        %v940 = vld [vmem:[%s494 + $0x8] sm:$0xff]
        %v941 = vld [vmem:[%s494 + $0x10] sm:$0xff]
        %v942 = vld [vmem:[%s494 + $0x18] sm:$0xff]
        %v943 = vld [vmem:[%s494 + $0x20] sm:$0xff]
        %v944 = vld [vmem:[%s494 + $0x28] sm:$0xff]
        %v945 = vld [vmem:[%s494 + $0x30] sm:$0xff]
        %v946 = vld [vmem:[%s494 + $0x38] sm:$0xff]
        %v947 = vld [vmem:[%s494 + $0x40] sm:$0xff]
        %v948 = vld [vmem:[%s494 + $0x48] sm:$0xff]
        %v949 = vld [vmem:[%s494 + $0x50] sm:$0xff]
        %v950 = vld [vmem:[%s494 + $0x58] sm:$0xff]
        %v951 = vld [vmem:[%s494 + $0x60] sm:$0xff]
        %v952 = vld [vmem:[%s494 + $0x68] sm:$0xff]
        %v953 = vld [vmem:[%s494 + $0x70] sm:$0xff]
        %v954 = vld [vmem:[%s494 + $0x78] sm:$0xff]
        %v955 = vld [vmem:[#allocation11] sm:$0xff]
        %v956 = vld [vmem:[#allocation11 + $0x8] sm:$0xff]
        %v957 = vld [vmem:[#allocation11 + $0x10] sm:$0xff]
        %v958 = vld [vmem:[#allocation11 + $0x18] sm:$0xff]
        %v959 = vld [vmem:[#allocation11 + $0x20] sm:$0xff]
        %v960 = vld [vmem:[#allocation11 + $0x28] sm:$0xff]
        %v961 = vld [vmem:[#allocation11 + $0x30] sm:$0xff]
        %v962 = vld [vmem:[#allocation11 + $0x38] sm:$0xff]
        %v963 = vld [vmem:[#allocation11 + $0x40] sm:$0xff]
        %v964 = vld [vmem:[#allocation11 + $0x48] sm:$0xff]
        %v965 = vld [vmem:[#allocation11 + $0x50] sm:$0xff]
        %v966 = vld [vmem:[#allocation11 + $0x58] sm:$0xff]
        %v967 = vld [vmem:[#allocation11 + $0x60] sm:$0xff]
        %v968 = vld [vmem:[#allocation11 + $0x68] sm:$0xff]
        %v969 = vld [vmem:[#allocation11 + $0x70] sm:$0xff]
        %v970 = vld [vmem:[#allocation11 + $0x78] sm:$0xff]
        %v971 = vld [vmem:[#allocation11 + $0x80] sm:$0xff]
        %v972 = vld [vmem:[#allocation11 + $0x88] sm:$0xff]
        %v973 = vld [vmem:[#allocation11 + $0x90] sm:$0xff]
        %v974 = vld [vmem:[#allocation11 + $0x98] sm:$0xff]
        %v975 = vld [vmem:[#allocation11 + $0xa0] sm:$0xff]
        %v976 = vld [vmem:[#allocation11 + $0xa8] sm:$0xff]
        %v977 = vld [vmem:[#allocation11 + $0xb0] sm:$0xff]
        %v978 = vld [vmem:[#allocation11 + $0xb8] sm:$0xff]
        %v979 = vld [vmem:[#allocation11 + $0xc0] sm:$0xff]
        %v980 = vld [vmem:[#allocation11 + $0xc8] sm:$0xff]
        %v981 = vld [vmem:[#allocation11 + $0xd0] sm:$0xff]
        %v982 = vld [vmem:[#allocation11 + $0xd8] sm:$0xff]
        %v983 = vld [vmem:[#allocation11 + $0xe0] sm:$0xff]
        %v984 = vld [vmem:[#allocation11 + $0xe8] sm:$0xff]
        %v985 = vld [vmem:[#allocation11 + $0xf0] sm:$0xff]
        %v986 = vld [vmem:[#allocation11 + $0xf8] sm:$0xff]
        %v987 = vld [vmem:[#allocation11 + $0x100] sm:$0xff]
        %v988 = vld [vmem:[#allocation11 + $0x108] sm:$0xff]
        %v989 = vld [vmem:[#allocation11 + $0x110] sm:$0xff]
        %v990 = vld [vmem:[#allocation11 + $0x118] sm:$0xff]
        %v991 = vld [vmem:[#allocation11 + $0x120] sm:$0xff]
        %v992 = vld [vmem:[#allocation11 + $0x128] sm:$0xff]
        %v993 = vld [vmem:[#allocation11 + $0x130] sm:$0xff]
        %v994 = vld [vmem:[#allocation11 + $0x138] sm:$0xff]
        %v995 = vld [vmem:[#allocation11 + $0x140] sm:$0xff]
        %v996 = vld [vmem:[#allocation11 + $0x148] sm:$0xff]
        %v997 = vld [vmem:[#allocation11 + $0x150] sm:$0xff]
        %v998 = vld [vmem:[#allocation11 + $0x158] sm:$0xff]
        %v999 = vld [vmem:[#allocation11 + $0x160] sm:$0xff]
        %v1000 = vld [vmem:[#allocation11 + $0x168] sm:$0xff]
        %v1001 = vld [vmem:[#allocation11 + $0x170] sm:$0xff]
        %v1002 = vld [vmem:[#allocation11 + $0x178] sm:$0xff]
        %v1003 = vld [vmem:[#allocation11 + $0x180] sm:$0xff]
        %v1004 = vld [vmem:[#allocation11 + $0x188] sm:$0xff]
        %v1005 = vld [vmem:[#allocation11 + $0x190] sm:$0xff]
        %v1006 = vld [vmem:[#allocation11 + $0x198] sm:$0xff]
        %v1007 = vld [vmem:[#allocation11 + $0x1a0] sm:$0xff]
        %v1008 = vld [vmem:[#allocation11 + $0x1a8] sm:$0xff]
        %v1009 = vld [vmem:[#allocation11 + $0x1b0] sm:$0xff]
        %v1010 = vld [vmem:[#allocation11 + $0x1b8] sm:$0xff]
        %v1011 = vld [vmem:[#allocation11 + $0x1c0] sm:$0xff]
        %v1012 = vld [vmem:[#allocation11 + $0x1c8] sm:$0xff]
        %v1013 = vld [vmem:[#allocation11 + $0x1d0] sm:$0xff]
        %v1014 = vld [vmem:[#allocation11 + $0x1d8] sm:$0xff]
        %v1015 = vld [vmem:[#allocation11 + $0x1e0] sm:$0xff]
        %v1016 = vld [vmem:[#allocation11 + $0x1e8] sm:$0xff]
        %v1017 = vld [vmem:[#allocation11 + $0x1f0] sm:$0xff]
        %v1018 = vld [vmem:[#allocation11 + $0x1f8] sm:$0xff]
        %v1019 = vld [vmem:[%s8] sm:$0x3]
        %v1021 = vlaneseq
        %v1022 = vshrl.u32 %v1021, 7
        %v1023 = vsub.s32 0, %v1022
        %v1024 = vrot.slane %v1019, %v1023
        %v1025 = vlaneseq
        %v1026 = vshrl.u32 %v1025, 7
        %v1027 = vsub.s32 1, %v1026
        %v1028 = vrot.slane %v1019, %v1027
        %1031 = vmatprep.subr.mxu0 %v956
        %1032 = vmatpush1.msra.mxu0 %v955
        %1033 = vmatprep.subr.mxu0 %v958
        %1034 = vmatpush1.msra.mxu0 %v957
        %1035 = vmatprep.subr.mxu0 %v960
        %1036 = vmatpush1.msra.mxu0 %v959
        %1037 = vmatprep.subr.mxu0 %v962
        %1038 = vmatpush1.msra.mxu0 %v961
        %1039 = vmatprep.subr.mxu0 %v964
        %1040 = vmatpush1.msra.mxu0 %v963
        %1041 = vmatprep.subr.mxu0 %v966
        %1042 = vmatpush1.msra.mxu0 %v965
        %1043 = vmatprep.subr.mxu0 %v968
        %1044 = vmatpush1.msra.mxu0 %v967
        %1045 = vmatprep.subr.mxu0 %v970
        %1046 = vmatpush1.msra.mxu0 %v969
        %1047 = vmatprep.subr.mxu0 %v972
        %1048 = vmatpush1.msra.mxu0 %v971
        %1049 = vmatprep.subr.mxu0 %v974
        %1050 = vmatpush1.msra.mxu0 %v973
        %1051 = vmatprep.subr.mxu0 %v976
        %1052 = vmatpush1.msra.mxu0 %v975
        %1053 = vmatprep.subr.mxu0 %v978
        %1054 = vmatpush1.msra.mxu0 %v977
        %1055 = vmatprep.subr.mxu0 %v980
        %1056 = vmatpush1.msra.mxu0 %v979
        %1057 = vmatprep.subr.mxu0 %v982
        %1058 = vmatpush1.msra.mxu0 %v981
        %1059 = vmatprep.subr.mxu0 %v984
        %1060 = vmatpush1.msra.mxu0 %v983
        %1061 = vmatprep.subr.mxu0 %v986
        %1062 = vmatpush1.msra.mxu0 %v985
        %1063 = vmatprep.subr.mxu0 %v988
        %1064 = vmatpush1.msra.mxu0 %v987
        %1065 = vmatprep.subr.mxu0 %v990
        %1066 = vmatpush1.msra.mxu0 %v989
        %1067 = vmatprep.subr.mxu0 %v992
        %1068 = vmatpush1.msra.mxu0 %v991
        %1069 = vmatprep.subr.mxu0 %v994
        %1070 = vmatpush1.msra.mxu0 %v993
        %1071 = vmatprep.subr.mxu0 %v996
        %1072 = vmatpush1.msra.mxu0 %v995
        %1073 = vmatprep.subr.mxu0 %v998
        %1074 = vmatpush1.msra.mxu0 %v997
        %1075 = vmatprep.subr.mxu0 %v1000
        %1076 = vmatpush1.msra.mxu0 %v999
        %1077 = vmatprep.subr.mxu0 %v1002
        %1078 = vmatpush1.msra.mxu0 %v1001
        %1079 = vmatprep.subr.mxu0 %v1004
        %1080 = vmatpush1.msra.mxu0 %v1003
        %1081 = vmatprep.subr.mxu0 %v1006
        %1082 = vmatpush1.msra.mxu0 %v1005
        %1083 = vmatprep.subr.mxu0 %v1008
        %1084 = vmatpush1.msra.mxu0 %v1007
        %1085 = vmatprep.subr.mxu0 %v1010
        %1086 = vmatpush1.msra.mxu0 %v1009
        %1087 = vmatprep.subr.mxu0 %v1012
        %1088 = vmatpush1.msra.mxu0 %v1011
        %1089 = vmatprep.subr.mxu0 %v1014
        %1090 = vmatpush1.msra.mxu0 %v1013
        %1091 = vmatprep.subr.mxu0 %v1016
        %1092 = vmatpush1.msra.mxu0 %v1015
        %1093 = vmatprep.subr.mxu0 %v1018
        %1094 = vmatpush1.msra.mxu0 %v1017
        %1095 = vmatprep.mubr.f32.mxu0 %v940
        %1096 = vmatmul.mubr.f32.gmra.mrb[0].mxu0 %v939
        %v1097 = vpop.f32.mrb[0].mxu0
        %v1098 = vadd.f32 %v1024, %v1097
        %v1099 = vpop.f32.mrb[0].mxu0
        %v1100 = vadd.f32 %v1028, %v1099
        %1101 = vmatprep.mubr.f32.mxu0 %v942
        %1102 = vmatmul.mubr.f32.gmra.mrb[0].mxu0 %v941
        %v1103 = vpop.f32.mrb[0].mxu0
        %v1104 = vadd.f32 %v1024, %v1103
        %v1105 = vpop.f32.mrb[0].mxu0
        %v1106 = vadd.f32 %v1028, %v1105
        %1107 = vmatprep.mubr.f32.mxu0 %v944
        %1108 = vmatmul.mubr.f32.gmra.mrb[0].mxu0 %v943
        %v1109 = vpop.f32.mrb[0].mxu0
        %v1110 = vadd.f32 %v1024, %v1109
        %v1111 = vpop.f32.mrb[0].mxu0
        %v1112 = vadd.f32 %v1028, %v1111
        %1113 = vmatprep.mubr.f32.mxu0 %v946
        %1114 = vmatmul.mubr.f32.gmra.mrb[0].mxu0 %v945
        %v1115 = vpop.f32.mrb[0].mxu0
        %v1116 = vadd.f32 %v1024, %v1115
        %v1117 = vpop.f32.mrb[0].mxu0
        %v1118 = vadd.f32 %v1028, %v1117
        %1119 = vmatprep.mubr.f32.mxu0 %v948
        %1120 = vmatmul.mubr.f32.gmra.mrb[0].mxu0 %v947
        %v1121 = vpop.f32.mrb[0].mxu0
        %v1122 = vadd.f32 %v1024, %v1121
        %v1123 = vpop.f32.mrb[0].mxu0
        %v1124 = vadd.f32 %v1028, %v1123
        %1125 = vmatprep.mubr.f32.mxu0 %v950
        %1126 = vmatmul.mubr.f32.gmra.mrb[0].mxu0 %v949
        %v1127 = vpop.f32.mrb[0].mxu0
        %v1128 = vadd.f32 %v1024, %v1127
        %v1129 = vpop.f32.mrb[0].mxu0
        %v1130 = vadd.f32 %v1028, %v1129
        %1131 = vmatprep.mubr.f32.mxu0 %v952
        %1132 = vmatmul.mubr.f32.gmra.mrb[0].mxu0 %v951
        %v1133 = vpop.f32.mrb[0].mxu0
        %v1134 = vadd.f32 %v1024, %v1133
        %v1135 = vpop.f32.mrb[0].mxu0
        %v1136 = vadd.f32 %v1028, %v1135
        %1137 = vmatprep.mubr.f32.mxu0 %v954
        %1138 = vmatmul.mubr.f32.gmra.mrb[0].mxu0 %v953
        %v1139 = vpop.f32.mrb[0].mxu0
        %v1140 = vadd.f32 %v1024, %v1139
        %v1141 = vpop.f32.mrb[0].mxu0
        %v1142 = vadd.f32 %v1028, %v1141
        %1143 = vdwg.mxu0
        %vm1144 = vcmask 261120
        %v1146 = vsel %vm1144, %v712, 0
        %v1149 = vsel %vm1144, %v718, 0
        %v1152 = vsel %vm1144, %v724, 0
        %v1155 = vsel %vm1144, %v730, 0
        %v1158 = vsel %vm1144, %v893, 0
        %v1161 = vsel %vm1144, %v899, 0
        %v1164 = vsel %vm1144, %v905, 0
        %v1167 = vsel %vm1144, %v911, 0
        %v1170 = vsel %vm1144, %v917, 0
        %v1173 = vsel %vm1144, %v923, 0
        %v1176 = vsel %vm1144, %v929, 0
        %v1179 = vsel %vm1144, %v935, 0
        %1181 = vmatprep.subr.mxu0 0.0
        %1182 = vmatpush1.xpose.msra.mxu0 %v1158
        %1183 = vmatprep.subr.mxu0 0.0
        %1184 = vmatpush1.xpose.msra.mxu0 %v1161
        %1185 = vmatprep.subr.mxu0 0.0
        %1186 = vmatpush1.xpose.msra.mxu0 %v1164
        %1187 = vmatprep.subr.mxu0 0.0
        %1188 = vmatpush1.xpose.msra.mxu0 %v1167
        %1189 = vmatprep.subr.mxu0 0.0
        %1190 = vmatpush1.xpose.msra.mxu0 %v1170
        %1191 = vmatprep.subr.mxu0 0.0
        %1192 = vmatpush1.xpose.msra.mxu0 %v1173
        %1193 = vmatprep.subr.mxu0 0.0
        %1194 = vmatpush1.xpose.msra.mxu0 %v1176
        %1195 = vmatprep.subr.mxu0 0.0
        %1196 = vmatpush1.xpose.msra.mxu0 %v1179
        %1197 = vmatprep.subr.mxu0 0.0
        %1198 = vmatpush1.xpose.msra.mxu0 0.0
        %1199 = vmatprep.subr.mxu0 0.0
        %1200 = vmatpush1.xpose.msra.mxu0 0.0
        %1201 = vmatprep.subr.mxu0 0.0
        %1202 = vmatpush1.xpose.msra.mxu0 0.0
        %1203 = vmatprep.subr.mxu0 0.0
        %1204 = vmatpush1.xpose.msra.mxu0 0.0
        %1205 = vmatprep.subr.mxu0 0.0
        %1206 = vmatpush1.xpose.msra.mxu0 0.0
        %1207 = vmatprep.subr.mxu0 0.0
        %1208 = vmatpush1.xpose.msra.mxu0 0.0
        %1209 = vmatprep.subr.mxu0 0.0
        %1210 = vmatpush1.xpose.msra.mxu0 0.0
        %1211 = vmatprep.subr.mxu0 0.0
        %1212 = vmatpush1.xpose.msra.mxu0 0.0
        %1213 = vmatprep.subr.mxu0 0.0
        %1214 = vmatpush1.xpose.msra.mxu0 0.0
        %1215 = vmatprep.subr.mxu0 0.0
        %1216 = vmatpush1.xpose.msra.mxu0 0.0
        %1217 = vmatprep.subr.mxu0 0.0
        %1218 = vmatpush1.xpose.msra.mxu0 0.0
        %1219 = vmatprep.subr.mxu0 0.0
        %1220 = vmatpush1.xpose.msra.mxu0 0.0
        %1221 = vmatprep.subr.mxu0 0.0
        %1222 = vmatpush1.xpose.msra.mxu0 0.0
        %1223 = vmatprep.subr.mxu0 0.0
        %1224 = vmatpush1.xpose.msra.mxu0 0.0
        %1225 = vmatprep.subr.mxu0 0.0
        %1226 = vmatpush1.xpose.msra.mxu0 0.0
        %1227 = vmatprep.subr.mxu0 0.0
        %1228 = vmatpush1.xpose.msra.mxu0 0.0
        %1229 = vmatprep.subr.mxu0 0.0
        %1230 = vmatpush1.xpose.msra.mxu0 0.0
        %1231 = vmatprep.subr.mxu0 0.0
        %1232 = vmatpush1.xpose.msra.mxu0 0.0
        %1233 = vmatprep.subr.mxu0 0.0
        %1234 = vmatpush1.xpose.msra.mxu0 0.0
        %1235 = vmatprep.subr.mxu0 0.0
        %1236 = vmatpush1.xpose.msra.mxu0 0.0
        %1237 = vmatprep.subr.mxu0 0.0
        %1238 = vmatpush1.xpose.msra.mxu0 0.0
        %1239 = vmatprep.subr.mxu0 0.0
        %1240 = vmatpush1.xpose.msra.mxu0 0.0
        %1241 = vmatprep.subr.mxu0 0.0
        %1242 = vmatpush1.xpose.msra.mxu0 0.0
        %1243 = vmatprep.subr.mxu0 0.0
        %1244 = vmatpush1.xpose.msra.mxu0 0.0
        %1245 = vmatprep.mubr.f32.mxu0 0.0
        %1246 = vmatmul.mubr.f32.gmra.mrb[0].mxu0 %v1146
        %v1247 = vpop.f32.mrb[0].mxu0
        %v1248 = vadd.f32 0.0, %v1247
        %v1249 = vpop.f32.mrb[0].mxu0
        %1250 = vmatprep.mubr.f32.mxu0 0.0
        %1251 = vmatmul.mubr.f32.gmra.mrb[0].mxu0 %v1149
        %v1252 = vpop.f32.mrb[0].mxu0
        %v1253 = vadd.f32 0.0, %v1252
        %v1254 = vpop.f32.mrb[0].mxu0
        %1255 = vmatprep.mubr.f32.mxu0 0.0
        %1256 = vmatmul.mubr.f32.gmra.mrb[0].mxu0 %v1152
        %v1257 = vpop.f32.mrb[0].mxu0
        %v1258 = vadd.f32 0.0, %v1257
        %v1259 = vpop.f32.mrb[0].mxu0
        %1260 = vmatprep.mubr.f32.mxu0 0.0
        %1261 = vmatmul.mubr.f32.gmra.mrb[0].mxu0 %v1155
        %v1262 = vpop.f32.mrb[0].mxu0
        %v1263 = vadd.f32 0.0, %v1262
        %v1264 = vpop.f32.mrb[0].mxu0
        %1265 = vdwg.mxu0
        %vm1266 = vcmask 523264
        %v1267 = vsel %vm1266, %v1248, -inf
        %1268 = vmax.xlane.f32.xlu0 %v1267
        %v1269 = vpop.xlane.xlu0 %1268
        %v1270 = vsel %vm1266, %v1253, -inf
        %1271 = vmax.xlane.f32.xlu0 %v1270
        %v1272 = vpop.xlane.xlu0 %1271
        %v1273 = vsel %vm1266, %v1258, -inf
        %1274 = vmax.xlane.f32.xlu0 %v1273
        %v1275 = vpop.xlane.xlu0 %1274
        %v1276 = vsel %vm1266, %v1263, -inf
        %1277 = vmax.xlane.f32.xlu0 %v1276
        %v1278 = vpop.xlane.xlu0 %1277
        %v1279 = vsub.f32 %v1248, %v1269
        %v1280 = vsub.f32 %v1253, %v1272
        %v1281 = vsub.f32 %v1258, %v1275
        %v1282 = vsub.f32 %v1263, %v1278
        %v1283 = vmul.f32 %v1279, 1.442695
        %v1284 = vpow.pop %v1283
        %v1285 = vmul.f32 %v1280, 1.442695
        %v1286 = vpow.pop %v1285
        %v1287 = vmul.f32 %v1281, 1.442695
        %v1288 = vpow.pop %v1287
        %v1289 = vmul.f32 %v1282, 1.442695
        %v1290 = vpow.pop %v1289
        %v1291 = vsel %vm1266, %v1284, 0.0
        %1292 = vadd.xlane.f32.xlu0 %v1291
        %v1293 = vpop.xlane.xlu0 %1292
        %v1294 = vsel %vm1266, %v1286, 0.0
        %1295 = vadd.xlane.f32.xlu0 %v1294
        %v1296 = vpop.xlane.xlu0 %1295
        %v1297 = vsel %vm1266, %v1288, 0.0
        %1298 = vadd.xlane.f32.xlu0 %v1297
        %v1299 = vpop.xlane.xlu0 %1298
        %v1300 = vsel %vm1266, %v1290, 0.0
        %1301 = vadd.xlane.f32.xlu0 %v1300
        %v1302 = vpop.xlane.xlu0 %1301
        %v1304 = vsel %vm1266, %v1284, 0
        %v1307 = vsel %vm1266, %v1286, 0
        %v1310 = vsel %vm1266, %v1288, 0
        %v1313 = vsel %vm1266, %v1290, 0
        %1315 = vmatprep.subr.mxu0 0.0
        %1316 = vmatpush1.msra.mxu0 %v1098
        %1317 = vmatprep.subr.mxu0 0.0
        %1318 = vmatpush1.msra.mxu0 %v1104
        %1319 = vmatprep.subr.mxu0 0.0
        %1320 = vmatpush1.msra.mxu0 %v1110
        %1321 = vmatprep.subr.mxu0 0.0
        %1322 = vmatpush1.msra.mxu0 %v1116
        %1323 = vmatprep.subr.mxu0 0.0
        %1324 = vmatpush1.msra.mxu0 %v1122
        %1325 = vmatprep.subr.mxu0 0.0
        %1326 = vmatpush1.msra.mxu0 %v1128
        %1327 = vmatprep.subr.mxu0 0.0
        %1328 = vmatpush1.msra.mxu0 %v1134
        %1329 = vmatprep.subr.mxu0 0.0
        %1330 = vmatpush1.msra.mxu0 %v1140
        %1331 = vmatprep.subr.mxu0 0.0
        %1332 = vmatpush1.msra.mxu0 0.0
        %1333 = vmatprep.subr.mxu0 0.0
        %1334 = vmatpush1.msra.mxu0 0.0
        %1335 = vmatprep.subr.mxu0 0.0
        %1336 = vmatpush1.msra.mxu0 0.0
        %1337 = vmatprep.subr.mxu0 0.0
        %1338 = vmatpush1.msra.mxu0 0.0
        %1339 = vmatprep.subr.mxu0 0.0
        %1340 = vmatpush1.msra.mxu0 0.0
        %1341 = vmatprep.subr.mxu0 0.0
        %1342 = vmatpush1.msra.mxu0 0.0
        %1343 = vmatprep.subr.mxu0 0.0
        %1344 = vmatpush1.msra.mxu0 0.0
        %1345 = vmatprep.subr.mxu0 0.0
        %1346 = vmatpush1.msra.mxu0 0.0
        %1347 = vmatprep.subr.mxu0 0.0
        %1348 = vmatpush1.msra.mxu0 0.0
        %1349 = vmatprep.subr.mxu0 0.0
        %1350 = vmatpush1.msra.mxu0 0.0
        %1351 = vmatprep.subr.mxu0 0.0
        %1352 = vmatpush1.msra.mxu0 0.0
        %1353 = vmatprep.subr.mxu0 0.0
        %1354 = vmatpush1.msra.mxu0 0.0
        %1355 = vmatprep.subr.mxu0 0.0
        %1356 = vmatpush1.msra.mxu0 0.0
        %1357 = vmatprep.subr.mxu0 0.0
        %1358 = vmatpush1.msra.mxu0 0.0
        %1359 = vmatprep.subr.mxu0 0.0
        %1360 = vmatpush1.msra.mxu0 0.0
        %1361 = vmatprep.subr.mxu0 0.0
        %1362 = vmatpush1.msra.mxu0 0.0
        %1363 = vmatprep.subr.mxu0 0.0
        %1364 = vmatpush1.msra.mxu0 0.0
        %1365 = vmatprep.subr.mxu0 0.0
        %1366 = vmatpush1.msra.mxu0 0.0
        %1367 = vmatprep.subr.mxu0 0.0
        %1368 = vmatpush1.msra.mxu0 0.0
        %1369 = vmatprep.subr.mxu0 0.0
        %1370 = vmatpush1.msra.mxu0 0.0
        %1371 = vmatprep.subr.mxu0 0.0
        %1372 = vmatpush1.msra.mxu0 0.0
        %1373 = vmatprep.subr.mxu0 0.0
        %1374 = vmatpush1.msra.mxu0 0.0
        %1375 = vmatprep.subr.mxu0 0.0
        %1376 = vmatpush1.msra.mxu0 0.0
        %1377 = vmatprep.subr.mxu0 0.0
        %1378 = vmatpush1.msra.mxu0 0.0
        %1379 = vmatprep.mubr.f32.mxu0 0.0
        %1380 = vmatmul.mubr.f32.gmra.mrb[0].mxu0 %v1304
        %v1381 = vpop.f32.mrb[0].mxu0
        %v1382 = vadd.f32 0.0, %v1381
        %v1383 = vpop.f32.mrb[0].mxu0
        %1384 = vmatprep.mubr.f32.mxu0 0.0
        %1385 = vmatmul.mubr.f32.gmra.mrb[0].mxu0 %v1307
        %v1386 = vpop.f32.mrb[0].mxu0
        %v1387 = vadd.f32 0.0, %v1386
        %v1388 = vpop.f32.mrb[0].mxu0
        %1389 = vmatprep.mubr.f32.mxu0 0.0
        %1390 = vmatmul.mubr.f32.gmra.mrb[0].mxu0 %v1310
        %v1391 = vpop.f32.mrb[0].mxu0
        %v1392 = vadd.f32 0.0, %v1391
        %v1393 = vpop.f32.mrb[0].mxu0
        %1394 = vmatprep.mubr.f32.mxu0 0.0
        %1395 = vmatmul.mubr.f32.gmra.mrb[0].mxu0 %v1313
        %v1396 = vpop.f32.mrb[0].mxu0
        %v1397 = vadd.f32 0.0, %v1396
        %v1398 = vpop.f32.mrb[0].mxu0
        %1399 = vdwg.mxu0
        %v1400 = vrcp.pop %v1293
        %v1401 = vrcp.pop %v1296
        %v1402 = vrcp.pop %v1299
        %v1403 = vrcp.pop %v1302
        %v1404 = vmul.f32 %v1382, %v1400
        %v1405 = vmul.f32 %v1387, %v1401
        %v1406 = vmul.f32 %v1392, %v1402
        %v1407 = vmul.f32 %v1397, %v1403
        %v1408 = vld [vmem:[#allocation13] sm:$0xff]
        %v1409 = vld [vmem:[#allocation13 + $0x8] sm:$0xff]
        %v1410 = vld [vmem:[#allocation13 + $0x10] sm:$0xff]
        %v1411 = vld [vmem:[#allocation13 + $0x18] sm:$0xff]
        %v1412 = vld [vmem:[#allocation13 + $0x20] sm:$0xff]
        %v1413 = vld [vmem:[#allocation13 + $0x28] sm:$0xff]
        %v1414 = vld [vmem:[#allocation13 + $0x30] sm:$0xff]
        %v1415 = vld [vmem:[#allocation13 + $0x38] sm:$0xff]
        %1416 = vrot.lane.b32.xlu0 %v712, 96
        %v1417 = vpop.permute.xlu0 %1416
        %1418 = vrot.lane.b32.xlu0 %v718, 96
        %v1419 = vpop.permute.xlu0 %1418
        %1420 = vrot.lane.b32.xlu0 %v724, 96
        %v1421 = vpop.permute.xlu0 %1420
        %1422 = vrot.lane.b32.xlu0 %v730, 96
        %v1423 = vpop.permute.xlu0 %1422
        %1424 = vrot.lane.b32.xlu0 %v893, 96
        %v1425 = vpop.permute.xlu0 %1424
        %1426 = vrot.lane.b32.xlu0 %v899, 96
        %v1427 = vpop.permute.xlu0 %1426
        %1428 = vrot.lane.b32.xlu0 %v905, 96
        %v1429 = vpop.permute.xlu0 %1428
        %1430 = vrot.lane.b32.xlu0 %v911, 96
        %v1431 = vpop.permute.xlu0 %1430
        %1432 = vrot.lane.b32.xlu0 %v917, 96
        %v1433 = vpop.permute.xlu0 %1432
        %1434 = vrot.lane.b32.xlu0 %v923, 96
        %v1435 = vpop.permute.xlu0 %1434
        %1436 = vrot.lane.b32.xlu0 %v929, 96
        %v1437 = vpop.permute.xlu0 %1436
        %1438 = vrot.lane.b32.xlu0 %v935, 96
        %v1439 = vpop.permute.xlu0 %1438
        %v1440 = vsel %vm1144, %v1417, 0
        %v1442 = vsel %vm1144, %v1419, 0
        %v1444 = vsel %vm1144, %v1421, 0
        %v1446 = vsel %vm1144, %v1423, 0
        %v1448 = vsel %vm1144, %v1425, 0
        %v1450 = vsel %vm1144, %v1427, 0
        %v1452 = vsel %vm1144, %v1429, 0
        %v1454 = vsel %vm1144, %v1431, 0
        %v1456 = vsel %vm1144, %v1433, 0
        %v1458 = vsel %vm1144, %v1435, 0
        %v1460 = vsel %vm1144, %v1437, 0
        %v1462 = vsel %vm1144, %v1439, 0
        %1464 = vmatprep.subr.mxu0 0.0
        %1465 = vmatpush1.xpose.msra.mxu0 %v1448
        %1466 = vmatprep.subr.mxu0 0.0
        %1467 = vmatpush1.xpose.msra.mxu0 %v1450
        %1468 = vmatprep.subr.mxu0 0.0
        %1469 = vmatpush1.xpose.msra.mxu0 %v1452
        %1470 = vmatprep.subr.mxu0 0.0
        %1471 = vmatpush1.xpose.msra.mxu0 %v1454
        %1472 = vmatprep.subr.mxu0 0.0
        %1473 = vmatpush1.xpose.msra.mxu0 %v1456
        %1474 = vmatprep.subr.mxu0 0.0
        %1475 = vmatpush1.xpose.msra.mxu0 %v1458
        %1476 = vmatprep.subr.mxu0 0.0
        %1477 = vmatpush1.xpose.msra.mxu0 %v1460
        %1478 = vmatprep.subr.mxu0 0.0
        %1479 = vmatpush1.xpose.msra.mxu0 %v1462
        %1480 = vmatprep.subr.mxu0 0.0
        %1481 = vmatpush1.xpose.msra.mxu0 0.0
        %1482 = vmatprep.subr.mxu0 0.0
        %1483 = vmatpush1.xpose.msra.mxu0 0.0
        %1484 = vmatprep.subr.mxu0 0.0
        %1485 = vmatpush1.xpose.msra.mxu0 0.0
        %1486 = vmatprep.subr.mxu0 0.0
        %1487 = vmatpush1.xpose.msra.mxu0 0.0
        %1488 = vmatprep.subr.mxu0 0.0
        %1489 = vmatpush1.xpose.msra.mxu0 0.0
        %1490 = vmatprep.subr.mxu0 0.0
        %1491 = vmatpush1.xpose.msra.mxu0 0.0
        %1492 = vmatprep.subr.mxu0 0.0
        %1493 = vmatpush1.xpose.msra.mxu0 0.0
        %1494 = vmatprep.subr.mxu0 0.0
        %1495 = vmatpush1.xpose.msra.mxu0 0.0
        %1496 = vmatprep.subr.mxu0 0.0
        %1497 = vmatpush1.xpose.msra.mxu0 0.0
        %1498 = vmatprep.subr.mxu0 0.0
        %1499 = vmatpush1.xpose.msra.mxu0 0.0
        %1500 = vmatprep.subr.mxu0 0.0
        %1501 = vmatpush1.xpose.msra.mxu0 0.0
        %1502 = vmatprep.subr.mxu0 0.0
        %1503 = vmatpush1.xpose.msra.mxu0 0.0
        %1504 = vmatprep.subr.mxu0 0.0
        %1505 = vmatpush1.xpose.msra.mxu0 0.0
        %1506 = vmatprep.subr.mxu0 0.0
        %1507 = vmatpush1.xpose.msra.mxu0 0.0
        %1508 = vmatprep.subr.mxu0 0.0
        %1509 = vmatpush1.xpose.msra.mxu0 0.0
        %1510 = vmatprep.subr.mxu0 0.0
        %1511 = vmatpush1.xpose.msra.mxu0 0.0
        %1512 = vmatprep.subr.mxu0 0.0
        %1513 = vmatpush1.xpose.msra.mxu0 0.0
        %1514 = vmatprep.subr.mxu0 0.0
        %1515 = vmatpush1.xpose.msra.mxu0 0.0
        %1516 = vmatprep.subr.mxu0 0.0
        %1517 = vmatpush1.xpose.msra.mxu0 0.0
        %1518 = vmatprep.subr.mxu0 0.0
        %1519 = vmatpush1.xpose.msra.mxu0 0.0
        %1520 = vmatprep.subr.mxu0 0.0
        %1521 = vmatpush1.xpose.msra.mxu0 0.0
        %1522 = vmatprep.subr.mxu0 0.0
        %1523 = vmatpush1.xpose.msra.mxu0 0.0
        %1524 = vmatprep.subr.mxu0 0.0
        %1525 = vmatpush1.xpose.msra.mxu0 0.0
        %1526 = vmatprep.subr.mxu0 0.0
        %1527 = vmatpush1.xpose.msra.mxu0 0.0
        %1528 = vmatprep.mubr.f32.mxu0 0.0
        %1529 = vmatmul.mubr.f32.gmra.mrb[0].mxu0 %v1440
        %v1530 = vpop.f32.mrb[0].mxu0
        %v1531 = vadd.f32 0.0, %v1530
        %v1532 = vpop.f32.mrb[0].mxu0
        %1533 = vmatprep.mubr.f32.mxu0 0.0
        %1534 = vmatmul.mubr.f32.gmra.mrb[0].mxu0 %v1442
        %v1535 = vpop.f32.mrb[0].mxu0
        %v1536 = vadd.f32 0.0, %v1535
        %v1537 = vpop.f32.mrb[0].mxu0
        %1538 = vmatprep.mubr.f32.mxu0 0.0
        %1539 = vmatmul.mubr.f32.gmra.mrb[0].mxu0 %v1444
        %v1540 = vpop.f32.mrb[0].mxu0
        %v1541 = vadd.f32 0.0, %v1540
        %v1542 = vpop.f32.mrb[0].mxu0
        %1543 = vmatprep.mubr.f32.mxu0 0.0
        %1544 = vmatmul.mubr.f32.gmra.mrb[0].mxu0 %v1446
        %v1545 = vpop.f32.mrb[0].mxu0
        %v1546 = vadd.f32 0.0, %v1545
        %v1547 = vpop.f32.mrb[0].mxu0
        %1548 = vdwg.mxu0
        %v1549 = vsel %vm1266, %v1531, -inf
        %1550 = vmax.xlane.f32.xlu0 %v1549
        %v1551 = vpop.xlane.xlu0 %1550
        %v1552 = vsel %vm1266, %v1536, -inf
        %1553 = vmax.xlane.f32.xlu0 %v1552
        %v1554 = vpop.xlane.xlu0 %1553
        %v1555 = vsel %vm1266, %v1541, -inf
        %1556 = vmax.xlane.f32.xlu0 %v1555
        %v1557 = vpop.xlane.xlu0 %1556
        %v1558 = vsel %vm1266, %v1546, -inf
        %1559 = vmax.xlane.f32.xlu0 %v1558
        %v1560 = vpop.xlane.xlu0 %1559
        %v1561 = vsub.f32 %v1531, %v1551
        %v1562 = vsub.f32 %v1536, %v1554
        %v1563 = vsub.f32 %v1541, %v1557
        %v1564 = vsub.f32 %v1546, %v1560
        %v1565 = vmul.f32 %v1561, 1.442695
        %v1566 = vpow.pop %v1565
        %v1567 = vmul.f32 %v1562, 1.442695
        %v1568 = vpow.pop %v1567
        %v1569 = vmul.f32 %v1563, 1.442695
        %v1570 = vpow.pop %v1569
        %v1571 = vmul.f32 %v1564, 1.442695
        %v1572 = vpow.pop %v1571
        %v1573 = vsel %vm1266, %v1566, 0.0
        %1574 = vadd.xlane.f32.xlu0 %v1573
        %v1575 = vpop.xlane.xlu0 %1574
        %v1576 = vsel %vm1266, %v1568, 0.0
        %1577 = vadd.xlane.f32.xlu0 %v1576
        %v1578 = vpop.xlane.xlu0 %1577
        %v1579 = vsel %vm1266, %v1570, 0.0
        %1580 = vadd.xlane.f32.xlu0 %v1579
        %v1581 = vpop.xlane.xlu0 %1580
        %v1582 = vsel %vm1266, %v1572, 0.0
        %1583 = vadd.xlane.f32.xlu0 %v1582
        %v1584 = vpop.xlane.xlu0 %1583
        %1593 = vrot.lane.b32.xlu0 %v1098, 96
        %v1594 = vpop.permute.xlu0 %1593
        %1595 = vrot.lane.b32.xlu0 %v1104, 96
        %v1596 = vpop.permute.xlu0 %1595
        %1597 = vrot.lane.b32.xlu0 %v1110, 96
        %v1598 = vpop.permute.xlu0 %1597
        %1599 = vrot.lane.b32.xlu0 %v1116, 96
        %v1600 = vpop.permute.xlu0 %1599
        %1601 = vrot.lane.b32.xlu0 %v1122, 96
        %v1602 = vpop.permute.xlu0 %1601
        %1603 = vrot.lane.b32.xlu0 %v1128, 96
        %v1604 = vpop.permute.xlu0 %1603
        %1605 = vrot.lane.b32.xlu0 %v1134, 96
        %v1606 = vpop.permute.xlu0 %1605
        %1607 = vrot.lane.b32.xlu0 %v1140, 96
        %v1608 = vpop.permute.xlu0 %1607
        %v1618 = vsel %vm1266, %v1566, 0
        %v1621 = vsel %vm1266, %v1568, 0
        %v1624 = vsel %vm1266, %v1570, 0
        %v1627 = vsel %vm1266, %v1572, 0
        %1629 = vmatprep.subr.mxu0 0.0
        %1630 = vmatpush1.msra.mxu0 %v1594
        %1631 = vmatprep.subr.mxu0 0.0
        %1632 = vmatpush1.msra.mxu0 %v1596
        %1633 = vmatprep.subr.mxu0 0.0
        %1634 = vmatpush1.msra.mxu0 %v1598
        %1635 = vmatprep.subr.mxu0 0.0
        %1636 = vmatpush1.msra.mxu0 %v1600
        %1637 = vmatprep.subr.mxu0 0.0
        %1638 = vmatpush1.msra.mxu0 %v1602
        %1639 = vmatprep.subr.mxu0 0.0
        %1640 = vmatpush1.msra.mxu0 %v1604
        %1641 = vmatprep.subr.mxu0 0.0
        %1642 = vmatpush1.msra.mxu0 %v1606
        %1643 = vmatprep.subr.mxu0 0.0
        %1644 = vmatpush1.msra.mxu0 %v1608
        %1645 = vmatprep.subr.mxu0 0.0
        %1646 = vmatpush1.msra.mxu0 0.0
        %1647 = vmatprep.subr.mxu0 0.0
        %1648 = vmatpush1.msra.mxu0 0.0
        %1649 = vmatprep.subr.mxu0 0.0
        %1650 = vmatpush1.msra.mxu0 0.0
        %1651 = vmatprep.subr.mxu0 0.0
        %1652 = vmatpush1.msra.mxu0 0.0
        %1653 = vmatprep.subr.mxu0 0.0
        %1654 = vmatpush1.msra.mxu0 0.0
        %1655 = vmatprep.subr.mxu0 0.0
        %1656 = vmatpush1.msra.mxu0 0.0
        %1657 = vmatprep.subr.mxu0 0.0
        %1658 = vmatpush1.msra.mxu0 0.0
        %1659 = vmatprep.subr.mxu0 0.0
        %1660 = vmatpush1.msra.mxu0 0.0
        %1661 = vmatprep.subr.mxu0 0.0
        %1662 = vmatpush1.msra.mxu0 0.0
        %1663 = vmatprep.subr.mxu0 0.0
        %1664 = vmatpush1.msra.mxu0 0.0
        %1665 = vmatprep.subr.mxu0 0.0
        %1666 = vmatpush1.msra.mxu0 0.0
        %1667 = vmatprep.subr.mxu0 0.0
        %1668 = vmatpush1.msra.mxu0 0.0
        %1669 = vmatprep.subr.mxu0 0.0
        %1670 = vmatpush1.msra.mxu0 0.0
        %1671 = vmatprep.subr.mxu0 0.0
        %1672 = vmatpush1.msra.mxu0 0.0
        %1673 = vmatprep.subr.mxu0 0.0
        %1674 = vmatpush1.msra.mxu0 0.0
        %1675 = vmatprep.subr.mxu0 0.0
        %1676 = vmatpush1.msra.mxu0 0.0
        %1677 = vmatprep.subr.mxu0 0.0
        %1678 = vmatpush1.msra.mxu0 0.0
        %1679 = vmatprep.subr.mxu0 0.0
        %1680 = vmatpush1.msra.mxu0 0.0
        %1681 = vmatprep.subr.mxu0 0.0
        %1682 = vmatpush1.msra.mxu0 0.0
        %1683 = vmatprep.subr.mxu0 0.0
        %1684 = vmatpush1.msra.mxu0 0.0
        %1685 = vmatprep.subr.mxu0 0.0
        %1686 = vmatpush1.msra.mxu0 0.0
        %1687 = vmatprep.subr.mxu0 0.0
        %1688 = vmatpush1.msra.mxu0 0.0
        %1689 = vmatprep.subr.mxu0 0.0
        %1690 = vmatpush1.msra.mxu0 0.0
        %1691 = vmatprep.subr.mxu0 0.0
        %1692 = vmatpush1.msra.mxu0 0.0
        %1693 = vmatprep.mubr.f32.mxu0 0.0
        %1694 = vmatmul.mubr.f32.gmra.mrb[0].mxu0 %v1618
        %v1695 = vpop.f32.mrb[0].mxu0
        %v1696 = vadd.f32 0.0, %v1695
        %v1697 = vpop.f32.mrb[0].mxu0
        %1698 = vmatprep.mubr.f32.mxu0 0.0
        %1699 = vmatmul.mubr.f32.gmra.mrb[0].mxu0 %v1621
        %v1700 = vpop.f32.mrb[0].mxu0
        %v1701 = vadd.f32 0.0, %v1700
        %v1702 = vpop.f32.mrb[0].mxu0
        %1703 = vmatprep.mubr.f32.mxu0 0.0
        %1704 = vmatmul.mubr.f32.gmra.mrb[0].mxu0 %v1624
        %v1705 = vpop.f32.mrb[0].mxu0
        %v1706 = vadd.f32 0.0, %v1705
        %v1707 = vpop.f32.mrb[0].mxu0
        %1708 = vmatprep.mubr.f32.mxu0 0.0
        %1709 = vmatmul.mubr.f32.gmra.mrb[0].mxu0 %v1627
        %v1710 = vpop.f32.mrb[0].mxu0
        %v1711 = vadd.f32 0.0, %v1710
        %v1712 = vpop.f32.mrb[0].mxu0
        %1713 = vdwg.mxu0
        %v1714 = vrcp.pop %v1575
        %v1715 = vrcp.pop %v1578
        %v1716 = vrcp.pop %v1581
        %v1717 = vrcp.pop %v1584
        %v1718 = vmul.f32 %v1696, %v1714
        %v1719 = vmul.f32 %v1701, %v1715
        %v1720 = vmul.f32 %v1706, %v1716
        %v1721 = vmul.f32 %v1711, %v1717
        %s1722 = scalar_lea.vmem [#allocation13], 64
        %v1723 = vld [vmem:[%s1722] sm:$0xff]
        %v1724 = vld [vmem:[%s1722 + $0x8] sm:$0xff]
        %v1725 = vld [vmem:[%s1722 + $0x10] sm:$0xff]
        %v1726 = vld [vmem:[%s1722 + $0x18] sm:$0xff]
        %v1727 = vld [vmem:[%s1722 + $0x20] sm:$0xff]
        %v1728 = vld [vmem:[%s1722 + $0x28] sm:$0xff]
        %v1729 = vld [vmem:[%s1722 + $0x30] sm:$0xff]
        %v1730 = vld [vmem:[%s1722 + $0x38] sm:$0xff]
        %v1732 = vsel %vm1144, %v1718, 0
        %v1735 = vsel %vm1144, %v1719, 0
        %v1738 = vsel %vm1144, %v1720, 0
        %v1741 = vsel %vm1144, %v1721, 0
        %1743 = vmatprep.subr.mxu0 %v1724
        %1744 = vmatpush1.msra.mxu0 %v1723
        %1745 = vmatprep.subr.mxu0 %v1726
        %1746 = vmatpush1.msra.mxu0 %v1725
        %1747 = vmatprep.subr.mxu0 %v1728
        %1748 = vmatpush1.msra.mxu0 %v1727
        %1749 = vmatprep.subr.mxu0 %v1730
        %1750 = vmatpush1.msra.mxu0 %v1729
        %1751 = vmatprep.subr.mxu0 0.0
        %1752 = vmatpush1.msra.mxu0 0.0
        %1753 = vmatprep.subr.mxu0 0.0
        %1754 = vmatpush1.msra.mxu0 0.0
        %1755 = vmatprep.subr.mxu0 0.0
        %1756 = vmatpush1.msra.mxu0 0.0
        %1757 = vmatprep.subr.mxu0 0.0
        %1758 = vmatpush1.msra.mxu0 0.0
        %1759 = vmatprep.subr.mxu0 0.0
        %1760 = vmatpush1.msra.mxu0 0.0
        %1761 = vmatprep.subr.mxu0 0.0
        %1762 = vmatpush1.msra.mxu0 0.0
        %1763 = vmatprep.subr.mxu0 0.0
        %1764 = vmatpush1.msra.mxu0 0.0
        %1765 = vmatprep.subr.mxu0 0.0
        %1766 = vmatpush1.msra.mxu0 0.0
        %1767 = vmatprep.subr.mxu0 0.0
        %1768 = vmatpush1.msra.mxu0 0.0
        %1769 = vmatprep.subr.mxu0 0.0
        %1770 = vmatpush1.msra.mxu0 0.0
        %1771 = vmatprep.subr.mxu0 0.0
        %1772 = vmatpush1.msra.mxu0 0.0
        %1773 = vmatprep.subr.mxu0 0.0
        %1774 = vmatpush1.msra.mxu0 0.0
        %1775 = vmatprep.subr.mxu0 0.0
        %1776 = vmatpush1.msra.mxu0 0.0
        %1777 = vmatprep.subr.mxu0 0.0
        %1778 = vmatpush1.msra.mxu0 0.0
        %1779 = vmatprep.subr.mxu0 0.0
        %1780 = vmatpush1.msra.mxu0 0.0
        %1781 = vmatprep.subr.mxu0 0.0
        %1782 = vmatpush1.msra.mxu0 0.0
        %1783 = vmatprep.subr.mxu0 0.0
        %1784 = vmatpush1.msra.mxu0 0.0
        %1785 = vmatprep.subr.mxu0 0.0
        %1786 = vmatpush1.msra.mxu0 0.0
        %1787 = vmatprep.subr.mxu0 0.0
        %1788 = vmatpush1.msra.mxu0 0.0
        %1789 = vmatprep.subr.mxu0 0.0
        %1790 = vmatpush1.msra.mxu0 0.0
        %1791 = vmatprep.subr.mxu0 0.0
        %1792 = vmatpush1.msra.mxu0 0.0
        %1793 = vmatprep.subr.mxu0 0.0
        %1794 = vmatpush1.msra.mxu0 0.0
        %1795 = vmatprep.subr.mxu0 0.0
        %1796 = vmatpush1.msra.mxu0 0.0
        %1797 = vmatprep.subr.mxu0 0.0
        %1798 = vmatpush1.msra.mxu0 0.0
        %1799 = vmatprep.subr.mxu0 0.0
        %1800 = vmatpush1.msra.mxu0 0.0
        %1801 = vmatprep.subr.mxu0 0.0
        %1802 = vmatpush1.msra.mxu0 0.0
        %1803 = vmatprep.subr.mxu0 0.0
        %1804 = vmatpush1.msra.mxu0 0.0
        %1805 = vmatprep.subr.mxu0 0.0
        %1806 = vmatpush1.msra.mxu0 0.0
        %1807 = vmatprep.mubr.f32.mxu0 0.0
        %1808 = vmatmul.mubr.f32.gmra.mrb[0].mxu0 %v1732
        %v1809 = vpop.f32.mrb[0].mxu0
        %v1810 = vadd.f32 0.0, %v1809
        %v1811 = vpop.f32.mrb[0].mxu0
        %v1812 = vadd.f32 0.0, %v1811
        %1813 = vmatprep.mubr.f32.mxu0 0.0
        %1814 = vmatmul.mubr.f32.gmra.mrb[0].mxu0 %v1735
        %v1815 = vpop.f32.mrb[0].mxu0
        %v1816 = vadd.f32 0.0, %v1815
        %v1817 = vpop.f32.mrb[0].mxu0
        %v1818 = vadd.f32 0.0, %v1817
        %1819 = vmatprep.mubr.f32.mxu0 0.0
        %1820 = vmatmul.mubr.f32.gmra.mrb[0].mxu0 %v1738
        %v1821 = vpop.f32.mrb[0].mxu0
        %v1822 = vadd.f32 0.0, %v1821
        %v1823 = vpop.f32.mrb[0].mxu0
        %v1824 = vadd.f32 0.0, %v1823
        %1825 = vmatprep.mubr.f32.mxu0 0.0
        %1826 = vmatmul.mubr.f32.gmra.mrb[0].mxu0 %v1741
        %v1827 = vpop.f32.mrb[0].mxu0
        %v1828 = vadd.f32 0.0, %v1827
        %v1829 = vpop.f32.mrb[0].mxu0
        %v1830 = vadd.f32 0.0, %v1829
        %1831 = vdwg.mxu0
        %v1833 = vsel %vm1144, %v1404, 0
        %v1836 = vsel %vm1144, %v1405, 0
        %v1839 = vsel %vm1144, %v1406, 0
        %v1842 = vsel %vm1144, %v1407, 0
        %1844 = vmatprep.subr.mxu0 %v1409
        %1845 = vmatpush1.msra.mxu0 %v1408
        %1846 = vmatprep.subr.mxu0 %v1411
        %1847 = vmatpush1.msra.mxu0 %v1410
        %1848 = vmatprep.subr.mxu0 %v1413
        %1849 = vmatpush1.msra.mxu0 %v1412
        %1850 = vmatprep.subr.mxu0 %v1415
        %1851 = vmatpush1.msra.mxu0 %v1414
        %1852 = vmatprep.subr.mxu0 0.0
        %1853 = vmatpush1.msra.mxu0 0.0
        %1854 = vmatprep.subr.mxu0 0.0
        %1855 = vmatpush1.msra.mxu0 0.0
        %1856 = vmatprep.subr.mxu0 0.0
        %1857 = vmatpush1.msra.mxu0 0.0
        %1858 = vmatprep.subr.mxu0 0.0
        %1859 = vmatpush1.msra.mxu0 0.0
        %1860 = vmatprep.subr.mxu0 0.0
        %1861 = vmatpush1.msra.mxu0 0.0
        %1862 = vmatprep.subr.mxu0 0.0
        %1863 = vmatpush1.msra.mxu0 0.0
        %1864 = vmatprep.subr.mxu0 0.0
        %1865 = vmatpush1.msra.mxu0 0.0
        %1866 = vmatprep.subr.mxu0 0.0
        %1867 = vmatpush1.msra.mxu0 0.0
        %1868 = vmatprep.subr.mxu0 0.0
        %1869 = vmatpush1.msra.mxu0 0.0
        %1870 = vmatprep.subr.mxu0 0.0
        %1871 = vmatpush1.msra.mxu0 0.0
        %1872 = vmatprep.subr.mxu0 0.0
        %1873 = vmatpush1.msra.mxu0 0.0
        %1874 = vmatprep.subr.mxu0 0.0
        %1875 = vmatpush1.msra.mxu0 0.0
        %1876 = vmatprep.subr.mxu0 0.0
        %1877 = vmatpush1.msra.mxu0 0.0
        %1878 = vmatprep.subr.mxu0 0.0
        %1879 = vmatpush1.msra.mxu0 0.0
        %1880 = vmatprep.subr.mxu0 0.0
        %1881 = vmatpush1.msra.mxu0 0.0
        %1882 = vmatprep.subr.mxu0 0.0
        %1883 = vmatpush1.msra.mxu0 0.0
        %1884 = vmatprep.subr.mxu0 0.0
        %1885 = vmatpush1.msra.mxu0 0.0
        %1886 = vmatprep.subr.mxu0 0.0
        %1887 = vmatpush1.msra.mxu0 0.0
        %1888 = vmatprep.subr.mxu0 0.0
        %1889 = vmatpush1.msra.mxu0 0.0
        %1890 = vmatprep.subr.mxu0 0.0
        %1891 = vmatpush1.msra.mxu0 0.0
        %1892 = vmatprep.subr.mxu0 0.0
        %1893 = vmatpush1.msra.mxu0 0.0
        %1894 = vmatprep.subr.mxu0 0.0
        %1895 = vmatpush1.msra.mxu0 0.0
        %1896 = vmatprep.subr.mxu0 0.0
        %1897 = vmatpush1.msra.mxu0 0.0
        %1898 = vmatprep.subr.mxu0 0.0
        %1899 = vmatpush1.msra.mxu0 0.0
        %1900 = vmatprep.subr.mxu0 0.0
        %1901 = vmatpush1.msra.mxu0 0.0
        %1902 = vmatprep.subr.mxu0 0.0
        %1903 = vmatpush1.msra.mxu0 0.0
        %1904 = vmatprep.subr.mxu0 0.0
        %1905 = vmatpush1.msra.mxu0 0.0
        %1906 = vmatprep.subr.mxu0 0.0
        %1907 = vmatpush1.msra.mxu0 0.0
        %1908 = vmatprep.mubr.f32.mxu0 0.0
        %1909 = vmatmul.mubr.f32.gmra.mrb[0].mxu0 %v1833
        %v1910 = vpop.f32.mrb[0].mxu0
        %v1911 = vadd.f32 %v1810, %v1910
        %v1912 = vpop.f32.mrb[0].mxu0
        %v1913 = vadd.f32 %v1812, %v1912
        %1914 = vmatprep.mubr.f32.mxu0 0.0
        %1915 = vmatmul.mubr.f32.gmra.mrb[0].mxu0 %v1836
        %v1916 = vpop.f32.mrb[0].mxu0
        %v1917 = vadd.f32 %v1816, %v1916
        %v1918 = vpop.f32.mrb[0].mxu0
        %v1919 = vadd.f32 %v1818, %v1918
        %1920 = vmatprep.mubr.f32.mxu0 0.0
        %1921 = vmatmul.mubr.f32.gmra.mrb[0].mxu0 %v1839
        %v1922 = vpop.f32.mrb[0].mxu0
        %v1923 = vadd.f32 %v1822, %v1922
        %v1924 = vpop.f32.mrb[0].mxu0
        %v1925 = vadd.f32 %v1824, %v1924
        %1926 = vmatprep.mubr.f32.mxu0 0.0
        %1927 = vmatmul.mubr.f32.gmra.mrb[0].mxu0 %v1842
        %v1928 = vpop.f32.mrb[0].mxu0
        %v1929 = vadd.f32 %v1828, %v1928
        %v1930 = vpop.f32.mrb[0].mxu0
        %v1931 = vadd.f32 %v1830, %v1930
        %1932 = vdwg.mxu0
        %1933 = vrot.lane.b32.xlu0 %v712, 64
        %v1934 = vpop.permute.xlu0 %1933
        %1935 = vrot.lane.b32.xlu0 %v718, 64
        %v1936 = vpop.permute.xlu0 %1935
        %1937 = vrot.lane.b32.xlu0 %v724, 64
        %v1938 = vpop.permute.xlu0 %1937
        %1939 = vrot.lane.b32.xlu0 %v730, 64
        %v1940 = vpop.permute.xlu0 %1939
        %1941 = vrot.lane.b32.xlu0 %v893, 64
        %v1942 = vpop.permute.xlu0 %1941
        %1943 = vrot.lane.b32.xlu0 %v899, 64
        %v1944 = vpop.permute.xlu0 %1943
        %1945 = vrot.lane.b32.xlu0 %v905, 64
        %v1946 = vpop.permute.xlu0 %1945
        %1947 = vrot.lane.b32.xlu0 %v911, 64
        %v1948 = vpop.permute.xlu0 %1947
        %1949 = vrot.lane.b32.xlu0 %v917, 64
        %v1950 = vpop.permute.xlu0 %1949
        %1951 = vrot.lane.b32.xlu0 %v923, 64
        %v1952 = vpop.permute.xlu0 %1951
        %1953 = vrot.lane.b32.xlu0 %v929, 64
        %v1954 = vpop.permute.xlu0 %1953
        %1955 = vrot.lane.b32.xlu0 %v935, 64
        %v1956 = vpop.permute.xlu0 %1955
        %v1957 = vsel %vm1144, %v1934, 0
        %v1959 = vsel %vm1144, %v1936, 0
        %v1961 = vsel %vm1144, %v1938, 0
        %v1963 = vsel %vm1144, %v1940, 0
        %v1965 = vsel %vm1144, %v1942, 0
        %v1967 = vsel %vm1144, %v1944, 0
        %v1969 = vsel %vm1144, %v1946, 0
        %v1971 = vsel %vm1144, %v1948, 0
        %v1973 = vsel %vm1144, %v1950, 0
        %v1975 = vsel %vm1144, %v1952, 0
        %v1977 = vsel %vm1144, %v1954, 0
        %v1979 = vsel %vm1144, %v1956, 0
        %1981 = vmatprep.subr.mxu0 0.0
        %1982 = vmatpush1.xpose.msra.mxu0 %v1965
        %1983 = vmatprep.subr.mxu0 0.0
        %1984 = vmatpush1.xpose.msra.mxu0 %v1967
        %1985 = vmatprep.subr.mxu0 0.0
        %1986 = vmatpush1.xpose.msra.mxu0 %v1969
        %1987 = vmatprep.subr.mxu0 0.0
        %1988 = vmatpush1.xpose.msra.mxu0 %v1971
        %1989 = vmatprep.subr.mxu0 0.0
        %1990 = vmatpush1.xpose.msra.mxu0 %v1973
        %1991 = vmatprep.subr.mxu0 0.0
        %1992 = vmatpush1.xpose.msra.mxu0 %v1975
        %1993 = vmatprep.subr.mxu0 0.0
        %1994 = vmatpush1.xpose.msra.mxu0 %v1977
        %1995 = vmatprep.subr.mxu0 0.0
        %1996 = vmatpush1.xpose.msra.mxu0 %v1979
        %1997 = vmatprep.subr.mxu0 0.0
        %1998 = vmatpush1.xpose.msra.mxu0 0.0
        %1999 = vmatprep.subr.mxu0 0.0
        %2000 = vmatpush1.xpose.msra.mxu0 0.0
        %2001 = vmatprep.subr.mxu0 0.0
        %2002 = vmatpush1.xpose.msra.mxu0 0.0
        %2003 = vmatprep.subr.mxu0 0.0
        %2004 = vmatpush1.xpose.msra.mxu0 0.0
        %2005 = vmatprep.subr.mxu0 0.0
        %2006 = vmatpush1.xpose.msra.mxu0 0.0
        %2007 = vmatprep.subr.mxu0 0.0
        %2008 = vmatpush1.xpose.msra.mxu0 0.0
        %2009 = vmatprep.subr.mxu0 0.0
        %2010 = vmatpush1.xpose.msra.mxu0 0.0
        %2011 = vmatprep.subr.mxu0 0.0
        %2012 = vmatpush1.xpose.msra.mxu0 0.0
        %2013 = vmatprep.subr.mxu0 0.0
        %2014 = vmatpush1.xpose.msra.mxu0 0.0
        %2015 = vmatprep.subr.mxu0 0.0
        %2016 = vmatpush1.xpose.msra.mxu0 0.0
        %2017 = vmatprep.subr.mxu0 0.0
        %2018 = vmatpush1.xpose.msra.mxu0 0.0
        %2019 = vmatprep.subr.mxu0 0.0
        %2020 = vmatpush1.xpose.msra.mxu0 0.0
        %2021 = vmatprep.subr.mxu0 0.0
        %2022 = vmatpush1.xpose.msra.mxu0 0.0
        %2023 = vmatprep.subr.mxu0 0.0
        %2024 = vmatpush1.xpose.msra.mxu0 0.0
        %2025 = vmatprep.subr.mxu0 0.0
        %2026 = vmatpush1.xpose.msra.mxu0 0.0
        %2027 = vmatprep.subr.mxu0 0.0
        %2028 = vmatpush1.xpose.msra.mxu0 0.0
        %2029 = vmatprep.subr.mxu0 0.0
        %2030 = vmatpush1.xpose.msra.mxu0 0.0
        %2031 = vmatprep.subr.mxu0 0.0
        %2032 = vmatpush1.xpose.msra.mxu0 0.0
        %2033 = vmatprep.subr.mxu0 0.0
        %2034 = vmatpush1.xpose.msra.mxu0 0.0
        %2035 = vmatprep.subr.mxu0 0.0
        %2036 = vmatpush1.xpose.msra.mxu0 0.0
        %2037 = vmatprep.subr.mxu0 0.0
        %2038 = vmatpush1.xpose.msra.mxu0 0.0
        %2039 = vmatprep.subr.mxu0 0.0
        %2040 = vmatpush1.xpose.msra.mxu0 0.0
        %2041 = vmatprep.subr.mxu0 0.0
        %2042 = vmatpush1.xpose.msra.mxu0 0.0
        %2043 = vmatprep.subr.mxu0 0.0
        %2044 = vmatpush1.xpose.msra.mxu0 0.0
        %2045 = vmatprep.mubr.f32.mxu0 0.0
        %2046 = vmatmul.mubr.f32.gmra.mrb[0].mxu0 %v1957
        %v2047 = vpop.f32.mrb[0].mxu0
        %v2048 = vadd.f32 0.0, %v2047
        %v2049 = vpop.f32.mrb[0].mxu0
        %2050 = vmatprep.mubr.f32.mxu0 0.0
        %2051 = vmatmul.mubr.f32.gmra.mrb[0].mxu0 %v1959
        %v2052 = vpop.f32.mrb[0].mxu0
        %v2053 = vadd.f32 0.0, %v2052
        %v2054 = vpop.f32.mrb[0].mxu0
        %2055 = vmatprep.mubr.f32.mxu0 0.0
        %2056 = vmatmul.mubr.f32.gmra.mrb[0].mxu0 %v1961
        %v2057 = vpop.f32.mrb[0].mxu0
        %v2058 = vadd.f32 0.0, %v2057
        %v2059 = vpop.f32.mrb[0].mxu0
        %2060 = vmatprep.mubr.f32.mxu0 0.0
        %2061 = vmatmul.mubr.f32.gmra.mrb[0].mxu0 %v1963
        %v2062 = vpop.f32.mrb[0].mxu0
        %v2063 = vadd.f32 0.0, %v2062
        %v2064 = vpop.f32.mrb[0].mxu0
        %2065 = vdwg.mxu0
        %v2066 = vsel %vm1266, %v2048, -inf
        %2067 = vmax.xlane.f32.xlu0 %v2066
        %v2068 = vpop.xlane.xlu0 %2067
        %v2069 = vsel %vm1266, %v2053, -inf
        %2070 = vmax.xlane.f32.xlu0 %v2069
        %v2071 = vpop.xlane.xlu0 %2070
        %v2072 = vsel %vm1266, %v2058, -inf
        %2073 = vmax.xlane.f32.xlu0 %v2072
        %v2074 = vpop.xlane.xlu0 %2073
        %v2075 = vsel %vm1266, %v2063, -inf
        %2076 = vmax.xlane.f32.xlu0 %v2075
        %v2077 = vpop.xlane.xlu0 %2076
        %v2078 = vsub.f32 %v2048, %v2068
        %v2079 = vsub.f32 %v2053, %v2071
        %v2080 = vsub.f32 %v2058, %v2074
        %v2081 = vsub.f32 %v2063, %v2077
        %v2082 = vmul.f32 %v2078, 1.442695
        %v2083 = vpow.pop %v2082
        %v2084 = vmul.f32 %v2079, 1.442695
        %v2085 = vpow.pop %v2084
        %v2086 = vmul.f32 %v2080, 1.442695
        %v2087 = vpow.pop %v2086
        %v2088 = vmul.f32 %v2081, 1.442695
        %v2089 = vpow.pop %v2088
        %v2090 = vsel %vm1266, %v2083, 0.0
        %2091 = vadd.xlane.f32.xlu0 %v2090
        %v2092 = vpop.xlane.xlu0 %2091
        %v2093 = vsel %vm1266, %v2085, 0.0
        %2094 = vadd.xlane.f32.xlu0 %v2093
        %v2095 = vpop.xlane.xlu0 %2094
        %v2096 = vsel %vm1266, %v2087, 0.0
        %2097 = vadd.xlane.f32.xlu0 %v2096
        %v2098 = vpop.xlane.xlu0 %2097
        %v2099 = vsel %vm1266, %v2089, 0.0
        %2100 = vadd.xlane.f32.xlu0 %v2099
        %v2101 = vpop.xlane.xlu0 %2100
        %2102 = vrot.lane.b32.xlu0 %v1098, 64
        %v2103 = vpop.permute.xlu0 %2102
        %2104 = vrot.lane.b32.xlu0 %v1104, 64
        %v2105 = vpop.permute.xlu0 %2104
        %2106 = vrot.lane.b32.xlu0 %v1110, 64
        %v2107 = vpop.permute.xlu0 %2106
        %2108 = vrot.lane.b32.xlu0 %v1116, 64
        %v2109 = vpop.permute.xlu0 %2108
        %2110 = vrot.lane.b32.xlu0 %v1122, 64
        %v2111 = vpop.permute.xlu0 %2110
        %2112 = vrot.lane.b32.xlu0 %v1128, 64
        %v2113 = vpop.permute.xlu0 %2112
        %2114 = vrot.lane.b32.xlu0 %v1134, 64
        %v2115 = vpop.permute.xlu0 %2114
        %2116 = vrot.lane.b32.xlu0 %v1140, 64
        %v2117 = vpop.permute.xlu0 %2116
        %v2127 = vsel %vm1266, %v2083, 0
        %v2130 = vsel %vm1266, %v2085, 0
        %v2133 = vsel %vm1266, %v2087, 0
        %v2136 = vsel %vm1266, %v2089, 0
        %2138 = vmatprep.subr.mxu0 0.0
        %2139 = vmatpush1.msra.mxu0 %v2103
        %2140 = vmatprep.subr.mxu0 0.0
        %2141 = vmatpush1.msra.mxu0 %v2105
        %2142 = vmatprep.subr.mxu0 0.0
        %2143 = vmatpush1.msra.mxu0 %v2107
        %2144 = vmatprep.subr.mxu0 0.0
        %2145 = vmatpush1.msra.mxu0 %v2109
        %2146 = vmatprep.subr.mxu0 0.0
        %2147 = vmatpush1.msra.mxu0 %v2111
        %2148 = vmatprep.subr.mxu0 0.0
        %2149 = vmatpush1.msra.mxu0 %v2113
        %2150 = vmatprep.subr.mxu0 0.0
        %2151 = vmatpush1.msra.mxu0 %v2115
        %2152 = vmatprep.subr.mxu0 0.0
        %2153 = vmatpush1.msra.mxu0 %v2117
        %2154 = vmatprep.subr.mxu0 0.0
        %2155 = vmatpush1.msra.mxu0 0.0
        %2156 = vmatprep.subr.mxu0 0.0
        %2157 = vmatpush1.msra.mxu0 0.0
        %2158 = vmatprep.subr.mxu0 0.0
        %2159 = vmatpush1.msra.mxu0 0.0
        %2160 = vmatprep.subr.mxu0 0.0
        %2161 = vmatpush1.msra.mxu0 0.0
        %2162 = vmatprep.subr.mxu0 0.0
        %2163 = vmatpush1.msra.mxu0 0.0
        %2164 = vmatprep.subr.mxu0 0.0
        %2165 = vmatpush1.msra.mxu0 0.0
        %2166 = vmatprep.subr.mxu0 0.0
        %2167 = vmatpush1.msra.mxu0 0.0
        %2168 = vmatprep.subr.mxu0 0.0
        %2169 = vmatpush1.msra.mxu0 0.0
        %2170 = vmatprep.subr.mxu0 0.0
        %2171 = vmatpush1.msra.mxu0 0.0
        %2172 = vmatprep.subr.mxu0 0.0
        %2173 = vmatpush1.msra.mxu0 0.0
        %2174 = vmatprep.subr.mxu0 0.0
        %2175 = vmatpush1.msra.mxu0 0.0
        %2176 = vmatprep.subr.mxu0 0.0
        %2177 = vmatpush1.msra.mxu0 0.0
        %2178 = vmatprep.subr.mxu0 0.0
        %2179 = vmatpush1.msra.mxu0 0.0
        %2180 = vmatprep.subr.mxu0 0.0
        %2181 = vmatpush1.msra.mxu0 0.0
        %2182 = vmatprep.subr.mxu0 0.0
        %2183 = vmatpush1.msra.mxu0 0.0
        %2184 = vmatprep.subr.mxu0 0.0
        %2185 = vmatpush1.msra.mxu0 0.0
        %2186 = vmatprep.subr.mxu0 0.0
        %2187 = vmatpush1.msra.mxu0 0.0
        %2188 = vmatprep.subr.mxu0 0.0
        %2189 = vmatpush1.msra.mxu0 0.0
        %2190 = vmatprep.subr.mxu0 0.0
        %2191 = vmatpush1.msra.mxu0 0.0
        %2192 = vmatprep.subr.mxu0 0.0
        %2193 = vmatpush1.msra.mxu0 0.0
        %2194 = vmatprep.subr.mxu0 0.0
        %2195 = vmatpush1.msra.mxu0 0.0
        %2196 = vmatprep.subr.mxu0 0.0
        %2197 = vmatpush1.msra.mxu0 0.0
        %2198 = vmatprep.subr.mxu0 0.0
        %2199 = vmatpush1.msra.mxu0 0.0
        %2200 = vmatprep.subr.mxu0 0.0
        %2201 = vmatpush1.msra.mxu0 0.0
        %2202 = vmatprep.mubr.f32.mxu0 0.0
        %2203 = vmatmul.mubr.f32.gmra.mrb[0].mxu0 %v2127
        %v2204 = vpop.f32.mrb[0].mxu0
        %v2205 = vadd.f32 0.0, %v2204
        %v2206 = vpop.f32.mrb[0].mxu0
        %2207 = vmatprep.mubr.f32.mxu0 0.0
        %2208 = vmatmul.mubr.f32.gmra.mrb[0].mxu0 %v2130
        %v2209 = vpop.f32.mrb[0].mxu0
        %v2210 = vadd.f32 0.0, %v2209
        %v2211 = vpop.f32.mrb[0].mxu0
        %2212 = vmatprep.mubr.f32.mxu0 0.0
        %2213 = vmatmul.mubr.f32.gmra.mrb[0].mxu0 %v2133
        %v2214 = vpop.f32.mrb[0].mxu0
        %v2215 = vadd.f32 0.0, %v2214
        %v2216 = vpop.f32.mrb[0].mxu0
        %2217 = vmatprep.mubr.f32.mxu0 0.0
        %2218 = vmatmul.mubr.f32.gmra.mrb[0].mxu0 %v2136
        %v2219 = vpop.f32.mrb[0].mxu0
        %v2220 = vadd.f32 0.0, %v2219
        %v2221 = vpop.f32.mrb[0].mxu0
        %2222 = vdwg.mxu0
        %v2223 = vrcp.pop %v2092
        %v2224 = vrcp.pop %v2095
        %v2225 = vrcp.pop %v2098
        %v2226 = vrcp.pop %v2101
        %v2227 = vmul.f32 %v2205, %v2223
        %v2228 = vmul.f32 %v2210, %v2224
        %v2229 = vmul.f32 %v2215, %v2225
        %v2230 = vmul.f32 %v2220, %v2226
        %s2231 = scalar_lea.vmem [#allocation13], 128
        %v2232 = vld [vmem:[%s2231] sm:$0xff]
        %v2233 = vld [vmem:[%s2231 + $0x8] sm:$0xff]
        %v2234 = vld [vmem:[%s2231 + $0x10] sm:$0xff]
        %v2235 = vld [vmem:[%s2231 + $0x18] sm:$0xff]
        %v2236 = vld [vmem:[%s2231 + $0x20] sm:$0xff]
        %v2237 = vld [vmem:[%s2231 + $0x28] sm:$0xff]
        %v2238 = vld [vmem:[%s2231 + $0x30] sm:$0xff]
        %v2239 = vld [vmem:[%s2231 + $0x38] sm:$0xff]
        %v2241 = vsel %vm1144, %v2227, 0
        %v2244 = vsel %vm1144, %v2228, 0
        %v2247 = vsel %vm1144, %v2229, 0
        %v2250 = vsel %vm1144, %v2230, 0
        %2252 = vmatprep.subr.mxu0 %v2233
        %2253 = vmatpush1.msra.mxu0 %v2232
        %2254 = vmatprep.subr.mxu0 %v2235
        %2255 = vmatpush1.msra.mxu0 %v2234
        %2256 = vmatprep.subr.mxu0 %v2237
        %2257 = vmatpush1.msra.mxu0 %v2236
        %2258 = vmatprep.subr.mxu0 %v2239
        %2259 = vmatpush1.msra.mxu0 %v2238
        %2260 = vmatprep.subr.mxu0 0.0
        %2261 = vmatpush1.msra.mxu0 0.0
        %2262 = vmatprep.subr.mxu0 0.0
        %2263 = vmatpush1.msra.mxu0 0.0
        %2264 = vmatprep.subr.mxu0 0.0
        %2265 = vmatpush1.msra.mxu0 0.0
        %2266 = vmatprep.subr.mxu0 0.0
        %2267 = vmatpush1.msra.mxu0 0.0
        %2268 = vmatprep.subr.mxu0 0.0
        %2269 = vmatpush1.msra.mxu0 0.0
        %2270 = vmatprep.subr.mxu0 0.0
        %2271 = vmatpush1.msra.mxu0 0.0
        %2272 = vmatprep.subr.mxu0 0.0
        %2273 = vmatpush1.msra.mxu0 0.0
        %2274 = vmatprep.subr.mxu0 0.0
        %2275 = vmatpush1.msra.mxu0 0.0
        %2276 = vmatprep.subr.mxu0 0.0
        %2277 = vmatpush1.msra.mxu0 0.0
        %2278 = vmatprep.subr.mxu0 0.0
        %2279 = vmatpush1.msra.mxu0 0.0
        %2280 = vmatprep.subr.mxu0 0.0
        %2281 = vmatpush1.msra.mxu0 0.0
        %2282 = vmatprep.subr.mxu0 0.0
        %2283 = vmatpush1.msra.mxu0 0.0
        %2284 = vmatprep.subr.mxu0 0.0
        %2285 = vmatpush1.msra.mxu0 0.0
        %2286 = vmatprep.subr.mxu0 0.0
        %2287 = vmatpush1.msra.mxu0 0.0
        %2288 = vmatprep.subr.mxu0 0.0
        %2289 = vmatpush1.msra.mxu0 0.0
        %2290 = vmatprep.subr.mxu0 0.0
        %2291 = vmatpush1.msra.mxu0 0.0
        %2292 = vmatprep.subr.mxu0 0.0
        %2293 = vmatpush1.msra.mxu0 0.0
        %2294 = vmatprep.subr.mxu0 0.0
        %2295 = vmatpush1.msra.mxu0 0.0
        %2296 = vmatprep.subr.mxu0 0.0
        %2297 = vmatpush1.msra.mxu0 0.0
        %2298 = vmatprep.subr.mxu0 0.0
        %2299 = vmatpush1.msra.mxu0 0.0
        %2300 = vmatprep.subr.mxu0 0.0
        %2301 = vmatpush1.msra.mxu0 0.0
        %2302 = vmatprep.subr.mxu0 0.0
        %2303 = vmatpush1.msra.mxu0 0.0
        %2304 = vmatprep.subr.mxu0 0.0
        %2305 = vmatpush1.msra.mxu0 0.0
        %2306 = vmatprep.subr.mxu0 0.0
        %2307 = vmatpush1.msra.mxu0 0.0
        %2308 = vmatprep.subr.mxu0 0.0
        %2309 = vmatpush1.msra.mxu0 0.0
        %2310 = vmatprep.subr.mxu0 0.0
        %2311 = vmatpush1.msra.mxu0 0.0
        %2312 = vmatprep.subr.mxu0 0.0
        %2313 = vmatpush1.msra.mxu0 0.0
        %2314 = vmatprep.subr.mxu0 0.0
        %2315 = vmatpush1.msra.mxu0 0.0
        %2316 = vmatprep.mubr.f32.mxu0 0.0
        %2317 = vmatmul.mubr.f32.gmra.mrb[0].mxu0 %v2241
        %v2318 = vpop.f32.mrb[0].mxu0
        %v2319 = vadd.f32 0.0, %v2318
        %v2320 = vpop.f32.mrb[0].mxu0
        %v2321 = vadd.f32 0.0, %v2320
        %2322 = vmatprep.mubr.f32.mxu0 0.0
        %2323 = vmatmul.mubr.f32.gmra.mrb[0].mxu0 %v2244
        %v2324 = vpop.f32.mrb[0].mxu0
        %v2325 = vadd.f32 0.0, %v2324
        %v2326 = vpop.f32.mrb[0].mxu0
        %v2327 = vadd.f32 0.0, %v2326
        %2328 = vmatprep.mubr.f32.mxu0 0.0
        %2329 = vmatmul.mubr.f32.gmra.mrb[0].mxu0 %v2247
        %v2330 = vpop.f32.mrb[0].mxu0
        %v2331 = vadd.f32 0.0, %v2330
        %v2332 = vpop.f32.mrb[0].mxu0
        %v2333 = vadd.f32 0.0, %v2332
        %2334 = vmatprep.mubr.f32.mxu0 0.0
        %2335 = vmatmul.mubr.f32.gmra.mrb[0].mxu0 %v2250
        %v2336 = vpop.f32.mrb[0].mxu0
        %v2337 = vadd.f32 0.0, %v2336
        %v2338 = vpop.f32.mrb[0].mxu0
        %v2339 = vadd.f32 0.0, %v2338
        %2340 = vdwg.mxu0
        %v2341 = vadd.f32 %v1911, %v2319
        %v2342 = vadd.f32 %v1913, %v2321
        %v2343 = vadd.f32 %v1917, %v2325
        %v2344 = vadd.f32 %v1919, %v2327
        %v2345 = vadd.f32 %v1923, %v2331
        %v2346 = vadd.f32 %v1925, %v2333
        %v2347 = vadd.f32 %v1929, %v2337
        %v2348 = vadd.f32 %v1931, %v2339
        %2349 = vrot.lane.b32.xlu0 %v712, 32
        %v2350 = vpop.permute.xlu0 %2349
        %2351 = vrot.lane.b32.xlu0 %v718, 32
        %v2352 = vpop.permute.xlu0 %2351
        %2353 = vrot.lane.b32.xlu0 %v724, 32
        %v2354 = vpop.permute.xlu0 %2353
        %2355 = vrot.lane.b32.xlu0 %v730, 32
        %v2356 = vpop.permute.xlu0 %2355
        %2357 = vrot.lane.b32.xlu0 %v893, 32
        %v2358 = vpop.permute.xlu0 %2357
        %2359 = vrot.lane.b32.xlu0 %v899, 32
        %v2360 = vpop.permute.xlu0 %2359
        %2361 = vrot.lane.b32.xlu0 %v905, 32
        %v2362 = vpop.permute.xlu0 %2361
        %2363 = vrot.lane.b32.xlu0 %v911, 32
        %v2364 = vpop.permute.xlu0 %2363
        %2365 = vrot.lane.b32.xlu0 %v917, 32
        %v2366 = vpop.permute.xlu0 %2365
        %2367 = vrot.lane.b32.xlu0 %v923, 32
        %v2368 = vpop.permute.xlu0 %2367
        %2369 = vrot.lane.b32.xlu0 %v929, 32
        %v2370 = vpop.permute.xlu0 %2369
        %2371 = vrot.lane.b32.xlu0 %v935, 32
        %v2372 = vpop.permute.xlu0 %2371
        %v2373 = vsel %vm1144, %v2350, 0
        %v2375 = vsel %vm1144, %v2352, 0
        %v2377 = vsel %vm1144, %v2354, 0
        %v2379 = vsel %vm1144, %v2356, 0
        %v2381 = vsel %vm1144, %v2358, 0
        %v2383 = vsel %vm1144, %v2360, 0
        %v2385 = vsel %vm1144, %v2362, 0
        %v2387 = vsel %vm1144, %v2364, 0
        %v2389 = vsel %vm1144, %v2366, 0
        %v2391 = vsel %vm1144, %v2368, 0
        %v2393 = vsel %vm1144, %v2370, 0
        %v2395 = vsel %vm1144, %v2372, 0
        %2397 = vmatprep.subr.mxu0 0.0
        %2398 = vmatpush1.xpose.msra.mxu0 %v2381
        %2399 = vmatprep.subr.mxu0 0.0
        %2400 = vmatpush1.xpose.msra.mxu0 %v2383
        %2401 = vmatprep.subr.mxu0 0.0
        %2402 = vmatpush1.xpose.msra.mxu0 %v2385
        %2403 = vmatprep.subr.mxu0 0.0
        %2404 = vmatpush1.xpose.msra.mxu0 %v2387
        %2405 = vmatprep.subr.mxu0 0.0
        %2406 = vmatpush1.xpose.msra.mxu0 %v2389
        %2407 = vmatprep.subr.mxu0 0.0
        %2408 = vmatpush1.xpose.msra.mxu0 %v2391
        %2409 = vmatprep.subr.mxu0 0.0
        %2410 = vmatpush1.xpose.msra.mxu0 %v2393
        %2411 = vmatprep.subr.mxu0 0.0
        %2412 = vmatpush1.xpose.msra.mxu0 %v2395
        %2413 = vmatprep.subr.mxu0 0.0
        %2414 = vmatpush1.xpose.msra.mxu0 0.0
        %2415 = vmatprep.subr.mxu0 0.0
        %2416 = vmatpush1.xpose.msra.mxu0 0.0
        %2417 = vmatprep.subr.mxu0 0.0
        %2418 = vmatpush1.xpose.msra.mxu0 0.0
        %2419 = vmatprep.subr.mxu0 0.0
        %2420 = vmatpush1.xpose.msra.mxu0 0.0
        %2421 = vmatprep.subr.mxu0 0.0
        %2422 = vmatpush1.xpose.msra.mxu0 0.0
        %2423 = vmatprep.subr.mxu0 0.0
        %2424 = vmatpush1.xpose.msra.mxu0 0.0
        %2425 = vmatprep.subr.mxu0 0.0
        %2426 = vmatpush1.xpose.msra.mxu0 0.0
        %2427 = vmatprep.subr.mxu0 0.0
        %2428 = vmatpush1.xpose.msra.mxu0 0.0
        %2429 = vmatprep.subr.mxu0 0.0
        %2430 = vmatpush1.xpose.msra.mxu0 0.0
        %2431 = vmatprep.subr.mxu0 0.0
        %2432 = vmatpush1.xpose.msra.mxu0 0.0
        %2433 = vmatprep.subr.mxu0 0.0
        %2434 = vmatpush1.xpose.msra.mxu0 0.0
        %2435 = vmatprep.subr.mxu0 0.0
        %2436 = vmatpush1.xpose.msra.mxu0 0.0
        %2437 = vmatprep.subr.mxu0 0.0
        %2438 = vmatpush1.xpose.msra.mxu0 0.0
        %2439 = vmatprep.subr.mxu0 0.0
        %2440 = vmatpush1.xpose.msra.mxu0 0.0
        %2441 = vmatprep.subr.mxu0 0.0
        %2442 = vmatpush1.xpose.msra.mxu0 0.0
        %2443 = vmatprep.subr.mxu0 0.0
        %2444 = vmatpush1.xpose.msra.mxu0 0.0
        %2445 = vmatprep.subr.mxu0 0.0
        %2446 = vmatpush1.xpose.msra.mxu0 0.0
        %2447 = vmatprep.subr.mxu0 0.0
        %2448 = vmatpush1.xpose.msra.mxu0 0.0
        %2449 = vmatprep.subr.mxu0 0.0
        %2450 = vmatpush1.xpose.msra.mxu0 0.0
        %2451 = vmatprep.subr.mxu0 0.0
        %2452 = vmatpush1.xpose.msra.mxu0 0.0
        %2453 = vmatprep.subr.mxu0 0.0
        %2454 = vmatpush1.xpose.msra.mxu0 0.0
        %2455 = vmatprep.subr.mxu0 0.0
        %2456 = vmatpush1.xpose.msra.mxu0 0.0
        %2457 = vmatprep.subr.mxu0 0.0
        %2458 = vmatpush1.xpose.msra.mxu0 0.0
        %2459 = vmatprep.subr.mxu0 0.0
        %2460 = vmatpush1.xpose.msra.mxu0 0.0
        %2461 = vmatprep.mubr.f32.mxu0 0.0
        %2462 = vmatmul.mubr.f32.gmra.mrb[0].mxu0 %v2373
        %v2463 = vpop.f32.mrb[0].mxu0
        %v2464 = vadd.f32 0.0, %v2463
        %v2465 = vpop.f32.mrb[0].mxu0
        %2466 = vmatprep.mubr.f32.mxu0 0.0
        %2467 = vmatmul.mubr.f32.gmra.mrb[0].mxu0 %v2375
        %v2468 = vpop.f32.mrb[0].mxu0
        %v2469 = vadd.f32 0.0, %v2468
        %v2470 = vpop.f32.mrb[0].mxu0
        %2471 = vmatprep.mubr.f32.mxu0 0.0
        %2472 = vmatmul.mubr.f32.gmra.mrb[0].mxu0 %v2377
        %v2473 = vpop.f32.mrb[0].mxu0
        %v2474 = vadd.f32 0.0, %v2473
        %v2475 = vpop.f32.mrb[0].mxu0
        %2476 = vmatprep.mubr.f32.mxu0 0.0
        %2477 = vmatmul.mubr.f32.gmra.mrb[0].mxu0 %v2379
        %v2478 = vpop.f32.mrb[0].mxu0
        %v2479 = vadd.f32 0.0, %v2478
        %v2480 = vpop.f32.mrb[0].mxu0
        %2481 = vdwg.mxu0
        %v2482 = vsel %vm1266, %v2464, -inf
        %2483 = vmax.xlane.f32.xlu0 %v2482
        %v2484 = vpop.xlane.xlu0 %2483
        %v2485 = vsel %vm1266, %v2469, -inf
        %2486 = vmax.xlane.f32.xlu0 %v2485
        %v2487 = vpop.xlane.xlu0 %2486
        %v2488 = vsel %vm1266, %v2474, -inf
        %2489 = vmax.xlane.f32.xlu0 %v2488
        %v2490 = vpop.xlane.xlu0 %2489
        %v2491 = vsel %vm1266, %v2479, -inf
        %2492 = vmax.xlane.f32.xlu0 %v2491
        %v2493 = vpop.xlane.xlu0 %2492
        %v2494 = vsub.f32 %v2464, %v2484
        %v2495 = vsub.f32 %v2469, %v2487
        %v2496 = vsub.f32 %v2474, %v2490
        %v2497 = vsub.f32 %v2479, %v2493
        %v2498 = vmul.f32 %v2494, 1.442695
        %v2499 = vpow.pop %v2498
        %v2500 = vmul.f32 %v2495, 1.442695
        %v2501 = vpow.pop %v2500
        %v2502 = vmul.f32 %v2496, 1.442695
        %v2503 = vpow.pop %v2502
        %v2504 = vmul.f32 %v2497, 1.442695
        %v2505 = vpow.pop %v2504
        %v2506 = vsel %vm1266, %v2499, 0.0
        %2507 = vadd.xlane.f32.xlu0 %v2506
        %v2508 = vpop.xlane.xlu0 %2507
        %v2509 = vsel %vm1266, %v2501, 0.0
        %2510 = vadd.xlane.f32.xlu0 %v2509
        %v2511 = vpop.xlane.xlu0 %2510
        %v2512 = vsel %vm1266, %v2503, 0.0
        %2513 = vadd.xlane.f32.xlu0 %v2512
        %v2514 = vpop.xlane.xlu0 %2513
        %v2515 = vsel %vm1266, %v2505, 0.0
        %2516 = vadd.xlane.f32.xlu0 %v2515
        %v2517 = vpop.xlane.xlu0 %2516
        %2518 = vrot.lane.b32.xlu0 %v1098, 32
        %v2519 = vpop.permute.xlu0 %2518
        %2520 = vrot.lane.b32.xlu0 %v1104, 32
        %v2521 = vpop.permute.xlu0 %2520
        %2522 = vrot.lane.b32.xlu0 %v1110, 32
        %v2523 = vpop.permute.xlu0 %2522
        %2524 = vrot.lane.b32.xlu0 %v1116, 32
        %v2525 = vpop.permute.xlu0 %2524
        %2526 = vrot.lane.b32.xlu0 %v1122, 32
        %v2527 = vpop.permute.xlu0 %2526
        %2528 = vrot.lane.b32.xlu0 %v1128, 32
        %v2529 = vpop.permute.xlu0 %2528
        %2530 = vrot.lane.b32.xlu0 %v1134, 32
        %v2531 = vpop.permute.xlu0 %2530
        %2532 = vrot.lane.b32.xlu0 %v1140, 32
        %v2533 = vpop.permute.xlu0 %2532
        %v2543 = vsel %vm1266, %v2499, 0
        %v2546 = vsel %vm1266, %v2501, 0
        %v2549 = vsel %vm1266, %v2503, 0
        %v2552 = vsel %vm1266, %v2505, 0
        %2554 = vmatprep.subr.mxu0 0.0
        %2555 = vmatpush1.msra.mxu0 %v2519
        %2556 = vmatprep.subr.mxu0 0.0
        %2557 = vmatpush1.msra.mxu0 %v2521
        %2558 = vmatprep.subr.mxu0 0.0
        %2559 = vmatpush1.msra.mxu0 %v2523
        %2560 = vmatprep.subr.mxu0 0.0
        %2561 = vmatpush1.msra.mxu0 %v2525
        %2562 = vmatprep.subr.mxu0 0.0
        %2563 = vmatpush1.msra.mxu0 %v2527
        %2564 = vmatprep.subr.mxu0 0.0
        %2565 = vmatpush1.msra.mxu0 %v2529
        %2566 = vmatprep.subr.mxu0 0.0
        %2567 = vmatpush1.msra.mxu0 %v2531
        %2568 = vmatprep.subr.mxu0 0.0
        %2569 = vmatpush1.msra.mxu0 %v2533
        %2570 = vmatprep.subr.mxu0 0.0
        %2571 = vmatpush1.msra.mxu0 0.0
        %2572 = vmatprep.subr.mxu0 0.0
        %2573 = vmatpush1.msra.mxu0 0.0
        %2574 = vmatprep.subr.mxu0 0.0
        %2575 = vmatpush1.msra.mxu0 0.0
        %2576 = vmatprep.subr.mxu0 0.0
        %2577 = vmatpush1.msra.mxu0 0.0
        %2578 = vmatprep.subr.mxu0 0.0
        %2579 = vmatpush1.msra.mxu0 0.0
        %2580 = vmatprep.subr.mxu0 0.0
        %2581 = vmatpush1.msra.mxu0 0.0
        %2582 = vmatprep.subr.mxu0 0.0
        %2583 = vmatpush1.msra.mxu0 0.0
        %2584 = vmatprep.subr.mxu0 0.0
        %2585 = vmatpush1.msra.mxu0 0.0
        %2586 = vmatprep.subr.mxu0 0.0
        %2587 = vmatpush1.msra.mxu0 0.0
        %2588 = vmatprep.subr.mxu0 0.0
        %2589 = vmatpush1.msra.mxu0 0.0
        %2590 = vmatprep.subr.mxu0 0.0
        %2591 = vmatpush1.msra.mxu0 0.0
        %2592 = vmatprep.subr.mxu0 0.0
        %2593 = vmatpush1.msra.mxu0 0.0
        %2594 = vmatprep.subr.mxu0 0.0
        %2595 = vmatpush1.msra.mxu0 0.0
        %2596 = vmatprep.subr.mxu0 0.0
        %2597 = vmatpush1.msra.mxu0 0.0
        %2598 = vmatprep.subr.mxu0 0.0
        %2599 = vmatpush1.msra.mxu0 0.0
        %2600 = vmatprep.subr.mxu0 0.0
        %2601 = vmatpush1.msra.mxu0 0.0
        %2602 = vmatprep.subr.mxu0 0.0
        %2603 = vmatpush1.msra.mxu0 0.0
        %2604 = vmatprep.subr.mxu0 0.0
        %2605 = vmatpush1.msra.mxu0 0.0
        %2606 = vmatprep.subr.mxu0 0.0
        %2607 = vmatpush1.msra.mxu0 0.0
        %2608 = vmatprep.subr.mxu0 0.0
        %2609 = vmatpush1.msra.mxu0 0.0
        %2610 = vmatprep.subr.mxu0 0.0
        %2611 = vmatpush1.msra.mxu0 0.0
        %2612 = vmatprep.subr.mxu0 0.0
        %2613 = vmatpush1.msra.mxu0 0.0
        %2614 = vmatprep.subr.mxu0 0.0
        %2615 = vmatpush1.msra.mxu0 0.0
        %2616 = vmatprep.subr.mxu0 0.0
        %2617 = vmatpush1.msra.mxu0 0.0
        %2618 = vmatprep.mubr.f32.mxu0 0.0
        %2619 = vmatmul.mubr.f32.gmra.mrb[0].mxu0 %v2543
        %v2620 = vpop.f32.mrb[0].mxu0
        %v2621 = vadd.f32 0.0, %v2620
        %v2622 = vpop.f32.mrb[0].mxu0
        %2623 = vmatprep.mubr.f32.mxu0 0.0
        %2624 = vmatmul.mubr.f32.gmra.mrb[0].mxu0 %v2546
        %v2625 = vpop.f32.mrb[0].mxu0
        %v2626 = vadd.f32 0.0, %v2625
        %v2627 = vpop.f32.mrb[0].mxu0
        %2628 = vmatprep.mubr.f32.mxu0 0.0
        %2629 = vmatmul.mubr.f32.gmra.mrb[0].mxu0 %v2549
        %v2630 = vpop.f32.mrb[0].mxu0
        %v2631 = vadd.f32 0.0, %v2630
        %v2632 = vpop.f32.mrb[0].mxu0
        %2633 = vmatprep.mubr.f32.mxu0 0.0
        %2634 = vmatmul.mubr.f32.gmra.mrb[0].mxu0 %v2552
        %v2635 = vpop.f32.mrb[0].mxu0
        %v2636 = vadd.f32 0.0, %v2635
        %v2637 = vpop.f32.mrb[0].mxu0
        %2638 = vdwg.mxu0
        %v2639 = vrcp.pop %v2508
        %v2640 = vrcp.pop %v2511
        %v2641 = vrcp.pop %v2514
        %v2642 = vrcp.pop %v2517
        %v2643 = vmul.f32 %v2621, %v2639
        %v2644 = vmul.f32 %v2626, %v2640
        %v2645 = vmul.f32 %v2631, %v2641
        %v2646 = vmul.f32 %v2636, %v2642
        %s2647 = scalar_lea.vmem [#allocation13], 192
        %v2648 = vld [vmem:[%s2647] sm:$0xff]
        %v2649 = vld [vmem:[%s2647 + $0x8] sm:$0xff]
        %v2650 = vld [vmem:[%s2647 + $0x10] sm:$0xff]
        %v2651 = vld [vmem:[%s2647 + $0x18] sm:$0xff]
        %v2652 = vld [vmem:[%s2647 + $0x20] sm:$0xff]
        %v2653 = vld [vmem:[%s2647 + $0x28] sm:$0xff]
        %v2654 = vld [vmem:[%s2647 + $0x30] sm:$0xff]
        %v2655 = vld [vmem:[%s2647 + $0x38] sm:$0xff]
        %v2657 = vsel %vm1144, %v2643, 0
        %v2660 = vsel %vm1144, %v2644, 0
        %v2663 = vsel %vm1144, %v2645, 0
        %v2666 = vsel %vm1144, %v2646, 0
        %2668 = vmatprep.subr.mxu0 %v2649
        %2669 = vmatpush1.msra.mxu0 %v2648
        %2670 = vmatprep.subr.mxu0 %v2651
        %2671 = vmatpush1.msra.mxu0 %v2650
        %2672 = vmatprep.subr.mxu0 %v2653
        %2673 = vmatpush1.msra.mxu0 %v2652
        %2674 = vmatprep.subr.mxu0 %v2655
        %2675 = vmatpush1.msra.mxu0 %v2654
        %2676 = vmatprep.subr.mxu0 0.0
        %2677 = vmatpush1.msra.mxu0 0.0
        %2678 = vmatprep.subr.mxu0 0.0
        %2679 = vmatpush1.msra.mxu0 0.0
        %2680 = vmatprep.subr.mxu0 0.0
        %2681 = vmatpush1.msra.mxu0 0.0
        %2682 = vmatprep.subr.mxu0 0.0
        %2683 = vmatpush1.msra.mxu0 0.0
        %2684 = vmatprep.subr.mxu0 0.0
        %2685 = vmatpush1.msra.mxu0 0.0
        %2686 = vmatprep.subr.mxu0 0.0
        %2687 = vmatpush1.msra.mxu0 0.0
        %2688 = vmatprep.subr.mxu0 0.0
        %2689 = vmatpush1.msra.mxu0 0.0
        %2690 = vmatprep.subr.mxu0 0.0
        %2691 = vmatpush1.msra.mxu0 0.0
        %2692 = vmatprep.subr.mxu0 0.0
        %2693 = vmatpush1.msra.mxu0 0.0
        %2694 = vmatprep.subr.mxu0 0.0
        %2695 = vmatpush1.msra.mxu0 0.0
        %2696 = vmatprep.subr.mxu0 0.0
        %2697 = vmatpush1.msra.mxu0 0.0
        %2698 = vmatprep.subr.mxu0 0.0
        %2699 = vmatpush1.msra.mxu0 0.0
        %2700 = vmatprep.subr.mxu0 0.0
        %2701 = vmatpush1.msra.mxu0 0.0
        %2702 = vmatprep.subr.mxu0 0.0
        %2703 = vmatpush1.msra.mxu0 0.0
        %2704 = vmatprep.subr.mxu0 0.0
        %2705 = vmatpush1.msra.mxu0 0.0
        %2706 = vmatprep.subr.mxu0 0.0
        %2707 = vmatpush1.msra.mxu0 0.0
        %2708 = vmatprep.subr.mxu0 0.0
        %2709 = vmatpush1.msra.mxu0 0.0
        %2710 = vmatprep.subr.mxu0 0.0
        %2711 = vmatpush1.msra.mxu0 0.0
        %2712 = vmatprep.subr.mxu0 0.0
        %2713 = vmatpush1.msra.mxu0 0.0
        %2714 = vmatprep.subr.mxu0 0.0
        %2715 = vmatpush1.msra.mxu0 0.0
        %2716 = vmatprep.subr.mxu0 0.0
        %2717 = vmatpush1.msra.mxu0 0.0
        %2718 = vmatprep.subr.mxu0 0.0
        %2719 = vmatpush1.msra.mxu0 0.0
        %2720 = vmatprep.subr.mxu0 0.0
        %2721 = vmatpush1.msra.mxu0 0.0
        %2722 = vmatprep.subr.mxu0 0.0
        %2723 = vmatpush1.msra.mxu0 0.0
        %2724 = vmatprep.subr.mxu0 0.0
        %2725 = vmatpush1.msra.mxu0 0.0
        %2726 = vmatprep.subr.mxu0 0.0
        %2727 = vmatpush1.msra.mxu0 0.0
        %2728 = vmatprep.subr.mxu0 0.0
        %2729 = vmatpush1.msra.mxu0 0.0
        %2730 = vmatprep.subr.mxu0 0.0
        %2731 = vmatpush1.msra.mxu0 0.0
        %2732 = vmatprep.mubr.f32.mxu0 0.0
        %2733 = vmatmul.mubr.f32.gmra.mrb[0].mxu0 %v2657
        %v2734 = vpop.f32.mrb[0].mxu0
        %v2735 = vadd.f32 0.0, %v2734
        %v2736 = vpop.f32.mrb[0].mxu0
        %v2737 = vadd.f32 0.0, %v2736
        %2738 = vmatprep.mubr.f32.mxu0 0.0
        %2739 = vmatmul.mubr.f32.gmra.mrb[0].mxu0 %v2660
        %v2740 = vpop.f32.mrb[0].mxu0
        %v2741 = vadd.f32 0.0, %v2740
        %v2742 = vpop.f32.mrb[0].mxu0
        %v2743 = vadd.f32 0.0, %v2742
        %2744 = vmatprep.mubr.f32.mxu0 0.0
        %2745 = vmatmul.mubr.f32.gmra.mrb[0].mxu0 %v2663
        %v2746 = vpop.f32.mrb[0].mxu0
        %v2747 = vadd.f32 0.0, %v2746
        %v2748 = vpop.f32.mrb[0].mxu0
        %v2749 = vadd.f32 0.0, %v2748
        %2750 = vmatprep.mubr.f32.mxu0 0.0
        %2751 = vmatmul.mubr.f32.gmra.mrb[0].mxu0 %v2666
        %v2752 = vpop.f32.mrb[0].mxu0
        %v2753 = vadd.f32 0.0, %v2752
        %v2754 = vpop.f32.mrb[0].mxu0
        %v2755 = vadd.f32 0.0, %v2754
        %2756 = vdwg.mxu0
        %v2757 = vadd.f32 %v2341, %v2735
        %v2758 = vadd.f32 %v2342, %v2737
        %v2759 = vadd.f32 %v2343, %v2741
        %v2760 = vadd.f32 %v2344, %v2743
        %v2761 = vadd.f32 %v2345, %v2747
        %v2762 = vadd.f32 %v2346, %v2749
        %v2763 = vadd.f32 %v2347, %v2753
        %v2764 = vadd.f32 %v2348, %v2755
        %v2766 = vsel %vm1144, %v714, 0
        %v2769 = vsel %vm1144, %v720, 0
        %v2772 = vsel %vm1144, %v726, 0
        %v2775 = vsel %vm1144, %v732, 0
        %v2778 = vsel %vm1144, %v895, 0
        %v2781 = vsel %vm1144, %v901, 0
        %v2784 = vsel %vm1144, %v907, 0
        %v2787 = vsel %vm1144, %v913, 0
        %v2790 = vsel %vm1144, %v919, 0
        %v2793 = vsel %vm1144, %v925, 0
        %v2796 = vsel %vm1144, %v931, 0
        %v2799 = vsel %vm1144, %v937, 0
        %2801 = vmatprep.subr.mxu0 0.0
        %2802 = vmatpush1.xpose.msra.mxu0 %v2778
        %2803 = vmatprep.subr.mxu0 0.0
        %2804 = vmatpush1.xpose.msra.mxu0 %v2781
        %2805 = vmatprep.subr.mxu0 0.0
        %2806 = vmatpush1.xpose.msra.mxu0 %v2784
        %2807 = vmatprep.subr.mxu0 0.0
        %2808 = vmatpush1.xpose.msra.mxu0 %v2787
        %2809 = vmatprep.subr.mxu0 0.0
        %2810 = vmatpush1.xpose.msra.mxu0 %v2790
        %2811 = vmatprep.subr.mxu0 0.0
        %2812 = vmatpush1.xpose.msra.mxu0 %v2793
        %2813 = vmatprep.subr.mxu0 0.0
        %2814 = vmatpush1.xpose.msra.mxu0 %v2796
        %2815 = vmatprep.subr.mxu0 0.0
        %2816 = vmatpush1.xpose.msra.mxu0 %v2799
        %2817 = vmatprep.subr.mxu0 0.0
        %2818 = vmatpush1.xpose.msra.mxu0 0.0
        %2819 = vmatprep.subr.mxu0 0.0
        %2820 = vmatpush1.xpose.msra.mxu0 0.0
        %2821 = vmatprep.subr.mxu0 0.0
        %2822 = vmatpush1.xpose.msra.mxu0 0.0
        %2823 = vmatprep.subr.mxu0 0.0
        %2824 = vmatpush1.xpose.msra.mxu0 0.0
        %2825 = vmatprep.subr.mxu0 0.0
        %2826 = vmatpush1.xpose.msra.mxu0 0.0
        %2827 = vmatprep.subr.mxu0 0.0
        %2828 = vmatpush1.xpose.msra.mxu0 0.0
        %2829 = vmatprep.subr.mxu0 0.0
        %2830 = vmatpush1.xpose.msra.mxu0 0.0
        %2831 = vmatprep.subr.mxu0 0.0
        %2832 = vmatpush1.xpose.msra.mxu0 0.0
        %2833 = vmatprep.subr.mxu0 0.0
        %2834 = vmatpush1.xpose.msra.mxu0 0.0
        %2835 = vmatprep.subr.mxu0 0.0
        %2836 = vmatpush1.xpose.msra.mxu0 0.0
        %2837 = vmatprep.subr.mxu0 0.0
        %2838 = vmatpush1.xpose.msra.mxu0 0.0
        %2839 = vmatprep.subr.mxu0 0.0
        %2840 = vmatpush1.xpose.msra.mxu0 0.0
        %2841 = vmatprep.subr.mxu0 0.0
        %2842 = vmatpush1.xpose.msra.mxu0 0.0
        %2843 = vmatprep.subr.mxu0 0.0
        %2844 = vmatpush1.xpose.msra.mxu0 0.0
        %2845 = vmatprep.subr.mxu0 0.0
        %2846 = vmatpush1.xpose.msra.mxu0 0.0
        %2847 = vmatprep.subr.mxu0 0.0
        %2848 = vmatpush1.xpose.msra.mxu0 0.0
        %2849 = vmatprep.subr.mxu0 0.0
        %2850 = vmatpush1.xpose.msra.mxu0 0.0
        %2851 = vmatprep.subr.mxu0 0.0
        %2852 = vmatpush1.xpose.msra.mxu0 0.0
        %2853 = vmatprep.subr.mxu0 0.0
        %2854 = vmatpush1.xpose.msra.mxu0 0.0
        %2855 = vmatprep.subr.mxu0 0.0
        %2856 = vmatpush1.xpose.msra.mxu0 0.0
        %2857 = vmatprep.subr.mxu0 0.0
        %2858 = vmatpush1.xpose.msra.mxu0 0.0
        %2859 = vmatprep.subr.mxu0 0.0
        %2860 = vmatpush1.xpose.msra.mxu0 0.0
        %2861 = vmatprep.subr.mxu0 0.0
        %2862 = vmatpush1.xpose.msra.mxu0 0.0
        %2863 = vmatprep.subr.mxu0 0.0
        %2864 = vmatpush1.xpose.msra.mxu0 0.0
        %2865 = vmatprep.mubr.f32.mxu0 0.0
        %2866 = vmatmul.mubr.f32.gmra.mrb[0].mxu0 %v2766
        %v2867 = vpop.f32.mrb[0].mxu0
        %v2868 = vadd.f32 0.0, %v2867
        %v2869 = vpop.f32.mrb[0].mxu0
        %2870 = vmatprep.mubr.f32.mxu0 0.0
        %2871 = vmatmul.mubr.f32.gmra.mrb[0].mxu0 %v2769
        %v2872 = vpop.f32.mrb[0].mxu0
        %v2873 = vadd.f32 0.0, %v2872
        %v2874 = vpop.f32.mrb[0].mxu0
        %2875 = vmatprep.mubr.f32.mxu0 0.0
        %2876 = vmatmul.mubr.f32.gmra.mrb[0].mxu0 %v2772
        %v2877 = vpop.f32.mrb[0].mxu0
        %v2878 = vadd.f32 0.0, %v2877
        %v2879 = vpop.f32.mrb[0].mxu0
        %2880 = vmatprep.mubr.f32.mxu0 0.0
        %2881 = vmatmul.mubr.f32.gmra.mrb[0].mxu0 %v2775
        %v2882 = vpop.f32.mrb[0].mxu0
        %v2883 = vadd.f32 0.0, %v2882
        %v2884 = vpop.f32.mrb[0].mxu0
        %2885 = vdwg.mxu0
        %v2886 = vsel %vm1266, %v2868, -inf
        %2887 = vmax.xlane.f32.xlu0 %v2886
        %v2888 = vpop.xlane.xlu0 %2887
        %v2889 = vsel %vm1266, %v2873, -inf
        %2890 = vmax.xlane.f32.xlu0 %v2889
        %v2891 = vpop.xlane.xlu0 %2890
        %v2892 = vsel %vm1266, %v2878, -inf
        %2893 = vmax.xlane.f32.xlu0 %v2892
        %v2894 = vpop.xlane.xlu0 %2893
        %v2895 = vsel %vm1266, %v2883, -inf
        %2896 = vmax.xlane.f32.xlu0 %v2895
        %v2897 = vpop.xlane.xlu0 %2896
        %v2898 = vsub.f32 %v2868, %v2888
        %v2899 = vsub.f32 %v2873, %v2891
        %v2900 = vsub.f32 %v2878, %v2894
        %v2901 = vsub.f32 %v2883, %v2897
        %v2902 = vmul.f32 %v2898, 1.442695
        %v2903 = vpow.pop %v2902
        %v2904 = vmul.f32 %v2899, 1.442695
        %v2905 = vpow.pop %v2904
        %v2906 = vmul.f32 %v2900, 1.442695
        %v2907 = vpow.pop %v2906
        %v2908 = vmul.f32 %v2901, 1.442695
        %v2909 = vpow.pop %v2908
        %v2910 = vsel %vm1266, %v2903, 0.0
        %2911 = vadd.xlane.f32.xlu0 %v2910
        %v2912 = vpop.xlane.xlu0 %2911
        %v2913 = vsel %vm1266, %v2905, 0.0
        %2914 = vadd.xlane.f32.xlu0 %v2913
        %v2915 = vpop.xlane.xlu0 %2914
        %v2916 = vsel %vm1266, %v2907, 0.0
        %2917 = vadd.xlane.f32.xlu0 %v2916
        %v2918 = vpop.xlane.xlu0 %2917
        %v2919 = vsel %vm1266, %v2909, 0.0
        %2920 = vadd.xlane.f32.xlu0 %v2919
        %v2921 = vpop.xlane.xlu0 %2920
        %v2923 = vsel %vm1266, %v2903, 0
        %v2926 = vsel %vm1266, %v2905, 0
        %v2929 = vsel %vm1266, %v2907, 0
        %v2932 = vsel %vm1266, %v2909, 0
        %2934 = vmatprep.subr.mxu0 0.0
        %2935 = vmatpush1.msra.mxu0 %v1100
        %2936 = vmatprep.subr.mxu0 0.0
        %2937 = vmatpush1.msra.mxu0 %v1106
        %2938 = vmatprep.subr.mxu0 0.0
        %2939 = vmatpush1.msra.mxu0 %v1112
        %2940 = vmatprep.subr.mxu0 0.0
        %2941 = vmatpush1.msra.mxu0 %v1118
        %2942 = vmatprep.subr.mxu0 0.0
        %2943 = vmatpush1.msra.mxu0 %v1124
        %2944 = vmatprep.subr.mxu0 0.0
        %2945 = vmatpush1.msra.mxu0 %v1130
        %2946 = vmatprep.subr.mxu0 0.0
        %2947 = vmatpush1.msra.mxu0 %v1136
        %2948 = vmatprep.subr.mxu0 0.0
        %2949 = vmatpush1.msra.mxu0 %v1142
        %2950 = vmatprep.subr.mxu0 0.0
        %2951 = vmatpush1.msra.mxu0 0.0
        %2952 = vmatprep.subr.mxu0 0.0
        %2953 = vmatpush1.msra.mxu0 0.0
        %2954 = vmatprep.subr.mxu0 0.0
        %2955 = vmatpush1.msra.mxu0 0.0
        %2956 = vmatprep.subr.mxu0 0.0
        %2957 = vmatpush1.msra.mxu0 0.0
        %2958 = vmatprep.subr.mxu0 0.0
        %2959 = vmatpush1.msra.mxu0 0.0
        %2960 = vmatprep.subr.mxu0 0.0
        %2961 = vmatpush1.msra.mxu0 0.0
        %2962 = vmatprep.subr.mxu0 0.0
        %2963 = vmatpush1.msra.mxu0 0.0
        %2964 = vmatprep.subr.mxu0 0.0
        %2965 = vmatpush1.msra.mxu0 0.0
        %2966 = vmatprep.subr.mxu0 0.0
        %2967 = vmatpush1.msra.mxu0 0.0
        %2968 = vmatprep.subr.mxu0 0.0
        %2969 = vmatpush1.msra.mxu0 0.0
        %2970 = vmatprep.subr.mxu0 0.0
        %2971 = vmatpush1.msra.mxu0 0.0
        %2972 = vmatprep.subr.mxu0 0.0
        %2973 = vmatpush1.msra.mxu0 0.0
        %2974 = vmatprep.subr.mxu0 0.0
        %2975 = vmatpush1.msra.mxu0 0.0
        %2976 = vmatprep.subr.mxu0 0.0
        %2977 = vmatpush1.msra.mxu0 0.0
        %2978 = vmatprep.subr.mxu0 0.0
        %2979 = vmatpush1.msra.mxu0 0.0
        %2980 = vmatprep.subr.mxu0 0.0
        %2981 = vmatpush1.msra.mxu0 0.0
        %2982 = vmatprep.subr.mxu0 0.0
        %2983 = vmatpush1.msra.mxu0 0.0
        %2984 = vmatprep.subr.mxu0 0.0
        %2985 = vmatpush1.msra.mxu0 0.0
        %2986 = vmatprep.subr.mxu0 0.0
        %2987 = vmatpush1.msra.mxu0 0.0
        %2988 = vmatprep.subr.mxu0 0.0
        %2989 = vmatpush1.msra.mxu0 0.0
        %2990 = vmatprep.subr.mxu0 0.0
        %2991 = vmatpush1.msra.mxu0 0.0
        %2992 = vmatprep.subr.mxu0 0.0
        %2993 = vmatpush1.msra.mxu0 0.0
        %2994 = vmatprep.subr.mxu0 0.0
        %2995 = vmatpush1.msra.mxu0 0.0
        %2996 = vmatprep.subr.mxu0 0.0
        %2997 = vmatpush1.msra.mxu0 0.0
        %2998 = vmatprep.mubr.f32.mxu0 0.0
        %2999 = vmatmul.mubr.f32.gmra.mrb[0].mxu0 %v2923
        %v3000 = vpop.f32.mrb[0].mxu0
        %v3001 = vadd.f32 0.0, %v3000
        %v3002 = vpop.f32.mrb[0].mxu0
        %3003 = vmatprep.mubr.f32.mxu0 0.0
        %3004 = vmatmul.mubr.f32.gmra.mrb[0].mxu0 %v2926
        %v3005 = vpop.f32.mrb[0].mxu0
        %v3006 = vadd.f32 0.0, %v3005
        %v3007 = vpop.f32.mrb[0].mxu0
        %3008 = vmatprep.mubr.f32.mxu0 0.0
        %3009 = vmatmul.mubr.f32.gmra.mrb[0].mxu0 %v2929
        %v3010 = vpop.f32.mrb[0].mxu0
        %v3011 = vadd.f32 0.0, %v3010
        %v3012 = vpop.f32.mrb[0].mxu0
        %3013 = vmatprep.mubr.f32.mxu0 0.0
        %3014 = vmatmul.mubr.f32.gmra.mrb[0].mxu0 %v2932
        %v3015 = vpop.f32.mrb[0].mxu0
        %v3016 = vadd.f32 0.0, %v3015
        %v3017 = vpop.f32.mrb[0].mxu0
        %3018 = vdwg.mxu0
        %v3019 = vrcp.pop %v2912
        %v3020 = vrcp.pop %v2915
        %v3021 = vrcp.pop %v2918
        %v3022 = vrcp.pop %v2921
        %v3023 = vmul.f32 %v3001, %v3019
        %v3024 = vmul.f32 %v3006, %v3020
        %v3025 = vmul.f32 %v3011, %v3021
        %v3026 = vmul.f32 %v3016, %v3022
        %s3027 = scalar_lea.vmem [#allocation13], 256
        %v3028 = vld [vmem:[%s3027] sm:$0xff]
        %v3029 = vld [vmem:[%s3027 + $0x8] sm:$0xff]
        %v3030 = vld [vmem:[%s3027 + $0x10] sm:$0xff]
        %v3031 = vld [vmem:[%s3027 + $0x18] sm:$0xff]
        %v3032 = vld [vmem:[%s3027 + $0x20] sm:$0xff]
        %v3033 = vld [vmem:[%s3027 + $0x28] sm:$0xff]
        %v3034 = vld [vmem:[%s3027 + $0x30] sm:$0xff]
        %v3035 = vld [vmem:[%s3027 + $0x38] sm:$0xff]
        %v3037 = vsel %vm1144, %v3023, 0
        %v3040 = vsel %vm1144, %v3024, 0
        %v3043 = vsel %vm1144, %v3025, 0
        %v3046 = vsel %vm1144, %v3026, 0
        %3048 = vmatprep.subr.mxu0 %v3029
        %3049 = vmatpush1.msra.mxu0 %v3028
        %3050 = vmatprep.subr.mxu0 %v3031
        %3051 = vmatpush1.msra.mxu0 %v3030
        %3052 = vmatprep.subr.mxu0 %v3033
        %3053 = vmatpush1.msra.mxu0 %v3032
        %3054 = vmatprep.subr.mxu0 %v3035
        %3055 = vmatpush1.msra.mxu0 %v3034
        %3056 = vmatprep.subr.mxu0 0.0
        %3057 = vmatpush1.msra.mxu0 0.0
        %3058 = vmatprep.subr.mxu0 0.0
        %3059 = vmatpush1.msra.mxu0 0.0
        %3060 = vmatprep.subr.mxu0 0.0
        %3061 = vmatpush1.msra.mxu0 0.0
        %3062 = vmatprep.subr.mxu0 0.0
        %3063 = vmatpush1.msra.mxu0 0.0
        %3064 = vmatprep.subr.mxu0 0.0
        %3065 = vmatpush1.msra.mxu0 0.0
        %3066 = vmatprep.subr.mxu0 0.0
        %3067 = vmatpush1.msra.mxu0 0.0
        %3068 = vmatprep.subr.mxu0 0.0
        %3069 = vmatpush1.msra.mxu0 0.0
        %3070 = vmatprep.subr.mxu0 0.0
        %3071 = vmatpush1.msra.mxu0 0.0
        %3072 = vmatprep.subr.mxu0 0.0
        %3073 = vmatpush1.msra.mxu0 0.0
        %3074 = vmatprep.subr.mxu0 0.0
        %3075 = vmatpush1.msra.mxu0 0.0
        %3076 = vmatprep.subr.mxu0 0.0
        %3077 = vmatpush1.msra.mxu0 0.0
        %3078 = vmatprep.subr.mxu0 0.0
        %3079 = vmatpush1.msra.mxu0 0.0
        %3080 = vmatprep.subr.mxu0 0.0
        %3081 = vmatpush1.msra.mxu0 0.0
        %3082 = vmatprep.subr.mxu0 0.0
        %3083 = vmatpush1.msra.mxu0 0.0
        %3084 = vmatprep.subr.mxu0 0.0
        %3085 = vmatpush1.msra.mxu0 0.0
        %3086 = vmatprep.subr.mxu0 0.0
        %3087 = vmatpush1.msra.mxu0 0.0
        %3088 = vmatprep.subr.mxu0 0.0
        %3089 = vmatpush1.msra.mxu0 0.0
        %3090 = vmatprep.subr.mxu0 0.0
        %3091 = vmatpush1.msra.mxu0 0.0
        %3092 = vmatprep.subr.mxu0 0.0
        %3093 = vmatpush1.msra.mxu0 0.0
        %3094 = vmatprep.subr.mxu0 0.0
        %3095 = vmatpush1.msra.mxu0 0.0
        %3096 = vmatprep.subr.mxu0 0.0
        %3097 = vmatpush1.msra.mxu0 0.0
        %3098 = vmatprep.subr.mxu0 0.0
        %3099 = vmatpush1.msra.mxu0 0.0
        %3100 = vmatprep.subr.mxu0 0.0
        %3101 = vmatpush1.msra.mxu0 0.0
        %3102 = vmatprep.subr.mxu0 0.0
        %3103 = vmatpush1.msra.mxu0 0.0
        %3104 = vmatprep.subr.mxu0 0.0
        %3105 = vmatpush1.msra.mxu0 0.0
        %3106 = vmatprep.subr.mxu0 0.0
        %3107 = vmatpush1.msra.mxu0 0.0
        %3108 = vmatprep.subr.mxu0 0.0
        %3109 = vmatpush1.msra.mxu0 0.0
        %3110 = vmatprep.subr.mxu0 0.0
        %3111 = vmatpush1.msra.mxu0 0.0
        %3112 = vmatprep.mubr.f32.mxu0 0.0
        %3113 = vmatmul.mubr.f32.gmra.mrb[0].mxu0 %v3037
        %v3114 = vpop.f32.mrb[0].mxu0
        %v3115 = vadd.f32 0.0, %v3114
        %v3116 = vpop.f32.mrb[0].mxu0
        %v3117 = vadd.f32 0.0, %v3116
        %3118 = vmatprep.mubr.f32.mxu0 0.0
        %3119 = vmatmul.mubr.f32.gmra.mrb[0].mxu0 %v3040
        %v3120 = vpop.f32.mrb[0].mxu0
        %v3121 = vadd.f32 0.0, %v3120
        %v3122 = vpop.f32.mrb[0].mxu0
        %v3123 = vadd.f32 0.0, %v3122
        %3124 = vmatprep.mubr.f32.mxu0 0.0
        %3125 = vmatmul.mubr.f32.gmra.mrb[0].mxu0 %v3043
        %v3126 = vpop.f32.mrb[0].mxu0
        %v3127 = vadd.f32 0.0, %v3126
        %v3128 = vpop.f32.mrb[0].mxu0
        %v3129 = vadd.f32 0.0, %v3128
        %3130 = vmatprep.mubr.f32.mxu0 0.0
        %3131 = vmatmul.mubr.f32.gmra.mrb[0].mxu0 %v3046
        %v3132 = vpop.f32.mrb[0].mxu0
        %v3133 = vadd.f32 0.0, %v3132
        %v3134 = vpop.f32.mrb[0].mxu0
        %v3135 = vadd.f32 0.0, %v3134
        %3136 = vdwg.mxu0
        %v3137 = vadd.f32 %v2757, %v3115
        %v3138 = vadd.f32 %v2758, %v3117
        %v3139 = vadd.f32 %v2759, %v3121
        %v3140 = vadd.f32 %v2760, %v3123
        %v3141 = vadd.f32 %v2761, %v3127
        %v3142 = vadd.f32 %v2762, %v3129
        %v3143 = vadd.f32 %v2763, %v3133
        %v3144 = vadd.f32 %v2764, %v3135
        %3145 = vrot.lane.b32.xlu0 %v714, 96
        %v3146 = vpop.permute.xlu0 %3145
        %3147 = vrot.lane.b32.xlu0 %v720, 96
        %v3148 = vpop.permute.xlu0 %3147
        %3149 = vrot.lane.b32.xlu0 %v726, 96
        %v3150 = vpop.permute.xlu0 %3149
        %3151 = vrot.lane.b32.xlu0 %v732, 96
        %v3152 = vpop.permute.xlu0 %3151
        %3153 = vrot.lane.b32.xlu0 %v895, 96
        %v3154 = vpop.permute.xlu0 %3153
        %3155 = vrot.lane.b32.xlu0 %v901, 96
        %v3156 = vpop.permute.xlu0 %3155
        %3157 = vrot.lane.b32.xlu0 %v907, 96
        %v3158 = vpop.permute.xlu0 %3157
        %3159 = vrot.lane.b32.xlu0 %v913, 96
        %v3160 = vpop.permute.xlu0 %3159
        %3161 = vrot.lane.b32.xlu0 %v919, 96
        %v3162 = vpop.permute.xlu0 %3161
        %3163 = vrot.lane.b32.xlu0 %v925, 96
        %v3164 = vpop.permute.xlu0 %3163
        %3165 = vrot.lane.b32.xlu0 %v931, 96
        %v3166 = vpop.permute.xlu0 %3165
        %3167 = vrot.lane.b32.xlu0 %v937, 96
        %v3168 = vpop.permute.xlu0 %3167
        %v3169 = vsel %vm1144, %v3146, 0
        %v3171 = vsel %vm1144, %v3148, 0
        %v3173 = vsel %vm1144, %v3150, 0
        %v3175 = vsel %vm1144, %v3152, 0
        %v3177 = vsel %vm1144, %v3154, 0
        %v3179 = vsel %vm1144, %v3156, 0
        %v3181 = vsel %vm1144, %v3158, 0
        %v3183 = vsel %vm1144, %v3160, 0
        %v3185 = vsel %vm1144, %v3162, 0
        %v3187 = vsel %vm1144, %v3164, 0
        %v3189 = vsel %vm1144, %v3166, 0
        %v3191 = vsel %vm1144, %v3168, 0
        %3193 = vmatprep.subr.mxu0 0.0
        %3194 = vmatpush1.xpose.msra.mxu0 %v3177
        %3195 = vmatprep.subr.mxu0 0.0
        %3196 = vmatpush1.xpose.msra.mxu0 %v3179
        %3197 = vmatprep.subr.mxu0 0.0
        %3198 = vmatpush1.xpose.msra.mxu0 %v3181
        %3199 = vmatprep.subr.mxu0 0.0
        %3200 = vmatpush1.xpose.msra.mxu0 %v3183
        %3201 = vmatprep.subr.mxu0 0.0
        %3202 = vmatpush1.xpose.msra.mxu0 %v3185
        %3203 = vmatprep.subr.mxu0 0.0
        %3204 = vmatpush1.xpose.msra.mxu0 %v3187
        %3205 = vmatprep.subr.mxu0 0.0
        %3206 = vmatpush1.xpose.msra.mxu0 %v3189
        %3207 = vmatprep.subr.mxu0 0.0
        %3208 = vmatpush1.xpose.msra.mxu0 %v3191
        %3209 = vmatprep.subr.mxu0 0.0
        %3210 = vmatpush1.xpose.msra.mxu0 0.0
        %3211 = vmatprep.subr.mxu0 0.0
        %3212 = vmatpush1.xpose.msra.mxu0 0.0
        %3213 = vmatprep.subr.mxu0 0.0
        %3214 = vmatpush1.xpose.msra.mxu0 0.0
        %3215 = vmatprep.subr.mxu0 0.0
        %3216 = vmatpush1.xpose.msra.mxu0 0.0
        %3217 = vmatprep.subr.mxu0 0.0
        %3218 = vmatpush1.xpose.msra.mxu0 0.0
        %3219 = vmatprep.subr.mxu0 0.0
        %3220 = vmatpush1.xpose.msra.mxu0 0.0
        %3221 = vmatprep.subr.mxu0 0.0
        %3222 = vmatpush1.xpose.msra.mxu0 0.0
        %3223 = vmatprep.subr.mxu0 0.0
        %3224 = vmatpush1.xpose.msra.mxu0 0.0
        %3225 = vmatprep.subr.mxu0 0.0
        %3226 = vmatpush1.xpose.msra.mxu0 0.0
        %3227 = vmatprep.subr.mxu0 0.0
        %3228 = vmatpush1.xpose.msra.mxu0 0.0
        %3229 = vmatprep.subr.mxu0 0.0
        %3230 = vmatpush1.xpose.msra.mxu0 0.0
        %3231 = vmatprep.subr.mxu0 0.0
        %3232 = vmatpush1.xpose.msra.mxu0 0.0
        %3233 = vmatprep.subr.mxu0 0.0
        %3234 = vmatpush1.xpose.msra.mxu0 0.0
        %3235 = vmatprep.subr.mxu0 0.0
        %3236 = vmatpush1.xpose.msra.mxu0 0.0
        %3237 = vmatprep.subr.mxu0 0.0
        %3238 = vmatpush1.xpose.msra.mxu0 0.0
        %3239 = vmatprep.subr.mxu0 0.0
        %3240 = vmatpush1.xpose.msra.mxu0 0.0
        %3241 = vmatprep.subr.mxu0 0.0
        %3242 = vmatpush1.xpose.msra.mxu0 0.0
        %3243 = vmatprep.subr.mxu0 0.0
        %3244 = vmatpush1.xpose.msra.mxu0 0.0
        %3245 = vmatprep.subr.mxu0 0.0
        %3246 = vmatpush1.xpose.msra.mxu0 0.0
        %3247 = vmatprep.subr.mxu0 0.0
        %3248 = vmatpush1.xpose.msra.mxu0 0.0
        %3249 = vmatprep.subr.mxu0 0.0
        %3250 = vmatpush1.xpose.msra.mxu0 0.0
        %3251 = vmatprep.subr.mxu0 0.0
        %3252 = vmatpush1.xpose.msra.mxu0 0.0
        %3253 = vmatprep.subr.mxu0 0.0
        %3254 = vmatpush1.xpose.msra.mxu0 0.0
        %3255 = vmatprep.subr.mxu0 0.0
        %3256 = vmatpush1.xpose.msra.mxu0 0.0
        %3257 = vmatprep.mubr.f32.mxu0 0.0
        %3258 = vmatmul.mubr.f32.gmra.mrb[0].mxu0 %v3169
        %v3259 = vpop.f32.mrb[0].mxu0
        %v3260 = vadd.f32 0.0, %v3259
        %v3261 = vpop.f32.mrb[0].mxu0
        %3262 = vmatprep.mubr.f32.mxu0 0.0
        %3263 = vmatmul.mubr.f32.gmra.mrb[0].mxu0 %v3171
        %v3264 = vpop.f32.mrb[0].mxu0
        %v3265 = vadd.f32 0.0, %v3264
        %v3266 = vpop.f32.mrb[0].mxu0
        %3267 = vmatprep.mubr.f32.mxu0 0.0
        %3268 = vmatmul.mubr.f32.gmra.mrb[0].mxu0 %v3173
        %v3269 = vpop.f32.mrb[0].mxu0
        %v3270 = vadd.f32 0.0, %v3269
        %v3271 = vpop.f32.mrb[0].mxu0
        %3272 = vmatprep.mubr.f32.mxu0 0.0
        %3273 = vmatmul.mubr.f32.gmra.mrb[0].mxu0 %v3175
        %v3274 = vpop.f32.mrb[0].mxu0
        %v3275 = vadd.f32 0.0, %v3274
        %v3276 = vpop.f32.mrb[0].mxu0
        %3277 = vdwg.mxu0
        %v3278 = vsel %vm1266, %v3260, -inf
        %3279 = vmax.xlane.f32.xlu0 %v3278
        %v3280 = vpop.xlane.xlu0 %3279
        %v3281 = vsel %vm1266, %v3265, -inf
        %3282 = vmax.xlane.f32.xlu0 %v3281
        %v3283 = vpop.xlane.xlu0 %3282
        %v3284 = vsel %vm1266, %v3270, -inf
        %3285 = vmax.xlane.f32.xlu0 %v3284
        %v3286 = vpop.xlane.xlu0 %3285
        %v3287 = vsel %vm1266, %v3275, -inf
        %3288 = vmax.xlane.f32.xlu0 %v3287
        %v3289 = vpop.xlane.xlu0 %3288
        %v3290 = vsub.f32 %v3260, %v3280
        %v3291 = vsub.f32 %v3265, %v3283
        %v3292 = vsub.f32 %v3270, %v3286
        %v3293 = vsub.f32 %v3275, %v3289
        %v3294 = vmul.f32 %v3290, 1.442695
        %v3295 = vpow.pop %v3294
        %v3296 = vmul.f32 %v3291, 1.442695
        %v3297 = vpow.pop %v3296
        %v3298 = vmul.f32 %v3292, 1.442695
        %v3299 = vpow.pop %v3298
        %v3300 = vmul.f32 %v3293, 1.442695
        %v3301 = vpow.pop %v3300
        %v3302 = vsel %vm1266, %v3295, 0.0
        %3303 = vadd.xlane.f32.xlu0 %v3302
        %v3304 = vpop.xlane.xlu0 %3303
        %v3305 = vsel %vm1266, %v3297, 0.0
        %3306 = vadd.xlane.f32.xlu0 %v3305
        %v3307 = vpop.xlane.xlu0 %3306
        %v3308 = vsel %vm1266, %v3299, 0.0
        %3309 = vadd.xlane.f32.xlu0 %v3308
        %v3310 = vpop.xlane.xlu0 %3309
        %v3311 = vsel %vm1266, %v3301, 0.0
        %3312 = vadd.xlane.f32.xlu0 %v3311
        %v3313 = vpop.xlane.xlu0 %3312
        %3322 = vrot.lane.b32.xlu0 %v1100, 96
        %v3323 = vpop.permute.xlu0 %3322
        %3324 = vrot.lane.b32.xlu0 %v1106, 96
        %v3325 = vpop.permute.xlu0 %3324
        %3326 = vrot.lane.b32.xlu0 %v1112, 96
        %v3327 = vpop.permute.xlu0 %3326
        %3328 = vrot.lane.b32.xlu0 %v1118, 96
        %v3329 = vpop.permute.xlu0 %3328
        %3330 = vrot.lane.b32.xlu0 %v1124, 96
        %v3331 = vpop.permute.xlu0 %3330
        %3332 = vrot.lane.b32.xlu0 %v1130, 96
        %v3333 = vpop.permute.xlu0 %3332
        %3334 = vrot.lane.b32.xlu0 %v1136, 96
        %v3335 = vpop.permute.xlu0 %3334
        %3336 = vrot.lane.b32.xlu0 %v1142, 96
        %v3337 = vpop.permute.xlu0 %3336
        %v3347 = vsel %vm1266, %v3295, 0
        %v3350 = vsel %vm1266, %v3297, 0
        %v3353 = vsel %vm1266, %v3299, 0
        %v3356 = vsel %vm1266, %v3301, 0
        %3358 = vmatprep.subr.mxu0 0.0
        %3359 = vmatpush1.msra.mxu0 %v3323
        %3360 = vmatprep.subr.mxu0 0.0
        %3361 = vmatpush1.msra.mxu0 %v3325
        %3362 = vmatprep.subr.mxu0 0.0
        %3363 = vmatpush1.msra.mxu0 %v3327
        %3364 = vmatprep.subr.mxu0 0.0
        %3365 = vmatpush1.msra.mxu0 %v3329
        %3366 = vmatprep.subr.mxu0 0.0
        %3367 = vmatpush1.msra.mxu0 %v3331
        %3368 = vmatprep.subr.mxu0 0.0
        %3369 = vmatpush1.msra.mxu0 %v3333
        %3370 = vmatprep.subr.mxu0 0.0
        %3371 = vmatpush1.msra.mxu0 %v3335
        %3372 = vmatprep.subr.mxu0 0.0
        %3373 = vmatpush1.msra.mxu0 %v3337
        %3374 = vmatprep.subr.mxu0 0.0
        %3375 = vmatpush1.msra.mxu0 0.0
        %3376 = vmatprep.subr.mxu0 0.0
        %3377 = vmatpush1.msra.mxu0 0.0
        %3378 = vmatprep.subr.mxu0 0.0
        %3379 = vmatpush1.msra.mxu0 0.0
        %3380 = vmatprep.subr.mxu0 0.0
        %3381 = vmatpush1.msra.mxu0 0.0
        %3382 = vmatprep.subr.mxu0 0.0
        %3383 = vmatpush1.msra.mxu0 0.0
        %3384 = vmatprep.subr.mxu0 0.0
        %3385 = vmatpush1.msra.mxu0 0.0
        %3386 = vmatprep.subr.mxu0 0.0
        %3387 = vmatpush1.msra.mxu0 0.0
        %3388 = vmatprep.subr.mxu0 0.0
        %3389 = vmatpush1.msra.mxu0 0.0
        %3390 = vmatprep.subr.mxu0 0.0
        %3391 = vmatpush1.msra.mxu0 0.0
        %3392 = vmatprep.subr.mxu0 0.0
        %3393 = vmatpush1.msra.mxu0 0.0
        %3394 = vmatprep.subr.mxu0 0.0
        %3395 = vmatpush1.msra.mxu0 0.0
        %3396 = vmatprep.subr.mxu0 0.0
        %3397 = vmatpush1.msra.mxu0 0.0
        %3398 = vmatprep.subr.mxu0 0.0
        %3399 = vmatpush1.msra.mxu0 0.0
        %3400 = vmatprep.subr.mxu0 0.0
        %3401 = vmatpush1.msra.mxu0 0.0
        %3402 = vmatprep.subr.mxu0 0.0
        %3403 = vmatpush1.msra.mxu0 0.0
        %3404 = vmatprep.subr.mxu0 0.0
        %3405 = vmatpush1.msra.mxu0 0.0
        %3406 = vmatprep.subr.mxu0 0.0
        %3407 = vmatpush1.msra.mxu0 0.0
        %3408 = vmatprep.subr.mxu0 0.0
        %3409 = vmatpush1.msra.mxu0 0.0
        %3410 = vmatprep.subr.mxu0 0.0
        %3411 = vmatpush1.msra.mxu0 0.0
        %3412 = vmatprep.subr.mxu0 0.0
        %3413 = vmatpush1.msra.mxu0 0.0
        %3414 = vmatprep.subr.mxu0 0.0
        %3415 = vmatpush1.msra.mxu0 0.0
        %3416 = vmatprep.subr.mxu0 0.0
        %3417 = vmatpush1.msra.mxu0 0.0
        %3418 = vmatprep.subr.mxu0 0.0
        %3419 = vmatpush1.msra.mxu0 0.0
        %3420 = vmatprep.subr.mxu0 0.0
        %3421 = vmatpush1.msra.mxu0 0.0
        %3422 = vmatprep.mubr.f32.mxu0 0.0
        %3423 = vmatmul.mubr.f32.gmra.mrb[0].mxu0 %v3347
        %v3424 = vpop.f32.mrb[0].mxu0
        %v3425 = vadd.f32 0.0, %v3424
        %v3426 = vpop.f32.mrb[0].mxu0
        %3427 = vmatprep.mubr.f32.mxu0 0.0
        %3428 = vmatmul.mubr.f32.gmra.mrb[0].mxu0 %v3350
        %v3429 = vpop.f32.mrb[0].mxu0
        %v3430 = vadd.f32 0.0, %v3429
        %v3431 = vpop.f32.mrb[0].mxu0
        %3432 = vmatprep.mubr.f32.mxu0 0.0
        %3433 = vmatmul.mubr.f32.gmra.mrb[0].mxu0 %v3353
        %v3434 = vpop.f32.mrb[0].mxu0
        %v3435 = vadd.f32 0.0, %v3434
        %v3436 = vpop.f32.mrb[0].mxu0
        %3437 = vmatprep.mubr.f32.mxu0 0.0
        %3438 = vmatmul.mubr.f32.gmra.mrb[0].mxu0 %v3356
        %v3439 = vpop.f32.mrb[0].mxu0
        %v3440 = vadd.f32 0.0, %v3439
        %v3441 = vpop.f32.mrb[0].mxu0
        %3442 = vdwg.mxu0
        %v3443 = vrcp.pop %v3304
        %v3444 = vrcp.pop %v3307
        %v3445 = vrcp.pop %v3310
        %v3446 = vrcp.pop %v3313
        %v3447 = vmul.f32 %v3425, %v3443
        %v3448 = vmul.f32 %v3430, %v3444
        %v3449 = vmul.f32 %v3435, %v3445
        %v3450 = vmul.f32 %v3440, %v3446
        %s3451 = scalar_lea.vmem [#allocation13], 320
        %v3452 = vld [vmem:[%s3451] sm:$0xff]
        %v3453 = vld [vmem:[%s3451 + $0x8] sm:$0xff]
        %v3454 = vld [vmem:[%s3451 + $0x10] sm:$0xff]
        %v3455 = vld [vmem:[%s3451 + $0x18] sm:$0xff]
        %v3456 = vld [vmem:[%s3451 + $0x20] sm:$0xff]
        %v3457 = vld [vmem:[%s3451 + $0x28] sm:$0xff]
        %v3458 = vld [vmem:[%s3451 + $0x30] sm:$0xff]
        %v3459 = vld [vmem:[%s3451 + $0x38] sm:$0xff]
        %v3461 = vsel %vm1144, %v3447, 0
        %v3464 = vsel %vm1144, %v3448, 0
        %v3467 = vsel %vm1144, %v3449, 0
        %v3470 = vsel %vm1144, %v3450, 0
        %3472 = vmatprep.subr.mxu0 %v3453
        %3473 = vmatpush1.msra.mxu0 %v3452
        %3474 = vmatprep.subr.mxu0 %v3455
        %3475 = vmatpush1.msra.mxu0 %v3454
        %3476 = vmatprep.subr.mxu0 %v3457
        %3477 = vmatpush1.msra.mxu0 %v3456
        %3478 = vmatprep.subr.mxu0 %v3459
        %3479 = vmatpush1.msra.mxu0 %v3458
        %3480 = vmatprep.subr.mxu0 0.0
        %3481 = vmatpush1.msra.mxu0 0.0
        %3482 = vmatprep.subr.mxu0 0.0
        %3483 = vmatpush1.msra.mxu0 0.0
        %3484 = vmatprep.subr.mxu0 0.0
        %3485 = vmatpush1.msra.mxu0 0.0
        %3486 = vmatprep.subr.mxu0 0.0
        %3487 = vmatpush1.msra.mxu0 0.0
        %3488 = vmatprep.subr.mxu0 0.0
        %3489 = vmatpush1.msra.mxu0 0.0
        %3490 = vmatprep.subr.mxu0 0.0
        %3491 = vmatpush1.msra.mxu0 0.0
        %3492 = vmatprep.subr.mxu0 0.0
        %3493 = vmatpush1.msra.mxu0 0.0
        %3494 = vmatprep.subr.mxu0 0.0
        %3495 = vmatpush1.msra.mxu0 0.0
        %3496 = vmatprep.subr.mxu0 0.0
        %3497 = vmatpush1.msra.mxu0 0.0
        %3498 = vmatprep.subr.mxu0 0.0
        %3499 = vmatpush1.msra.mxu0 0.0
        %3500 = vmatprep.subr.mxu0 0.0
        %3501 = vmatpush1.msra.mxu0 0.0
        %3502 = vmatprep.subr.mxu0 0.0
        %3503 = vmatpush1.msra.mxu0 0.0
        %3504 = vmatprep.subr.mxu0 0.0
        %3505 = vmatpush1.msra.mxu0 0.0
        %3506 = vmatprep.subr.mxu0 0.0
        %3507 = vmatpush1.msra.mxu0 0.0
        %3508 = vmatprep.subr.mxu0 0.0
        %3509 = vmatpush1.msra.mxu0 0.0
        %3510 = vmatprep.subr.mxu0 0.0
        %3511 = vmatpush1.msra.mxu0 0.0
        %3512 = vmatprep.subr.mxu0 0.0
        %3513 = vmatpush1.msra.mxu0 0.0
        %3514 = vmatprep.subr.mxu0 0.0
        %3515 = vmatpush1.msra.mxu0 0.0
        %3516 = vmatprep.subr.mxu0 0.0
        %3517 = vmatpush1.msra.mxu0 0.0
        %3518 = vmatprep.subr.mxu0 0.0
        %3519 = vmatpush1.msra.mxu0 0.0
        %3520 = vmatprep.subr.mxu0 0.0
        %3521 = vmatpush1.msra.mxu0 0.0
        %3522 = vmatprep.subr.mxu0 0.0
        %3523 = vmatpush1.msra.mxu0 0.0
        %3524 = vmatprep.subr.mxu0 0.0
        %3525 = vmatpush1.msra.mxu0 0.0
        %3526 = vmatprep.subr.mxu0 0.0
        %3527 = vmatpush1.msra.mxu0 0.0
        %3528 = vmatprep.subr.mxu0 0.0
        %3529 = vmatpush1.msra.mxu0 0.0
        %3530 = vmatprep.subr.mxu0 0.0
        %3531 = vmatpush1.msra.mxu0 0.0
        %3532 = vmatprep.subr.mxu0 0.0
        %3533 = vmatpush1.msra.mxu0 0.0
        %3534 = vmatprep.subr.mxu0 0.0
        %3535 = vmatpush1.msra.mxu0 0.0
        %3536 = vmatprep.mubr.f32.mxu0 0.0
        %3537 = vmatmul.mubr.f32.gmra.mrb[0].mxu0 %v3461
        %v3538 = vpop.f32.mrb[0].mxu0
        %v3539 = vadd.f32 0.0, %v3538
        %v3540 = vpop.f32.mrb[0].mxu0
        %v3541 = vadd.f32 0.0, %v3540
        %3542 = vmatprep.mubr.f32.mxu0 0.0
        %3543 = vmatmul.mubr.f32.gmra.mrb[0].mxu0 %v3464
        %v3544 = vpop.f32.mrb[0].mxu0
        %v3545 = vadd.f32 0.0, %v3544
        %v3546 = vpop.f32.mrb[0].mxu0
        %v3547 = vadd.f32 0.0, %v3546
        %3548 = vmatprep.mubr.f32.mxu0 0.0
        %3549 = vmatmul.mubr.f32.gmra.mrb[0].mxu0 %v3467
        %v3550 = vpop.f32.mrb[0].mxu0
        %v3551 = vadd.f32 0.0, %v3550
        %v3552 = vpop.f32.mrb[0].mxu0
        %v3553 = vadd.f32 0.0, %v3552
        %3554 = vmatprep.mubr.f32.mxu0 0.0
        %3555 = vmatmul.mubr.f32.gmra.mrb[0].mxu0 %v3470
        %v3556 = vpop.f32.mrb[0].mxu0
        %v3557 = vadd.f32 0.0, %v3556
        %v3558 = vpop.f32.mrb[0].mxu0
        %v3559 = vadd.f32 0.0, %v3558
        %3560 = vdwg.mxu0
        %v3561 = vadd.f32 %v3137, %v3539
        %v3562 = vadd.f32 %v3138, %v3541
        %v3563 = vadd.f32 %v3139, %v3545
        %v3564 = vadd.f32 %v3140, %v3547
        %v3565 = vadd.f32 %v3141, %v3551
        %v3566 = vadd.f32 %v3142, %v3553
        %v3567 = vadd.f32 %v3143, %v3557
        %v3568 = vadd.f32 %v3144, %v3559
        %3569 = vrot.lane.b32.xlu0 %v714, 64
        %v3570 = vpop.permute.xlu0 %3569
        %3571 = vrot.lane.b32.xlu0 %v720, 64
        %v3572 = vpop.permute.xlu0 %3571
        %3573 = vrot.lane.b32.xlu0 %v726, 64
        %v3574 = vpop.permute.xlu0 %3573
        %3575 = vrot.lane.b32.xlu0 %v732, 64
        %v3576 = vpop.permute.xlu0 %3575
        %3577 = vrot.lane.b32.xlu0 %v895, 64
        %v3578 = vpop.permute.xlu0 %3577
        %3579 = vrot.lane.b32.xlu0 %v901, 64
        %v3580 = vpop.permute.xlu0 %3579
        %3581 = vrot.lane.b32.xlu0 %v907, 64
        %v3582 = vpop.permute.xlu0 %3581
        %3583 = vrot.lane.b32.xlu0 %v913, 64
        %v3584 = vpop.permute.xlu0 %3583
        %3585 = vrot.lane.b32.xlu0 %v919, 64
        %v3586 = vpop.permute.xlu0 %3585
        %3587 = vrot.lane.b32.xlu0 %v925, 64
        %v3588 = vpop.permute.xlu0 %3587
        %3589 = vrot.lane.b32.xlu0 %v931, 64
        %v3590 = vpop.permute.xlu0 %3589
        %3591 = vrot.lane.b32.xlu0 %v937, 64
        %v3592 = vpop.permute.xlu0 %3591
        %v3593 = vsel %vm1144, %v3570, 0
        %v3595 = vsel %vm1144, %v3572, 0
        %v3597 = vsel %vm1144, %v3574, 0
        %v3599 = vsel %vm1144, %v3576, 0
        %v3601 = vsel %vm1144, %v3578, 0
        %v3603 = vsel %vm1144, %v3580, 0
        %v3605 = vsel %vm1144, %v3582, 0
        %v3607 = vsel %vm1144, %v3584, 0
        %v3609 = vsel %vm1144, %v3586, 0
        %v3611 = vsel %vm1144, %v3588, 0
        %v3613 = vsel %vm1144, %v3590, 0
        %v3615 = vsel %vm1144, %v3592, 0
        %3617 = vmatprep.subr.mxu0 0.0
        %3618 = vmatpush1.xpose.msra.mxu0 %v3601
        %3619 = vmatprep.subr.mxu0 0.0
        %3620 = vmatpush1.xpose.msra.mxu0 %v3603
        %3621 = vmatprep.subr.mxu0 0.0
        %3622 = vmatpush1.xpose.msra.mxu0 %v3605
        %3623 = vmatprep.subr.mxu0 0.0
        %3624 = vmatpush1.xpose.msra.mxu0 %v3607
        %3625 = vmatprep.subr.mxu0 0.0
        %3626 = vmatpush1.xpose.msra.mxu0 %v3609
        %3627 = vmatprep.subr.mxu0 0.0
        %3628 = vmatpush1.xpose.msra.mxu0 %v3611
        %3629 = vmatprep.subr.mxu0 0.0
        %3630 = vmatpush1.xpose.msra.mxu0 %v3613
        %3631 = vmatprep.subr.mxu0 0.0
        %3632 = vmatpush1.xpose.msra.mxu0 %v3615
        %3633 = vmatprep.subr.mxu0 0.0
        %3634 = vmatpush1.xpose.msra.mxu0 0.0
        %3635 = vmatprep.subr.mxu0 0.0
        %3636 = vmatpush1.xpose.msra.mxu0 0.0
        %3637 = vmatprep.subr.mxu0 0.0
        %3638 = vmatpush1.xpose.msra.mxu0 0.0
        %3639 = vmatprep.subr.mxu0 0.0
        %3640 = vmatpush1.xpose.msra.mxu0 0.0
        %3641 = vmatprep.subr.mxu0 0.0
        %3642 = vmatpush1.xpose.msra.mxu0 0.0
        %3643 = vmatprep.subr.mxu0 0.0
        %3644 = vmatpush1.xpose.msra.mxu0 0.0
        %3645 = vmatprep.subr.mxu0 0.0
        %3646 = vmatpush1.xpose.msra.mxu0 0.0
        %3647 = vmatprep.subr.mxu0 0.0
        %3648 = vmatpush1.xpose.msra.mxu0 0.0
        %3649 = vmatprep.subr.mxu0 0.0
        %3650 = vmatpush1.xpose.msra.mxu0 0.0
        %3651 = vmatprep.subr.mxu0 0.0
        %3652 = vmatpush1.xpose.msra.mxu0 0.0
        %3653 = vmatprep.subr.mxu0 0.0
        %3654 = vmatpush1.xpose.msra.mxu0 0.0
        %3655 = vmatprep.subr.mxu0 0.0
        %3656 = vmatpush1.xpose.msra.mxu0 0.0
        %3657 = vmatprep.subr.mxu0 0.0
        %3658 = vmatpush1.xpose.msra.mxu0 0.0
        %3659 = vmatprep.subr.mxu0 0.0
        %3660 = vmatpush1.xpose.msra.mxu0 0.0
        %3661 = vmatprep.subr.mxu0 0.0
        %3662 = vmatpush1.xpose.msra.mxu0 0.0
        %3663 = vmatprep.subr.mxu0 0.0
        %3664 = vmatpush1.xpose.msra.mxu0 0.0
        %3665 = vmatprep.subr.mxu0 0.0
        %3666 = vmatpush1.xpose.msra.mxu0 0.0
        %3667 = vmatprep.subr.mxu0 0.0
        %3668 = vmatpush1.xpose.msra.mxu0 0.0
        %3669 = vmatprep.subr.mxu0 0.0
        %3670 = vmatpush1.xpose.msra.mxu0 0.0
        %3671 = vmatprep.subr.mxu0 0.0
        %3672 = vmatpush1.xpose.msra.mxu0 0.0
        %3673 = vmatprep.subr.mxu0 0.0
        %3674 = vmatpush1.xpose.msra.mxu0 0.0
        %3675 = vmatprep.subr.mxu0 0.0
        %3676 = vmatpush1.xpose.msra.mxu0 0.0
        %3677 = vmatprep.subr.mxu0 0.0
        %3678 = vmatpush1.xpose.msra.mxu0 0.0
        %3679 = vmatprep.subr.mxu0 0.0
        %3680 = vmatpush1.xpose.msra.mxu0 0.0
        %3681 = vmatprep.mubr.f32.mxu0 0.0
        %3682 = vmatmul.mubr.f32.gmra.mrb[0].mxu0 %v3593
        %v3683 = vpop.f32.mrb[0].mxu0
        %v3684 = vadd.f32 0.0, %v3683
        %v3685 = vpop.f32.mrb[0].mxu0
        %3686 = vmatprep.mubr.f32.mxu0 0.0
        %3687 = vmatmul.mubr.f32.gmra.mrb[0].mxu0 %v3595
        %v3688 = vpop.f32.mrb[0].mxu0
        %v3689 = vadd.f32 0.0, %v3688
        %v3690 = vpop.f32.mrb[0].mxu0
        %3691 = vmatprep.mubr.f32.mxu0 0.0
        %3692 = vmatmul.mubr.f32.gmra.mrb[0].mxu0 %v3597
        %v3693 = vpop.f32.mrb[0].mxu0
        %v3694 = vadd.f32 0.0, %v3693
        %v3695 = vpop.f32.mrb[0].mxu0
        %3696 = vmatprep.mubr.f32.mxu0 0.0
        %3697 = vmatmul.mubr.f32.gmra.mrb[0].mxu0 %v3599
        %v3698 = vpop.f32.mrb[0].mxu0
        %v3699 = vadd.f32 0.0, %v3698
        %v3700 = vpop.f32.mrb[0].mxu0
        %3701 = vdwg.mxu0
        %v3702 = vsel %vm1266, %v3684, -inf
        %3703 = vmax.xlane.f32.xlu0 %v3702
        %v3704 = vpop.xlane.xlu0 %3703
        %v3705 = vsel %vm1266, %v3689, -inf
        %3706 = vmax.xlane.f32.xlu0 %v3705
        %v3707 = vpop.xlane.xlu0 %3706
        %v3708 = vsel %vm1266, %v3694, -inf
        %3709 = vmax.xlane.f32.xlu0 %v3708
        %v3710 = vpop.xlane.xlu0 %3709
        %v3711 = vsel %vm1266, %v3699, -inf
        %3712 = vmax.xlane.f32.xlu0 %v3711
        %v3713 = vpop.xlane.xlu0 %3712
        %v3714 = vsub.f32 %v3684, %v3704
        %v3715 = vsub.f32 %v3689, %v3707
        %v3716 = vsub.f32 %v3694, %v3710
        %v3717 = vsub.f32 %v3699, %v3713
        %v3718 = vmul.f32 %v3714, 1.442695
        %v3719 = vpow.pop %v3718
        %v3720 = vmul.f32 %v3715, 1.442695
        %v3721 = vpow.pop %v3720
        %v3722 = vmul.f32 %v3716, 1.442695
        %v3723 = vpow.pop %v3722
        %v3724 = vmul.f32 %v3717, 1.442695
        %v3725 = vpow.pop %v3724
        %v3726 = vsel %vm1266, %v3719, 0.0
        %3727 = vadd.xlane.f32.xlu0 %v3726
        %v3728 = vpop.xlane.xlu0 %3727
        %v3729 = vsel %vm1266, %v3721, 0.0
        %3730 = vadd.xlane.f32.xlu0 %v3729
        %v3731 = vpop.xlane.xlu0 %3730
        %v3732 = vsel %vm1266, %v3723, 0.0
        %3733 = vadd.xlane.f32.xlu0 %v3732
        %v3734 = vpop.xlane.xlu0 %3733
        %v3735 = vsel %vm1266, %v3725, 0.0
        %3736 = vadd.xlane.f32.xlu0 %v3735
        %v3737 = vpop.xlane.xlu0 %3736
        %3738 = vrot.lane.b32.xlu0 %v1100, 64
        %v3739 = vpop.permute.xlu0 %3738
        %3740 = vrot.lane.b32.xlu0 %v1106, 64
        %v3741 = vpop.permute.xlu0 %3740
        %3742 = vrot.lane.b32.xlu0 %v1112, 64
        %v3743 = vpop.permute.xlu0 %3742
        %3744 = vrot.lane.b32.xlu0 %v1118, 64
        %v3745 = vpop.permute.xlu0 %3744
        %3746 = vrot.lane.b32.xlu0 %v1124, 64
        %v3747 = vpop.permute.xlu0 %3746
        %3748 = vrot.lane.b32.xlu0 %v1130, 64
        %v3749 = vpop.permute.xlu0 %3748
        %3750 = vrot.lane.b32.xlu0 %v1136, 64
        %v3751 = vpop.permute.xlu0 %3750
        %3752 = vrot.lane.b32.xlu0 %v1142, 64
        %v3753 = vpop.permute.xlu0 %3752
        %v3763 = vsel %vm1266, %v3719, 0
        %v3766 = vsel %vm1266, %v3721, 0
        %v3769 = vsel %vm1266, %v3723, 0
        %v3772 = vsel %vm1266, %v3725, 0
        %3774 = vmatprep.subr.mxu0 0.0
        %3775 = vmatpush1.msra.mxu0 %v3739
        %3776 = vmatprep.subr.mxu0 0.0
        %3777 = vmatpush1.msra.mxu0 %v3741
        %3778 = vmatprep.subr.mxu0 0.0
        %3779 = vmatpush1.msra.mxu0 %v3743
        %3780 = vmatprep.subr.mxu0 0.0
        %3781 = vmatpush1.msra.mxu0 %v3745
        %3782 = vmatprep.subr.mxu0 0.0
        %3783 = vmatpush1.msra.mxu0 %v3747
        %3784 = vmatprep.subr.mxu0 0.0
        %3785 = vmatpush1.msra.mxu0 %v3749
        %3786 = vmatprep.subr.mxu0 0.0
        %3787 = vmatpush1.msra.mxu0 %v3751
        %3788 = vmatprep.subr.mxu0 0.0
        %3789 = vmatpush1.msra.mxu0 %v3753
        %3790 = vmatprep.subr.mxu0 0.0
        %3791 = vmatpush1.msra.mxu0 0.0
        %3792 = vmatprep.subr.mxu0 0.0
        %3793 = vmatpush1.msra.mxu0 0.0
        %3794 = vmatprep.subr.mxu0 0.0
        %3795 = vmatpush1.msra.mxu0 0.0
        %3796 = vmatprep.subr.mxu0 0.0
        %3797 = vmatpush1.msra.mxu0 0.0
        %3798 = vmatprep.subr.mxu0 0.0
        %3799 = vmatpush1.msra.mxu0 0.0
        %3800 = vmatprep.subr.mxu0 0.0
        %3801 = vmatpush1.msra.mxu0 0.0
        %3802 = vmatprep.subr.mxu0 0.0
        %3803 = vmatpush1.msra.mxu0 0.0
        %3804 = vmatprep.subr.mxu0 0.0
        %3805 = vmatpush1.msra.mxu0 0.0
        %3806 = vmatprep.subr.mxu0 0.0
        %3807 = vmatpush1.msra.mxu0 0.0
        %3808 = vmatprep.subr.mxu0 0.0
        %3809 = vmatpush1.msra.mxu0 0.0
        %3810 = vmatprep.subr.mxu0 0.0
        %3811 = vmatpush1.msra.mxu0 0.0
        %3812 = vmatprep.subr.mxu0 0.0
        %3813 = vmatpush1.msra.mxu0 0.0
        %3814 = vmatprep.subr.mxu0 0.0
        %3815 = vmatpush1.msra.mxu0 0.0
        %3816 = vmatprep.subr.mxu0 0.0
        %3817 = vmatpush1.msra.mxu0 0.0
        %3818 = vmatprep.subr.mxu0 0.0
        %3819 = vmatpush1.msra.mxu0 0.0
        %3820 = vmatprep.subr.mxu0 0.0
        %3821 = vmatpush1.msra.mxu0 0.0
        %3822 = vmatprep.subr.mxu0 0.0
        %3823 = vmatpush1.msra.mxu0 0.0
        %3824 = vmatprep.subr.mxu0 0.0
        %3825 = vmatpush1.msra.mxu0 0.0
        %3826 = vmatprep.subr.mxu0 0.0
        %3827 = vmatpush1.msra.mxu0 0.0
        %3828 = vmatprep.subr.mxu0 0.0
        %3829 = vmatpush1.msra.mxu0 0.0
        %3830 = vmatprep.subr.mxu0 0.0
        %3831 = vmatpush1.msra.mxu0 0.0
        %3832 = vmatprep.subr.mxu0 0.0
        %3833 = vmatpush1.msra.mxu0 0.0
        %3834 = vmatprep.subr.mxu0 0.0
        %3835 = vmatpush1.msra.mxu0 0.0
        %3836 = vmatprep.subr.mxu0 0.0
        %3837 = vmatpush1.msra.mxu0 0.0
        %3838 = vmatprep.mubr.f32.mxu0 0.0
        %3839 = vmatmul.mubr.f32.gmra.mrb[0].mxu0 %v3763
        %v3840 = vpop.f32.mrb[0].mxu0
        %v3841 = vadd.f32 0.0, %v3840
        %v3842 = vpop.f32.mrb[0].mxu0
        %3843 = vmatprep.mubr.f32.mxu0 0.0
        %3844 = vmatmul.mubr.f32.gmra.mrb[0].mxu0 %v3766
        %v3845 = vpop.f32.mrb[0].mxu0
        %v3846 = vadd.f32 0.0, %v3845
        %v3847 = vpop.f32.mrb[0].mxu0
        %3848 = vmatprep.mubr.f32.mxu0 0.0
        %3849 = vmatmul.mubr.f32.gmra.mrb[0].mxu0 %v3769
        %v3850 = vpop.f32.mrb[0].mxu0
        %v3851 = vadd.f32 0.0, %v3850
        %v3852 = vpop.f32.mrb[0].mxu0
        %3853 = vmatprep.mubr.f32.mxu0 0.0
        %3854 = vmatmul.mubr.f32.gmra.mrb[0].mxu0 %v3772
        %v3855 = vpop.f32.mrb[0].mxu0
        %v3856 = vadd.f32 0.0, %v3855
        %v3857 = vpop.f32.mrb[0].mxu0
        %3858 = vdwg.mxu0
        %v3859 = vrcp.pop %v3728
        %v3860 = vrcp.pop %v3731
        %v3861 = vrcp.pop %v3734
        %v3862 = vrcp.pop %v3737
        %v3863 = vmul.f32 %v3841, %v3859
        %v3864 = vmul.f32 %v3846, %v3860
        %v3865 = vmul.f32 %v3851, %v3861
        %v3866 = vmul.f32 %v3856, %v3862
        %s3867 = scalar_lea.vmem [#allocation13], 384
        %v3868 = vld [vmem:[%s3867] sm:$0xff]
        %v3869 = vld [vmem:[%s3867 + $0x8] sm:$0xff]
        %v3870 = vld [vmem:[%s3867 + $0x10] sm:$0xff]
        %v3871 = vld [vmem:[%s3867 + $0x18] sm:$0xff]
        %v3872 = vld [vmem:[%s3867 + $0x20] sm:$0xff]
        %v3873 = vld [vmem:[%s3867 + $0x28] sm:$0xff]
        %v3874 = vld [vmem:[%s3867 + $0x30] sm:$0xff]
        %v3875 = vld [vmem:[%s3867 + $0x38] sm:$0xff]
        %v3877 = vsel %vm1144, %v3863, 0
        %v3880 = vsel %vm1144, %v3864, 0
        %v3883 = vsel %vm1144, %v3865, 0
        %v3886 = vsel %vm1144, %v3866, 0
        %3888 = vmatprep.subr.mxu0 %v3869
        %3889 = vmatpush1.msra.mxu0 %v3868
        %3890 = vmatprep.subr.mxu0 %v3871
        %3891 = vmatpush1.msra.mxu0 %v3870
        %3892 = vmatprep.subr.mxu0 %v3873
        %3893 = vmatpush1.msra.mxu0 %v3872
        %3894 = vmatprep.subr.mxu0 %v3875
        %3895 = vmatpush1.msra.mxu0 %v3874
        %3896 = vmatprep.subr.mxu0 0.0
        %3897 = vmatpush1.msra.mxu0 0.0
        %3898 = vmatprep.subr.mxu0 0.0
        %3899 = vmatpush1.msra.mxu0 0.0
        %3900 = vmatprep.subr.mxu0 0.0
        %3901 = vmatpush1.msra.mxu0 0.0
        %3902 = vmatprep.subr.mxu0 0.0
        %3903 = vmatpush1.msra.mxu0 0.0
        %3904 = vmatprep.subr.mxu0 0.0
        %3905 = vmatpush1.msra.mxu0 0.0
        %3906 = vmatprep.subr.mxu0 0.0
        %3907 = vmatpush1.msra.mxu0 0.0
        %3908 = vmatprep.subr.mxu0 0.0
        %3909 = vmatpush1.msra.mxu0 0.0
        %3910 = vmatprep.subr.mxu0 0.0
        %3911 = vmatpush1.msra.mxu0 0.0
        %3912 = vmatprep.subr.mxu0 0.0
        %3913 = vmatpush1.msra.mxu0 0.0
        %3914 = vmatprep.subr.mxu0 0.0
        %3915 = vmatpush1.msra.mxu0 0.0
        %3916 = vmatprep.subr.mxu0 0.0
        %3917 = vmatpush1.msra.mxu0 0.0
        %3918 = vmatprep.subr.mxu0 0.0
        %3919 = vmatpush1.msra.mxu0 0.0
        %3920 = vmatprep.subr.mxu0 0.0
        %3921 = vmatpush1.msra.mxu0 0.0
        %3922 = vmatprep.subr.mxu0 0.0
        %3923 = vmatpush1.msra.mxu0 0.0
        %3924 = vmatprep.subr.mxu0 0.0
        %3925 = vmatpush1.msra.mxu0 0.0
        %3926 = vmatprep.subr.mxu0 0.0
        %3927 = vmatpush1.msra.mxu0 0.0
        %3928 = vmatprep.subr.mxu0 0.0
        %3929 = vmatpush1.msra.mxu0 0.0
        %3930 = vmatprep.subr.mxu0 0.0
        %3931 = vmatpush1.msra.mxu0 0.0
        %3932 = vmatprep.subr.mxu0 0.0
        %3933 = vmatpush1.msra.mxu0 0.0
        %3934 = vmatprep.subr.mxu0 0.0
        %3935 = vmatpush1.msra.mxu0 0.0
        %3936 = vmatprep.subr.mxu0 0.0
        %3937 = vmatpush1.msra.mxu0 0.0
        %3938 = vmatprep.subr.mxu0 0.0
        %3939 = vmatpush1.msra.mxu0 0.0
        %3940 = vmatprep.subr.mxu0 0.0
        %3941 = vmatpush1.msra.mxu0 0.0
        %3942 = vmatprep.subr.mxu0 0.0
        %3943 = vmatpush1.msra.mxu0 0.0
        %3944 = vmatprep.subr.mxu0 0.0
        %3945 = vmatpush1.msra.mxu0 0.0
        %3946 = vmatprep.subr.mxu0 0.0
        %3947 = vmatpush1.msra.mxu0 0.0
        %3948 = vmatprep.subr.mxu0 0.0
        %3949 = vmatpush1.msra.mxu0 0.0
        %3950 = vmatprep.subr.mxu0 0.0
        %3951 = vmatpush1.msra.mxu0 0.0
        %3952 = vmatprep.mubr.f32.mxu0 0.0
        %3953 = vmatmul.mubr.f32.gmra.mrb[0].mxu0 %v3877
        %v3954 = vpop.f32.mrb[0].mxu0
        %v3955 = vadd.f32 0.0, %v3954
        %v3956 = vpop.f32.mrb[0].mxu0
        %v3957 = vadd.f32 0.0, %v3956
        %3958 = vmatprep.mubr.f32.mxu0 0.0
        %3959 = vmatmul.mubr.f32.gmra.mrb[0].mxu0 %v3880
        %v3960 = vpop.f32.mrb[0].mxu0
        %v3961 = vadd.f32 0.0, %v3960
        %v3962 = vpop.f32.mrb[0].mxu0
        %v3963 = vadd.f32 0.0, %v3962
        %3964 = vmatprep.mubr.f32.mxu0 0.0
        %3965 = vmatmul.mubr.f32.gmra.mrb[0].mxu0 %v3883
        %v3966 = vpop.f32.mrb[0].mxu0
        %v3967 = vadd.f32 0.0, %v3966
        %v3968 = vpop.f32.mrb[0].mxu0
        %v3969 = vadd.f32 0.0, %v3968
        %3970 = vmatprep.mubr.f32.mxu0 0.0
        %3971 = vmatmul.mubr.f32.gmra.mrb[0].mxu0 %v3886
        %v3972 = vpop.f32.mrb[0].mxu0
        %v3973 = vadd.f32 0.0, %v3972
        %v3974 = vpop.f32.mrb[0].mxu0
        %v3975 = vadd.f32 0.0, %v3974
        %3976 = vdwg.mxu0
        %v3977 = vadd.f32 %v3561, %v3955
        %v3978 = vadd.f32 %v3562, %v3957
        %v3979 = vadd.f32 %v3563, %v3961
        %v3980 = vadd.f32 %v3564, %v3963
        %v3981 = vadd.f32 %v3565, %v3967
        %v3982 = vadd.f32 %v3566, %v3969
        %v3983 = vadd.f32 %v3567, %v3973
        %v3984 = vadd.f32 %v3568, %v3975
        %3985 = vrot.lane.b32.xlu0 %v714, 32
        %v3986 = vpop.permute.xlu0 %3985
        %3987 = vrot.lane.b32.xlu0 %v720, 32
        %v3988 = vpop.permute.xlu0 %3987
        %3989 = vrot.lane.b32.xlu0 %v726, 32
        %v3990 = vpop.permute.xlu0 %3989
        %3991 = vrot.lane.b32.xlu0 %v732, 32
        %v3992 = vpop.permute.xlu0 %3991
        %3993 = vrot.lane.b32.xlu0 %v895, 32
        %v3994 = vpop.permute.xlu0 %3993
        %3995 = vrot.lane.b32.xlu0 %v901, 32
        %v3996 = vpop.permute.xlu0 %3995
        %3997 = vrot.lane.b32.xlu0 %v907, 32
        %v3998 = vpop.permute.xlu0 %3997
        %3999 = vrot.lane.b32.xlu0 %v913, 32
        %v4000 = vpop.permute.xlu0 %3999
        %4001 = vrot.lane.b32.xlu0 %v919, 32
        %v4002 = vpop.permute.xlu0 %4001
        %4003 = vrot.lane.b32.xlu0 %v925, 32
        %v4004 = vpop.permute.xlu0 %4003
        %4005 = vrot.lane.b32.xlu0 %v931, 32
        %v4006 = vpop.permute.xlu0 %4005
        %4007 = vrot.lane.b32.xlu0 %v937, 32
        %v4008 = vpop.permute.xlu0 %4007
        %v4009 = vsel %vm1144, %v3986, 0
        %v4011 = vsel %vm1144, %v3988, 0
        %v4013 = vsel %vm1144, %v3990, 0
        %v4015 = vsel %vm1144, %v3992, 0
        %v4017 = vsel %vm1144, %v3994, 0
        %v4019 = vsel %vm1144, %v3996, 0
        %v4021 = vsel %vm1144, %v3998, 0
        %v4023 = vsel %vm1144, %v4000, 0
        %v4025 = vsel %vm1144, %v4002, 0
        %v4027 = vsel %vm1144, %v4004, 0
        %v4029 = vsel %vm1144, %v4006, 0
        %v4031 = vsel %vm1144, %v4008, 0
        %4033 = vmatprep.subr.mxu0 0.0
        %4034 = vmatpush1.xpose.msra.mxu0 %v4017
        %4035 = vmatprep.subr.mxu0 0.0
        %4036 = vmatpush1.xpose.msra.mxu0 %v4019
        %4037 = vmatprep.subr.mxu0 0.0
        %4038 = vmatpush1.xpose.msra.mxu0 %v4021
        %4039 = vmatprep.subr.mxu0 0.0
        %4040 = vmatpush1.xpose.msra.mxu0 %v4023
        %4041 = vmatprep.subr.mxu0 0.0
        %4042 = vmatpush1.xpose.msra.mxu0 %v4025
        %4043 = vmatprep.subr.mxu0 0.0
        %4044 = vmatpush1.xpose.msra.mxu0 %v4027
        %4045 = vmatprep.subr.mxu0 0.0
        %4046 = vmatpush1.xpose.msra.mxu0 %v4029
        %4047 = vmatprep.subr.mxu0 0.0
        %4048 = vmatpush1.xpose.msra.mxu0 %v4031
        %4049 = vmatprep.subr.mxu0 0.0
        %4050 = vmatpush1.xpose.msra.mxu0 0.0
        %4051 = vmatprep.subr.mxu0 0.0
        %4052 = vmatpush1.xpose.msra.mxu0 0.0
        %4053 = vmatprep.subr.mxu0 0.0
        %4054 = vmatpush1.xpose.msra.mxu0 0.0
        %4055 = vmatprep.subr.mxu0 0.0
        %4056 = vmatpush1.xpose.msra.mxu0 0.0
        %4057 = vmatprep.subr.mxu0 0.0
        %4058 = vmatpush1.xpose.msra.mxu0 0.0
        %4059 = vmatprep.subr.mxu0 0.0
        %4060 = vmatpush1.xpose.msra.mxu0 0.0
        %4061 = vmatprep.subr.mxu0 0.0
        %4062 = vmatpush1.xpose.msra.mxu0 0.0
        %4063 = vmatprep.subr.mxu0 0.0
        %4064 = vmatpush1.xpose.msra.mxu0 0.0
        %4065 = vmatprep.subr.mxu0 0.0
        %4066 = vmatpush1.xpose.msra.mxu0 0.0
        %4067 = vmatprep.subr.mxu0 0.0
        %4068 = vmatpush1.xpose.msra.mxu0 0.0
        %4069 = vmatprep.subr.mxu0 0.0
        %4070 = vmatpush1.xpose.msra.mxu0 0.0
        %4071 = vmatprep.subr.mxu0 0.0
        %4072 = vmatpush1.xpose.msra.mxu0 0.0
        %4073 = vmatprep.subr.mxu0 0.0
        %4074 = vmatpush1.xpose.msra.mxu0 0.0
        %4075 = vmatprep.subr.mxu0 0.0
        %4076 = vmatpush1.xpose.msra.mxu0 0.0
        %4077 = vmatprep.subr.mxu0 0.0
        %4078 = vmatpush1.xpose.msra.mxu0 0.0
        %4079 = vmatprep.subr.mxu0 0.0
        %4080 = vmatpush1.xpose.msra.mxu0 0.0
        %4081 = vmatprep.subr.mxu0 0.0
        %4082 = vmatpush1.xpose.msra.mxu0 0.0
        %4083 = vmatprep.subr.mxu0 0.0
        %4084 = vmatpush1.xpose.msra.mxu0 0.0
        %4085 = vmatprep.subr.mxu0 0.0
        %4086 = vmatpush1.xpose.msra.mxu0 0.0
        %4087 = vmatprep.subr.mxu0 0.0
        %4088 = vmatpush1.xpose.msra.mxu0 0.0
        %4089 = vmatprep.subr.mxu0 0.0
        %4090 = vmatpush1.xpose.msra.mxu0 0.0
        %4091 = vmatprep.subr.mxu0 0.0
        %4092 = vmatpush1.xpose.msra.mxu0 0.0
        %4093 = vmatprep.subr.mxu0 0.0
        %4094 = vmatpush1.xpose.msra.mxu0 0.0
        %4095 = vmatprep.subr.mxu0 0.0
        %4096 = vmatpush1.xpose.msra.mxu0 0.0
        %4097 = vmatprep.mubr.f32.mxu0 0.0
        %4098 = vmatmul.mubr.f32.gmra.mrb[0].mxu0 %v4009
        %v4099 = vpop.f32.mrb[0].mxu0
        %v4100 = vadd.f32 0.0, %v4099
        %v4101 = vpop.f32.mrb[0].mxu0
        %4102 = vmatprep.mubr.f32.mxu0 0.0
        %4103 = vmatmul.mubr.f32.gmra.mrb[0].mxu0 %v4011
        %v4104 = vpop.f32.mrb[0].mxu0
        %v4105 = vadd.f32 0.0, %v4104
        %v4106 = vpop.f32.mrb[0].mxu0
        %4107 = vmatprep.mubr.f32.mxu0 0.0
        %4108 = vmatmul.mubr.f32.gmra.mrb[0].mxu0 %v4013
        %v4109 = vpop.f32.mrb[0].mxu0
        %v4110 = vadd.f32 0.0, %v4109
        %v4111 = vpop.f32.mrb[0].mxu0
        %4112 = vmatprep.mubr.f32.mxu0 0.0
        %4113 = vmatmul.mubr.f32.gmra.mrb[0].mxu0 %v4015
        %v4114 = vpop.f32.mrb[0].mxu0
        %v4115 = vadd.f32 0.0, %v4114
        %v4116 = vpop.f32.mrb[0].mxu0
        %4117 = vdwg.mxu0
        %v4118 = vsel %vm1266, %v4100, -inf
        %4119 = vmax.xlane.f32.xlu0 %v4118
        %v4120 = vpop.xlane.xlu0 %4119
        %v4121 = vsel %vm1266, %v4105, -inf
        %4122 = vmax.xlane.f32.xlu0 %v4121
        %v4123 = vpop.xlane.xlu0 %4122
        %v4124 = vsel %vm1266, %v4110, -inf
        %4125 = vmax.xlane.f32.xlu0 %v4124
        %v4126 = vpop.xlane.xlu0 %4125
        %v4127 = vsel %vm1266, %v4115, -inf
        %4128 = vmax.xlane.f32.xlu0 %v4127
        %v4129 = vpop.xlane.xlu0 %4128
        %v4130 = vsub.f32 %v4100, %v4120
        %v4131 = vsub.f32 %v4105, %v4123
        %v4132 = vsub.f32 %v4110, %v4126
        %v4133 = vsub.f32 %v4115, %v4129
        %v4134 = vmul.f32 %v4130, 1.442695
        %v4135 = vpow.pop %v4134
        %v4136 = vmul.f32 %v4131, 1.442695
        %v4137 = vpow.pop %v4136
        %v4138 = vmul.f32 %v4132, 1.442695
        %v4139 = vpow.pop %v4138
        %v4140 = vmul.f32 %v4133, 1.442695
        %v4141 = vpow.pop %v4140
        %v4142 = vsel %vm1266, %v4135, 0.0
        %4143 = vadd.xlane.f32.xlu0 %v4142
        %v4144 = vpop.xlane.xlu0 %4143
        %v4145 = vsel %vm1266, %v4137, 0.0
        %4146 = vadd.xlane.f32.xlu0 %v4145
        %v4147 = vpop.xlane.xlu0 %4146
        %v4148 = vsel %vm1266, %v4139, 0.0
        %4149 = vadd.xlane.f32.xlu0 %v4148
        %v4150 = vpop.xlane.xlu0 %4149
        %v4151 = vsel %vm1266, %v4141, 0.0
        %4152 = vadd.xlane.f32.xlu0 %v4151
        %v4153 = vpop.xlane.xlu0 %4152
        %4154 = vrot.lane.b32.xlu0 %v1100, 32
        %v4155 = vpop.permute.xlu0 %4154
        %4156 = vrot.lane.b32.xlu0 %v1106, 32
        %v4157 = vpop.permute.xlu0 %4156
        %4158 = vrot.lane.b32.xlu0 %v1112, 32
        %v4159 = vpop.permute.xlu0 %4158
        %4160 = vrot.lane.b32.xlu0 %v1118, 32
        %v4161 = vpop.permute.xlu0 %4160
        %4162 = vrot.lane.b32.xlu0 %v1124, 32
        %v4163 = vpop.permute.xlu0 %4162
        %4164 = vrot.lane.b32.xlu0 %v1130, 32
        %v4165 = vpop.permute.xlu0 %4164
        %4166 = vrot.lane.b32.xlu0 %v1136, 32
        %v4167 = vpop.permute.xlu0 %4166
        %4168 = vrot.lane.b32.xlu0 %v1142, 32
        %v4169 = vpop.permute.xlu0 %4168
        %v4179 = vsel %vm1266, %v4135, 0
        %v4182 = vsel %vm1266, %v4137, 0
        %v4185 = vsel %vm1266, %v4139, 0
        %v4188 = vsel %vm1266, %v4141, 0
        %4190 = vmatprep.subr.mxu0 0.0
        %4191 = vmatpush1.msra.mxu0 %v4155
        %4192 = vmatprep.subr.mxu0 0.0
        %4193 = vmatpush1.msra.mxu0 %v4157
        %4194 = vmatprep.subr.mxu0 0.0
        %4195 = vmatpush1.msra.mxu0 %v4159
        %4196 = vmatprep.subr.mxu0 0.0
        %4197 = vmatpush1.msra.mxu0 %v4161
        %4198 = vmatprep.subr.mxu0 0.0
        %4199 = vmatpush1.msra.mxu0 %v4163
        %4200 = vmatprep.subr.mxu0 0.0
        %4201 = vmatpush1.msra.mxu0 %v4165
        %4202 = vmatprep.subr.mxu0 0.0
        %4203 = vmatpush1.msra.mxu0 %v4167
        %4204 = vmatprep.subr.mxu0 0.0
        %4205 = vmatpush1.msra.mxu0 %v4169
        %4206 = vmatprep.subr.mxu0 0.0
        %4207 = vmatpush1.msra.mxu0 0.0
        %4208 = vmatprep.subr.mxu0 0.0
        %4209 = vmatpush1.msra.mxu0 0.0
        %4210 = vmatprep.subr.mxu0 0.0
        %4211 = vmatpush1.msra.mxu0 0.0
        %4212 = vmatprep.subr.mxu0 0.0
        %4213 = vmatpush1.msra.mxu0 0.0
        %4214 = vmatprep.subr.mxu0 0.0
        %4215 = vmatpush1.msra.mxu0 0.0
        %4216 = vmatprep.subr.mxu0 0.0
        %4217 = vmatpush1.msra.mxu0 0.0
        %4218 = vmatprep.subr.mxu0 0.0
        %4219 = vmatpush1.msra.mxu0 0.0
        %4220 = vmatprep.subr.mxu0 0.0
        %4221 = vmatpush1.msra.mxu0 0.0
        %4222 = vmatprep.subr.mxu0 0.0
        %4223 = vmatpush1.msra.mxu0 0.0
        %4224 = vmatprep.subr.mxu0 0.0
        %4225 = vmatpush1.msra.mxu0 0.0
        %4226 = vmatprep.subr.mxu0 0.0
        %4227 = vmatpush1.msra.mxu0 0.0
        %4228 = vmatprep.subr.mxu0 0.0
        %4229 = vmatpush1.msra.mxu0 0.0
        %4230 = vmatprep.subr.mxu0 0.0
        %4231 = vmatpush1.msra.mxu0 0.0
        %4232 = vmatprep.subr.mxu0 0.0
        %4233 = vmatpush1.msra.mxu0 0.0
        %4234 = vmatprep.subr.mxu0 0.0
        %4235 = vmatpush1.msra.mxu0 0.0
        %4236 = vmatprep.subr.mxu0 0.0
        %4237 = vmatpush1.msra.mxu0 0.0
        %4238 = vmatprep.subr.mxu0 0.0
        %4239 = vmatpush1.msra.mxu0 0.0
        %4240 = vmatprep.subr.mxu0 0.0
        %4241 = vmatpush1.msra.mxu0 0.0
        %4242 = vmatprep.subr.mxu0 0.0
        %4243 = vmatpush1.msra.mxu0 0.0
        %4244 = vmatprep.subr.mxu0 0.0
        %4245 = vmatpush1.msra.mxu0 0.0
        %4246 = vmatprep.subr.mxu0 0.0
        %4247 = vmatpush1.msra.mxu0 0.0
        %4248 = vmatprep.subr.mxu0 0.0
        %4249 = vmatpush1.msra.mxu0 0.0
        %4250 = vmatprep.subr.mxu0 0.0
        %4251 = vmatpush1.msra.mxu0 0.0
        %4252 = vmatprep.subr.mxu0 0.0
        %4253 = vmatpush1.msra.mxu0 0.0
        %4254 = vmatprep.mubr.f32.mxu0 0.0
        %4255 = vmatmul.mubr.f32.gmra.mrb[0].mxu0 %v4179
        %v4256 = vpop.f32.mrb[0].mxu0
        %v4257 = vadd.f32 0.0, %v4256
        %v4258 = vpop.f32.mrb[0].mxu0
        %4259 = vmatprep.mubr.f32.mxu0 0.0
        %4260 = vmatmul.mubr.f32.gmra.mrb[0].mxu0 %v4182
        %v4261 = vpop.f32.mrb[0].mxu0
        %v4262 = vadd.f32 0.0, %v4261
        %v4263 = vpop.f32.mrb[0].mxu0
        %4264 = vmatprep.mubr.f32.mxu0 0.0
        %4265 = vmatmul.mubr.f32.gmra.mrb[0].mxu0 %v4185
        %v4266 = vpop.f32.mrb[0].mxu0
        %v4267 = vadd.f32 0.0, %v4266
        %v4268 = vpop.f32.mrb[0].mxu0
        %4269 = vmatprep.mubr.f32.mxu0 0.0
        %4270 = vmatmul.mubr.f32.gmra.mrb[0].mxu0 %v4188
        %v4271 = vpop.f32.mrb[0].mxu0
        %v4272 = vadd.f32 0.0, %v4271
        %v4273 = vpop.f32.mrb[0].mxu0
        %4274 = vdwg.mxu0
        %v4275 = vrcp.pop %v4144
        %v4276 = vrcp.pop %v4147
        %v4277 = vrcp.pop %v4150
        %v4278 = vrcp.pop %v4153
        %v4279 = vmul.f32 %v4257, %v4275
        %v4280 = vmul.f32 %v4262, %v4276
        %v4281 = vmul.f32 %v4267, %v4277
        %v4282 = vmul.f32 %v4272, %v4278
        %s4283 = scalar_lea.vmem [#allocation13], 448
        %v4284 = vld [vmem:[%s4283] sm:$0xff]
        %v4285 = vld [vmem:[%s4283 + $0x8] sm:$0xff]
        %v4286 = vld [vmem:[%s4283 + $0x10] sm:$0xff]
        %v4287 = vld [vmem:[%s4283 + $0x18] sm:$0xff]
        %v4288 = vld [vmem:[%s4283 + $0x20] sm:$0xff]
        %v4289 = vld [vmem:[%s4283 + $0x28] sm:$0xff]
        %v4290 = vld [vmem:[%s4283 + $0x30] sm:$0xff]
        %v4291 = vld [vmem:[%s4283 + $0x38] sm:$0xff]
        %v4293 = vsel %vm1144, %v4279, 0
        %v4296 = vsel %vm1144, %v4280, 0
        %v4299 = vsel %vm1144, %v4281, 0
        %v4302 = vsel %vm1144, %v4282, 0
        %4304 = vmatprep.subr.mxu0 %v4285
        %4305 = vmatpush1.msra.mxu0 %v4284
        %4306 = vmatprep.subr.mxu0 %v4287
        %4307 = vmatpush1.msra.mxu0 %v4286
        %4308 = vmatprep.subr.mxu0 %v4289
        %4309 = vmatpush1.msra.mxu0 %v4288
        %4310 = vmatprep.subr.mxu0 %v4291
        %4311 = vmatpush1.msra.mxu0 %v4290
        %4312 = vmatprep.subr.mxu0 0.0
        %4313 = vmatpush1.msra.mxu0 0.0
        %4314 = vmatprep.subr.mxu0 0.0
        %4315 = vmatpush1.msra.mxu0 0.0
        %4316 = vmatprep.subr.mxu0 0.0
        %4317 = vmatpush1.msra.mxu0 0.0
        %4318 = vmatprep.subr.mxu0 0.0
        %4319 = vmatpush1.msra.mxu0 0.0
        %4320 = vmatprep.subr.mxu0 0.0
        %4321 = vmatpush1.msra.mxu0 0.0
        %4322 = vmatprep.subr.mxu0 0.0
        %4323 = vmatpush1.msra.mxu0 0.0
        %4324 = vmatprep.subr.mxu0 0.0
        %4325 = vmatpush1.msra.mxu0 0.0
        %4326 = vmatprep.subr.mxu0 0.0
        %4327 = vmatpush1.msra.mxu0 0.0
        %4328 = vmatprep.subr.mxu0 0.0
        %4329 = vmatpush1.msra.mxu0 0.0
        %4330 = vmatprep.subr.mxu0 0.0
        %4331 = vmatpush1.msra.mxu0 0.0
        %4332 = vmatprep.subr.mxu0 0.0
        %4333 = vmatpush1.msra.mxu0 0.0
        %4334 = vmatprep.subr.mxu0 0.0
        %4335 = vmatpush1.msra.mxu0 0.0
        %4336 = vmatprep.subr.mxu0 0.0
        %4337 = vmatpush1.msra.mxu0 0.0
        %4338 = vmatprep.subr.mxu0 0.0
        %4339 = vmatpush1.msra.mxu0 0.0
        %4340 = vmatprep.subr.mxu0 0.0
        %4341 = vmatpush1.msra.mxu0 0.0
        %4342 = vmatprep.subr.mxu0 0.0
        %4343 = vmatpush1.msra.mxu0 0.0
        %4344 = vmatprep.subr.mxu0 0.0
        %4345 = vmatpush1.msra.mxu0 0.0
        %4346 = vmatprep.subr.mxu0 0.0
        %4347 = vmatpush1.msra.mxu0 0.0
        %4348 = vmatprep.subr.mxu0 0.0
        %4349 = vmatpush1.msra.mxu0 0.0
        %4350 = vmatprep.subr.mxu0 0.0
        %4351 = vmatpush1.msra.mxu0 0.0
        %4352 = vmatprep.subr.mxu0 0.0
        %4353 = vmatpush1.msra.mxu0 0.0
        %4354 = vmatprep.subr.mxu0 0.0
        %4355 = vmatpush1.msra.mxu0 0.0
        %4356 = vmatprep.subr.mxu0 0.0
        %4357 = vmatpush1.msra.mxu0 0.0
        %4358 = vmatprep.subr.mxu0 0.0
        %4359 = vmatpush1.msra.mxu0 0.0
        %4360 = vmatprep.subr.mxu0 0.0
        %4361 = vmatpush1.msra.mxu0 0.0
        %4362 = vmatprep.subr.mxu0 0.0
        %4363 = vmatpush1.msra.mxu0 0.0
        %4364 = vmatprep.subr.mxu0 0.0
        %4365 = vmatpush1.msra.mxu0 0.0
        %4366 = vmatprep.subr.mxu0 0.0
        %4367 = vmatpush1.msra.mxu0 0.0
        %4368 = vmatprep.mubr.f32.mxu0 0.0
        %4369 = vmatmul.mubr.f32.gmra.mrb[0].mxu0 %v4293
        %v4370 = vpop.f32.mrb[0].mxu0
        %v4371 = vadd.f32 0.0, %v4370
        %v4372 = vpop.f32.mrb[0].mxu0
        %v4373 = vadd.f32 0.0, %v4372
        %4374 = vmatprep.mubr.f32.mxu0 0.0
        %4375 = vmatmul.mubr.f32.gmra.mrb[0].mxu0 %v4296
        %v4376 = vpop.f32.mrb[0].mxu0
        %v4377 = vadd.f32 0.0, %v4376
        %v4378 = vpop.f32.mrb[0].mxu0
        %v4379 = vadd.f32 0.0, %v4378
        %4380 = vmatprep.mubr.f32.mxu0 0.0
        %4381 = vmatmul.mubr.f32.gmra.mrb[0].mxu0 %v4299
        %v4382 = vpop.f32.mrb[0].mxu0
        %v4383 = vadd.f32 0.0, %v4382
        %v4384 = vpop.f32.mrb[0].mxu0
        %v4385 = vadd.f32 0.0, %v4384
        %4386 = vmatprep.mubr.f32.mxu0 0.0
        %4387 = vmatmul.mubr.f32.gmra.mrb[0].mxu0 %v4302
        %v4388 = vpop.f32.mrb[0].mxu0
        %v4389 = vadd.f32 0.0, %v4388
        %v4390 = vpop.f32.mrb[0].mxu0
        %v4391 = vadd.f32 0.0, %v4390
        %4392 = vdwg.mxu0
        %v4393 = vadd.f32 %v3977, %v4371
        %v4394 = vadd.f32 %v3978, %v4373
        %v4395 = vadd.f32 %v3979, %v4377
        %v4396 = vadd.f32 %v3980, %v4379
        %v4397 = vadd.f32 %v3981, %v4383
        %v4398 = vadd.f32 %v3982, %v4385
        %v4399 = vadd.f32 %v3983, %v4389
        %v4400 = vadd.f32 %v3984, %v4391
        %v4401 = vld [vmem:[%s10] sm:$0x3]
        %v4403 = vlaneseq
        %v4404 = vshrl.u32 %v4403, 7
        %v4405 = vsub.s32 0, %v4404
        %v4406 = vrot.slane %v4401, %v4405
        %v4407 = vlaneseq
        %v4408 = vshrl.u32 %v4407, 7
        %v4409 = vsub.s32 1, %v4408
        %v4410 = vrot.slane %v4401, %v4409
        %v4413 = vadd.f32 %v4393, %v4406
        %v4414 = vadd.f32 %v4394, %v4410
        %v4415 = vadd.f32 %v4395, %v4406
        %v4416 = vadd.f32 %v4396, %v4410
        %v4417 = vadd.f32 %v4397, %v4406
        %v4418 = vadd.f32 %v4398, %v4410
        %v4419 = vadd.f32 %v4399, %v4406
        %v4420 = vadd.f32 %v4400, %v4410
        %4421 = vst [vmem:[%s558] sm:$0xff] %v4413
        %4422 = vst [vmem:[%s558 + $0x8] sm:$0xff] %v4414
        %4423 = vst [vmem:[%s558 + $0x10] sm:$0xff] %v4415
        %4424 = vst [vmem:[%s558 + $0x18] sm:$0xff] %v4416
        %4425 = vst [vmem:[%s558 + $0x20] sm:$0xff] %v4417
        %4426 = vst [vmem:[%s558 + $0x28] sm:$0xff] %v4418
        %4427 = vst [vmem:[%s558 + $0x30] sm:$0xff] %v4419
        %4428 = vst [vmem:[%s558 + $0x38] sm:$0xff] %v4420
        %s4429 = sand.u32 %s303, 1
        %s4430 = scalar_lea.sflag [#allocation4], %s4429
        %s4431 = sand.u32 %s303, 1
        %s4432 = smul.addr %s4431, 64
        %s4433 = scalar_lea.vmem [#allocation14], %s4432
        // Predicated region
        $region93: #{tpu_custom_call.1} parent=63 // pred_check
          %p4434 = pneg %p313
        $region94: #{tpu_custom_call.1} parent=63 // pred_check_branch
          %4436 = sbr.rel (%p4434) target = $region96
        $region95: #{tpu_custom_call.1} parent=63 // pred_region
          %s4437 = smul.u32 4, %s38
          %s4439 = ssub.s32 1024, 1024
          %4440 = vsyncadd %s4430, %s4439
          %s4441 = smul.addr %s4437, 2
          %s4442 = smul.addr %s37, 8
          %s4443 = sadd.s32 %s4441, %s4442
          %s4444 = smul.addr %s4443, 128
          %s4445 = scalar_lea.hbm %s11, %s4444
          %s4446 = sshll.u32 %s4433, 4
          %s4447 = int_to_ptr.vmem [resolvable:$true] %s4446
          %4452 = dma.vmem_to_hbm [thread:$0]  %s4447, 1024, %s4445, %s4430, 256, 256, 16
        $region96: #{tpu_custom_call.1} parent=63 // pred_fallthru
          _
      $region64: #{tpu_custom_call.1} parent=5 // pred_fallthru
        _
      %p4453 = scmp.le.s32.totalorder 2, %s28
      // Predicated region
      $region97: #{tpu_custom_call.1} parent=5 // pred_check
        %p4454 = pneg %p4453
      $region98: #{tpu_custom_call.1} parent=5 // pred_check_branch
        %4456 = sbr.rel (%p4454) target = $region100
      $region99: #{tpu_custom_call.1} parent=5 // pred_region
        %s4457 = ssub.s32 %s28, 2
        // Predicated region
        $region101: #{tpu_custom_call.1} parent=99 // pred_check
          %p4458 = pneg %p319
        $region102: #{tpu_custom_call.1} parent=99 // pred_check_branch
          %4460 = sbr.rel (%p4458) target = $region104
        $region103: #{tpu_custom_call.1} parent=99 // pred_region
          %s4461 = sand.u32 %s304, 1
          %s4462 = scalar_lea.sflag [#allocation4], %s4461
          %s4463 = sand.u32 %s304, 1
          %s4464 = smul.addr %s4463, 64
          %s4465 = scalar_lea.vmem [#allocation14], %s4464
          %4466 = dma.done %s4462, 1024
        $region104: #{tpu_custom_call.1} parent=99 // pred_fallthru
          _
      $region100: #{tpu_custom_call.1} parent=5 // pred_fallthru
        _
    $region6: #{tpu_custom_call.1} parent=1 // loop_footer
      %s32 = sadd.s32 1, %s28
    $region7: #{tpu_custom_call.1} parent=1 // loop_footer_branch
      %27 = sbr.rel target = $region3
    $region8: #{tpu_custom_call.1} parent=1 // loop_exit
      _
    %4467 = vsyncpa [#allocation3], 1
    %s4468 = scalar_lea.sflag [#allocation3], 1
    %4469 = vsyncpa %s4468, 1
    %4470 = vsyncpa [#allocation6], 1
    %s4471 = scalar_lea.sflag [#allocation6], 1
    %4472 = vsyncpa %s4471, 1
    %4473 = vsyncpa [#allocation9], 1
    %4474 = vsyncpa [#allocation12], 1
    %4475 = vsyncpa [#allocation4], 1
    %s4476 = scalar_lea.sflag [#allocation4], 1
    %4477 = vsyncpa %s4476, 1

</llo_original>
